<compile_context>
chip_gen: v6e
topology: v6e:2x2x1
jax: 0.10.0
libtpu: 0.0.40
codegen_flags: <defaults>
</compile_context>

<pallas_src>
import jax
import jax.numpy as jnp
from jax.experimental import pallas as pl
from jax.experimental.pallas import tpu as pltpu


def _round_up(a, b):
    return (a + b - 1) // b * b


def _make_metaconv_kernel(residuals: bool, cnt_lane: int, cdt):
    """Kernel factory. `cnt_lane` is the spare zero lane of h1 that carries the scatter counts."""

    def kernel(row_ref, col_ref, x_ref, e_ref,
               w1e_s_ref, w1e_d_ref, w1e_e_ref, b1e_ref, eye_res_ref, w2e_ref, b2e_ref,
               w1a_x_ref, w1a_e_ref, b1a_ref, w2a_ref, b2a_ref,
               w1b_x_ref, w1b_g_ref, b1b_ref, w2b_ref, b2b_ref,
               e_out_ref, x_out_ref,
               agg_ref):
        f32 = jnp.float32
        i = pl.program_id(0)

        @pl.when(i == 0)
        def _init():
            agg_ref[...] = jnp.zeros_like(agg_ref)

        x = x_ref[...]               # (Np, Pn) compute dtype, resident across the grid
        e = e_ref[...]               # (TE, Fe) compute dtype, natural (un-padded) edge width
        row = row_ref[...]           # (1, TE) i32, edge_index[0] (lane-major)
        col = col_ref[...]           # (1, TE) i32, edge_index[1] (lane-major)
        Np = x.shape[0]
        TE = e.shape[0]

        # ---- single pair of *transposed* one-hots (Np, TE): sublane-broadcast compare ----
        # reused for both the gathers (transposed-LHS matmul) and the scatter matmul.
        node_ids = jax.lax.broadcasted_iota(jnp.int32, (Np, TE), 0)
        row_oh_t = (node_ids == row).astype(cdt)                       # (Np, TE)
        col_oh_t = (node_ids == col).astype(cdt)                       # (Np, TE)

        tn_dims = (((0,), (0,)), ((), ()))   # contract over the node axis (transposed LHS)
        x_row = jax.lax.dot_general(row_oh_t, x, tn_dims, preferred_element_type=f32)  # x[row]
        x_col = jax.lax.dot_general(col_oh_t, x, tn_dims, preferred_element_type=f32)  # x[col]

        # ---- EdgeModel: edge_mlp(cat([src, dest, edge_attr])) as row-split matmuls ----
        h = (jnp.dot(x_row.astype(cdt), w1e_s_ref[...], preferred_element_type=f32)
             + jnp.dot(x_col.astype(cdt), w1e_d_ref[...], preferred_element_type=f32)
             + jnp.dot(e, w1e_e_ref[...], preferred_element_type=f32)
             + b1e_ref[...])
        h = jnp.maximum(h, 0.0)
        e_new = jnp.dot(h.astype(cdt), w2e_ref[...], preferred_element_type=f32) + b2e_ref[...]
        if residuals:
            # truncate/zero-pad residual == natural-width e through a partial identity (MXU slack)
            e_new = e_new + jnp.dot(e, eye_res_ref[...], preferred_element_type=f32)
        e_out_ref[...] = e_new.astype(e_out_ref.dtype)

        # ---- NodeModel node_mlp_1 on edges: cat([x[col], new_edge_attr]) ----
        h1 = (jnp.dot(x_col.astype(cdt), w1a_x_ref[...], preferred_element_type=f32)
              + jnp.dot(e_new.astype(cdt), w1a_e_ref[...], preferred_element_type=f32)
              + b1a_ref[...])
        h1 = jnp.maximum(h1, 0.0)
        h1 = jnp.dot(h1.astype(cdt), w2a_ref[...], preferred_element_type=f32) + b2a_ref[...]

        # ---- scatter_mean accumulation: counts folded into the scatter matmul through the
        # spare all-zero lane `cnt_lane` of h1 (hits zero-padded rows of w1b_g later). ----
        cnt_mask = (jax.lax.broadcasted_iota(jnp.int32, (1, h1.shape[1]), 1)
                    == cnt_lane).astype(f32)
        agg_ref[...] += jnp.dot(row_oh_t, (h1 + cnt_mask).astype(cdt),
                                preferred_element_type=f32)

        # ---- final tile: node_mlp_2(cat([x, agg_mean])) + node residual ----
        @pl.when(i == pl.num_programs(0) - 1)
        def _finalize():
            agg = agg_ref[...]
            cnt = agg[:, cnt_lane:cnt_lane + 1]
            agg = agg / jnp.maximum(cnt, 1.0)
            h2 = (jnp.dot(x, w1b_x_ref[...], preferred_element_type=f32)
                  + jnp.dot(agg.astype(cdt), w1b_g_ref[...], preferred_element_type=f32)
                  + b1b_ref[...])
            h2 = jnp.maximum(h2, 0.0)
            x_new = (jnp.dot(h2.astype(cdt), w2b_ref[...], preferred_element_type=f32)
                     + b2b_ref[...])
            if residuals:
                x_new = x_new + x.astype(f32)
            x_out_ref[...] = x_new

    return kernel


def _vmem_bytes(shape, itemsize):
    """VMEM allocation size of a 2-D buffer, including the (8,128) layout padding."""
    return _round_up(shape[0], 8) * _round_up(shape[1], 128) * itemsize


def metaconv_forward(x, edge_index, edge_attr, params, *, residuals=True,
                     edge_tile=None, compute_dtype=jnp.float32):
    """Fused MetaConv forward (edge-tiled Pallas kernel). Returns (new_x, new_edge_attr)."""
    N, Fn = x.shape
    E, Fe = edge_attr.shape
    H = params['w2a'].shape[1]
    node_out = params['w2b'].shape[1]
    edge_out = params['w2e'].shape[1]

    cdt = jnp.dtype(compute_dtype)
    item = cdt.itemsize

    # Lane-dense padded widths (multiples of 128) + sublane-padded node count.
    Pn = _round_up(max(Fn, node_out), 128)
    Pe = _round_up(max(Fe, edge_out), 128)
    Hp = _round_up(H, 128)
    Ha = Hp if H < Hp else Hp + 128   # width of h1/agg: always keeps a spare zero lane at H
    Np = _round_up(max(N, 1), 8)

    # ---- generation-aware VMEM caps (v7x has 64 MiB physical, v5e/v6e 128 MiB) ----
    try:
        vmem_phys = int(pltpu.get_tpu_info().vmem_capacity_bytes)
    except Exception:
        vmem_phys = 64 * 1024 * 1024  # conservative (v7x-sized) fallback
    limit_cap = min(int(0.75 * vmem_phys), 100 * 2 ** 20)   # <=48 MiB v7x, <=96 MiB v5e/v6e

    # ---- padded weights: compute-dtype weights/x, f32 biases ----
    def _padw(a, rows, cols):
        a = jnp.asarray(a, jnp.float32)
        a = jnp.pad(a, ((0, rows - a.shape[0]), (0, cols - a.shape[1])))
        return a.astype(cdt)

    def _padb(a, cols):
        a = jnp.asarray(a, jnp.float32)
        return jnp.pad(a, ((0, 0), (0, cols - a.shape[1])))

    w1e = params['w1e']                                   # (2*Fn + Fe, H)
    w1e_s = _padw(w1e[:Fn], Pn, Hp)
    w1e_d = _padw(w1e[Fn:2 * Fn], Pn, Hp)
    w1e_e = _padw(w1e[2 * Fn:], Fe, Hp)                   # natural edge width rows
    b1e = _padb(params['b1e'], Hp)
    w2e = _padw(params['w2e'], Hp, Pe)
    b2e = _padb(params['b2e'], Pe)
    # partial identity implementing the truncate / zero-pad edge residual on padded lanes
    r = min(Fe, edge_out)
    eye_res = jnp.zeros((Fe, Pe), jnp.float32).at[jnp.arange(r), jnp.arange(r)].set(1.0)
    eye_res = eye_res.astype(cdt)

    w1a = params['w1a']                                   # (Fn + edge_out, H)
    w1a_x = _padw(w1a[:Fn], Pn, Hp)
    w1a_e = _padw(w1a[Fn:], Pe, Hp)
    b1a = _padb(params['b1a'], Hp)
    w2a = _padw(params['w2a'], Hp, Ha)                    # columns >= H are zero (count lane)
    b2a = _padb(params['b2a'], Ha)

    w1b = params['w1b']                                   # (Fn + H, H), cat([x, agg]) order
    w1b_x = _padw(w1b[:Fn], Pn, Hp)
    w1b_g = _padw(w1b[Fn:], Ha, Hp)                       # rows >= H are zero (count lane safe)
    b1b = _padb(params['b1b'], Hp)
    w2b = _padw(params['w2b'], Hp, Pn)
    b2b = _padb(params['b2b'], Pn)

    x_p = _padw(x, Np, Pn)

    weights = (w1e_s, w1e_d, w1e_e, b1e, eye_res, w2e, b2e,
               w1a_x, w1a_e, b1a, w2a, b2a,
               w1b_x, w1b_g, b1b, w2b, b2b)

    # ---- exact-ish VMEM accounting: resident bytes come out of the budget first ----
    resident_arrays = (x_p,) + weights
    resident_bytes = sum(_vmem_bytes(a.shape, a.dtype.itemsize) for a in resident_arrays)
    fixed_bytes = (2 * _vmem_bytes((Np, Pn), 4)       # x_out output block (pipelined)
                   + _vmem_bytes((Np, Ha), 4))        # agg accumulator scratch

    def _tile_bytes(te):
        streams = 2 * (2 * _vmem_bytes((1, te), 4)    # row/col lane-major index tiles
                       + _vmem_bytes((te, Fe), item)  # edge_attr tile (128-lane alloc padding)
                       + _vmem_bytes((te, Pe), item)) # e_out tile
        temps = 4 * te * (2 * Np + 2 * Pn + Hp + Pe + Ha)  # one-hots + activations (f32-conservative)
        return streams + temps

    # conservative: assume residents are double-buffered (covers the fallback path)
    budget = limit_cap - 2 * resident_bytes - fixed_bytes - 2 * 2 ** 20
    if edge_tile is None:
        te = 2048
        while te > 128 and _tile_bytes(te) > budget:
            te //= 2
        edge_tile = te
    TE = max(128, min(_round_up(int(edge_tile), 128), _round_up(max(E, 1), 128)))
    E_pad = max(_round_up(E, TE), TE)     # E == 0 guard: always at least one tile
    num_tiles = E_pad // TE

    vmem_limit = int(min(limit_cap,
                         max(16 * 2 ** 20,
                             2 * resident_bytes + fixed_bytes + _tile_bytes(TE) + 2 * 2 ** 20)))

    # ---- pad edge streams; padded edges get an out-of-range node id so they contribute nothing ----
    e_p = jnp.pad(jnp.asarray(edge_attr, jnp.float32), ((0, E_pad - E), (0, 0))).astype(cdt)
    sentinel = jnp.int32(Np)
    row = jnp.full((E_pad,), sentinel, jnp.int32).at[:E].set(edge_index[0].astype(jnp.int32))
    col = jnp.full((E_pad,), sentinel, jnp.int32).at[:E].set(edge_index[1].astype(jnp.int32))
    row_lane = row.reshape(1, E_pad)
    col_lane = col.reshape(1, E_pad)

    kernel = _make_metaconv_kernel(residuals, H, cdt)
    out_shape = (jax.ShapeDtypeStruct((E_pad, Pe), cdt),
                 jax.ShapeDtypeStruct((Np, Pn), jnp.float32))
    operands = (row_lane, col_lane, x_p, e_p) + weights

    def _run(single_buffer_residents):
        def res(shape):
            kw = {}
            if single_buffer_residents:
                # grid-invariant blocks need only one buffer; halves their VMEM footprint
                kw['pipeline_mode'] = pl.Buffered(buffer_count=1)
            return pl.BlockSpec(shape, lambda i: (0, 0), **kw)

        in_specs = [
            pl.BlockSpec((1, TE), lambda i: (0, i)),      # row (lane-major)
            pl.BlockSpec((1, TE), lambda i: (0, i)),      # col (lane-major)
            res((Np, Pn)),                                # x (resident)
            pl.BlockSpec((TE, Fe), lambda i: (i, 0)),     # edge_attr tile (natural width)
            res((Pn, Hp)), res((Pn, Hp)), res((Fe, Hp)), res((1, Hp)),
            res((Fe, Pe)), res((Hp, Pe)), res((1, Pe)),
            res((Pn, Hp)), res((Pe, Hp)), res((1, Hp)), res((Hp, Ha)), res((1, Ha)),
            res((Pn, Hp)), res((Ha, Hp)), res((1, Hp)), res((Hp, Pn)), res((1, Pn)),
        ]
        out_specs = (
            pl.BlockSpec((TE, Pe), lambda i: (i, 0)),     # e_out tile (lane-dense)
            pl.BlockSpec((Np, Pn), lambda i: (0, 0)),     # x_out (resident; written on last tile)
        )
        return pl.pallas_call(
            kernel,
            grid=(num_tiles,),
            out_shape=out_shape,
            in_specs=in_specs,
            out_specs=out_specs,
            scratch_shapes=[pltpu.VMEM((Np, Ha), jnp.float32)],   # agg_sum (+ folded counts)
            compiler_params=pltpu.CompilerParams(
                dimension_semantics=("arbitrary",),   # edge axis is a reduction for x_out/agg
                vmem_limit_bytes=vmem_limit),
        )(*operands)

    try:
        e_out_p, x_out_p = _run(True)
    except Exception:
        # pipeline_mode=pl.Buffered(1) not supported on this jax/Mosaic build; use defaults.
        e_out_p, x_out_p = _run(False)

    x_out = x_out_p[:N, :node_out]
    e_out = e_out_p[:E, :edge_out].astype(jnp.float32)
    return x_out, e_out


def init_params(key, node_in, edge_in, node_out, edge_out, n_hiddens):
    """Deterministic synthetic init (PyTorch-Linear-style uniform), n_layers = 2."""
    def lin(k, fan_in, fan_out):
        k1, k2 = jax.random.split(k)
        lim = 1.0 / jnp.sqrt(jnp.float32(fan_in))
        w = jax.random.uniform(k1, (fan_in, fan_out), jnp.float32, -lim, lim)
        b = jax.random.uniform(k2, (1, fan_out), jnp.float32, -lim, lim)
        return w, b

    keys = jax.random.split(key, 6)
    p = {}
    p['w1e'], p['b1e'] = lin(keys[0], 2 * node_in + edge_in, n_hiddens)   # edge_mlp[0]
    p['w2e'], p['b2e'] = lin(keys[1], n_hiddens, edge_out)                # edge_mlp[-1]
    p['w1a'], p['b1a'] = lin(keys[2], node_in + edge_out, n_hiddens)      # node_mlp_1[0]
    p['w2a'], p['b2a'] = lin(keys[3], n_hiddens, n_hiddens)               # node_mlp_1[-1]
    p['w1b'], p['b1b'] = lin(keys[4], n_hiddens + node_in, n_hiddens)     # node_mlp_2[0]
    p['w2b'], p['b2b'] = lin(keys[5], n_hiddens, node_out)                # node_mlp_2[-1]
    return p


def reference_forward(x, edge_index, e, p, residuals=True):
    """Pure-JAX reference mirroring the PyTorch forward exactly."""
    row, col = edge_index[0], edge_index[1]
    N = x.shape[0]

    def mlp2(h, w1, b1, w2, b2):
        return jnp.maximum(h @ w1 + b1, 0.0) @ w2 + b2

    out_e = mlp2(jnp.concatenate([x[row], x[col], e], axis=1),
                 p['w1e'], p['b1e'], p['w2e'], p['b2e'])
    if residuals:
        fe_out, fe_in = out_e.shape[1], e.shape[1]
        if fe_out < fe_in:
            e_res = e[:, :fe_out]
        elif fe_out > fe_in:
            e_res = jnp.concatenate([e, jnp.zeros((e.shape[0], fe_out - fe_in), jnp.float32)], 1)
        else:
            e_res = e
        out_e = out_e + e_res

    h1 = mlp2(jnp.concatenate([x[col], out_e], axis=1),
              p['w1a'], p['b1a'], p['w2a'], p['b2a'])
    agg_sum = jax.ops.segment_sum(h1, row, num_segments=N)
    counts = jax.ops.segment_sum(jnp.ones((h1.shape[0], 1), jnp.float32), row, num_segments=N)
    agg = agg_sum / jnp.maximum(counts, 1.0)
    out_x = mlp2(jnp.concatenate([x, agg], axis=1),
                 p['w1b'], p['b1b'], p['w2b'], p['b2b'])
    if residuals:
        fn_out, fn_in = out_x.shape[1], x.shape[1]
        if fn_out < fn_in:
            x_res = x[:, :fn_out]
        elif fn_out > fn_in:
            x_res = jnp.concatenate([x, jnp.zeros((N, fn_out - fn_in), jnp.float32)], 1)
        else:
            x_res = x
        out_x = out_x + x_res
    return out_x, out_e


if __name__ == "__main__":
    key = jax.random.PRNGKey(0)
    k_x, k_e, k_ei, k_p = jax.random.split(key, 4)

    # Small shapes consistent with the module: Channels(node=16, edge=8), H=32, n_layers=2
    N, E = 16, 64
    node_in = node_out = 16
    edge_in = edge_out = 8
    n_hiddens = 32

    x = jax.random.normal(k_x, (N, node_in), jnp.float32)
    edge_attr = jax.random.normal(k_e, (E, edge_in), jnp.float32)
    edge_index = jax.random.randint(k_ei, (2, E), 0, N, dtype=jnp.int32)

    params = init_params(k_p, node_in, edge_in, node_out, edge_out, n_hiddens)
    x_ref, e_ref = reference_forward(x, edge_index, edge_attr, params, residuals=True)

    # f32 path: exact check against the pure-JAX reference.
    x_new, e_new = metaconv_forward(x, edge_index, edge_attr, params, residuals=True)
    jax.block_until_ready((x_new, e_new))
    assert x_new.shape == (N, node_out) and e_new.shape == (E, edge_out)
    assert jnp.allclose(x_new, x_ref, atol=1e-4, rtol=1e-4), \
        float(jnp.max(jnp.abs(x_new - x_ref)))
    assert jnp.allclose(e_new, e_ref, atol=1e-4, rtol=1e-4), \
        float(jnp.max(jnp.abs(e_new - e_ref)))

    # bf16 perf path (v6e/v7x MXU + halved HBM/VMEM traffic): deliberately looser tolerance.
    x_bf, e_bf = metaconv_forward(x, edge_index, edge_attr, params, residuals=True,
                                  compute_dtype=jnp.bfloat16)
    jax.block_until_ready((x_bf, e_bf))
    assert jnp.allclose(x_bf, x_ref, atol=1e-1, rtol=1e-1), \
        float(jnp.max(jnp.abs(x_bf - x_ref)))
    assert jnp.allclose(e_bf, e_ref, atol=1e-1, rtol=1e-1), \
        float(jnp.max(jnp.abs(e_bf - e_ref)))

    print("KERNEL_OK")
</pallas_src>

<mosaic_0001>
module attributes {stable_mosaic.version = 11 : i64} {
  func.func @kernel(%arg0: i32, %arg1: memref<1x128xi32, #tpu.memory_space<vmem>>, %arg2: memref<1x128xi32, #tpu.memory_space<vmem>>, %arg3: memref<16x128xf32, #tpu.memory_space<vmem>>, %arg4: memref<128x8xf32, #tpu.memory_space<vmem>>, %arg5: memref<128x128xf32, #tpu.memory_space<vmem>>, %arg6: memref<128x128xf32, #tpu.memory_space<vmem>>, %arg7: memref<8x128xf32, #tpu.memory_space<vmem>>, %arg8: memref<1x128xf32, #tpu.memory_space<vmem>>, %arg9: memref<8x128xf32, #tpu.memory_space<vmem>>, %arg10: memref<128x128xf32, #tpu.memory_space<vmem>>, %arg11: memref<1x128xf32, #tpu.memory_space<vmem>>, %arg12: memref<128x128xf32, #tpu.memory_space<vmem>>, %arg13: memref<128x128xf32, #tpu.memory_space<vmem>>, %arg14: memref<1x128xf32, #tpu.memory_space<vmem>>, %arg15: memref<128x128xf32, #tpu.memory_space<vmem>>, %arg16: memref<1x128xf32, #tpu.memory_space<vmem>>, %arg17: memref<128x128xf32, #tpu.memory_space<vmem>>, %arg18: memref<128x128xf32, #tpu.memory_space<vmem>>, %arg19: memref<1x128xf32, #tpu.memory_space<vmem>>, %arg20: memref<128x128xf32, #tpu.memory_space<vmem>>, %arg21: memref<1x128xf32, #tpu.memory_space<vmem>>, %arg22: memref<128x128xf32, #tpu.memory_space<vmem>>, %arg23: memref<16x128xf32, #tpu.memory_space<vmem>>, %arg24: memref<16x128xf32, #tpu.memory_space<vmem>>) attributes {dimension_semantics = [#tpu.dimension_semantics<arbitrary>], iteration_bounds = array<i64: 1>, scalar_prefetch = 0 : i64, scratch_operands = 1 : i64, tpu.core_type = #tpu.core_type<tc>, window_params = [{transform_indices = @transform_0, window_bounds = array<i64: 1, 128>}, {transform_indices = @transform_1, window_bounds = array<i64: 1, 128>}, {pipeline_mode = #tpu.pipeline_mode<synchronous>, transform_indices = @transform_2, window_bounds = array<i64: 16, 128>}, {transform_indices = @transform_3, window_bounds = array<i64: 128, 8>}, {pipeline_mode = #tpu.pipeline_mode<synchronous>, transform_indices = @transform_4, window_bounds = array<i64: 128, 128>}, {pipeline_mode = #tpu.pipeline_mode<synchronous>, transform_indices = @transform_5, window_bounds = array<i64: 128, 128>}, {pipeline_mode = #tpu.pipeline_mode<synchronous>, transform_indices = @transform_6, window_bounds = array<i64: 8, 128>}, {pipeline_mode = #tpu.pipeline_mode<synchronous>, transform_indices = @transform_7, window_bounds = array<i64: 1, 128>}, {pipeline_mode = #tpu.pipeline_mode<synchronous>, transform_indices = @transform_8, window_bounds = array<i64: 8, 128>}, {pipeline_mode = #tpu.pipeline_mode<synchronous>, transform_indices = @transform_9, window_bounds = array<i64: 128, 128>}, {pipeline_mode = #tpu.pipeline_mode<synchronous>, transform_indices = @transform_10, window_bounds = array<i64: 1, 128>}, {pipeline_mode = #tpu.pipeline_mode<synchronous>, transform_indices = @transform_11, window_bounds = array<i64: 128, 128>}, {pipeline_mode = #tpu.pipeline_mode<synchronous>, transform_indices = @transform_12, window_bounds = array<i64: 128, 128>}, {pipeline_mode = #tpu.pipeline_mode<synchronous>, transform_indices = @transform_13, window_bounds = array<i64: 1, 128>}, {pipeline_mode = #tpu.pipeline_mode<synchronous>, transform_indices = @transform_14, window_bounds = array<i64: 128, 128>}, {pipeline_mode = #tpu.pipeline_mode<synchronous>, transform_indices = @transform_15, window_bounds = array<i64: 1, 128>}, {pipeline_mode = #tpu.pipeline_mode<synchronous>, transform_indices = @transform_16, window_bounds = array<i64: 128, 128>}, {pipeline_mode = #tpu.pipeline_mode<synchronous>, transform_indices = @transform_17, window_bounds = array<i64: 128, 128>}, {pipeline_mode = #tpu.pipeline_mode<synchronous>, transform_indices = @transform_18, window_bounds = array<i64: 1, 128>}, {pipeline_mode = #tpu.pipeline_mode<synchronous>, transform_indices = @transform_19, window_bounds = array<i64: 128, 128>}, {pipeline_mode = #tpu.pipeline_mode<synchronous>, transform_indices = @transform_20, window_bounds = array<i64: 1, 128>}, {transform_indices = @transform_21, window_bounds = array<i64: 128, 128>}, {pipeline_mode = #tpu.pipeline_mode<synchronous>, transform_indices = @transform_22, window_bounds = array<i64: 16, 128>}]} {
    %c0_i32 = arith.constant 0 : i32
    %0 = arith.cmpi eq, %arg0, %c0_i32 : i32
    %1 = arith.extui %0 : i1 to i32
    %c0_i32_0 = arith.constant 0 : i32
    %2 = arith.cmpi ne, %1, %c0_i32_0 : i32
    scf.if %2 {
      %cst_52 = arith.constant 0.000000e+00 : f32
      %69 = vector.broadcast %cst_52 : f32 to vector<16x128xf32>
      %c0_53 = arith.constant 0 : index
      %c0_54 = arith.constant 0 : index
      %70 = vector.load %arg24[%c0_53, %c0_54] : memref<16x128xf32, #tpu.memory_space<vmem>>, vector<16x128xf32>
      tpu.vector_store %arg24[%c0_53, %c0_54], %69 {strides = array<i32>} : memref<16x128xf32, #tpu.memory_space<vmem>>, vector<16x128xf32>,
    } else {
    }
    %c0 = arith.constant 0 : index
    %c0_1 = arith.constant 0 : index
    %3 = vector.load %arg3[%c0, %c0_1] : memref<16x128xf32, #tpu.memory_space<vmem>>, vector<16x128xf32>
    %c0_2 = arith.constant 0 : index
    %c0_3 = arith.constant 0 : index
    %4 = vector.load %arg4[%c0_2, %c0_3] : memref<128x8xf32, #tpu.memory_space<vmem>>, vector<128x8xf32>
    %c0_4 = arith.constant 0 : index
    %c0_5 = arith.constant 0 : index
    %5 = vector.load %arg1[%c0_4, %c0_5] : memref<1x128xi32, #tpu.memory_space<vmem>>, vector<1x128xi32>
    %c0_6 = arith.constant 0 : index
    %c0_7 = arith.constant 0 : index
    %6 = vector.load %arg2[%c0_6, %c0_7] : memref<1x128xi32, #tpu.memory_space<vmem>>, vector<1x128xi32>
    %7 = tpu.iota {dimensions = array<i32: 0>} : vector<16x128xi32>
    %8 = vector.broadcast %5 : vector<1x128xi32> to vector<16x128xi32>
    %9 = arith.cmpi eq, %7, %8 : vector<16x128xi32>
    %10 = arith.extui %9 : vector<16x128xi1> to vector<16x128xi32>
    %11 = arith.sitofp %10 : vector<16x128xi32> to vector<16x128xf32>
    %12 = vector.broadcast %6 : vector<1x128xi32> to vector<16x128xi32>
    %13 = arith.cmpi eq, %7, %12 : vector<16x128xi32>
    %14 = arith.extui %13 : vector<16x128xi1> to vector<16x128xi32>
    %15 = arith.sitofp %14 : vector<16x128xi32> to vector<16x128xf32>
    %cst = arith.constant dense<0.000000e+00> : vector<128x128xf32>
    %16 = tpu.matmul %11, %3, %cst {dimension_numbers = #tpu.dot_dimension_numbers<[0], [0], [1], [1], [0, 1, 1, 1], [], []>} : vector<16x128xf32>, vector<16x128xf32>, vector<128x128xf32> -> vector<128x128xf32>
    %cst_8 = arith.constant dense<0.000000e+00> : vector<128x128xf32>
    %17 = tpu.matmul %15, %3, %cst_8 {dimension_numbers = #tpu.dot_dimension_numbers<[0], [0], [1], [1], [0, 1, 1, 1], [], []>} : vector<16x128xf32>, vector<16x128xf32>, vector<128x128xf32> -> vector<128x128xf32>
    %c0_9 = arith.constant 0 : index
    %c0_10 = arith.constant 0 : index
    %18 = vector.load %arg5[%c0_9, %c0_10] : memref<128x128xf32, #tpu.memory_space<vmem>>, vector<128x128xf32>
    %cst_11 = arith.constant dense<0.000000e+00> : vector<128x128xf32>
    %19 = tpu.matmul %16, %18, %cst_11 {dimension_numbers = #tpu.dot_dimension_numbers<[1], [0], [0], [1], [0, 0, 1, 1], [], []>} : vector<128x128xf32>, vector<128x128xf32>, vector<128x128xf32> -> vector<128x128xf32>
    %c0_12 = arith.constant 0 : index
    %c0_13 = arith.constant 0 : index
    %20 = vector.load %arg6[%c0_12, %c0_13] : memref<128x128xf32, #tpu.memory_space<vmem>>, vector<128x128xf32>
    %cst_14 = arith.constant dense<0.000000e+00> : vector<128x128xf32>
    %21 = tpu.matmul %17, %20, %cst_14 {dimension_numbers = #tpu.dot_dimension_numbers<[1], [0], [0], [1], [0, 0, 1, 1], [], []>} : vector<128x128xf32>, vector<128x128xf32>, vector<128x128xf32> -> vector<128x128xf32>
    %22 = arith.addf %19, %21 : vector<128x128xf32>
    %c0_15 = arith.constant 0 : index
    %c0_16 = arith.constant 0 : index
    %23 = vector.load %arg7[%c0_15, %c0_16] : memref<8x128xf32, #tpu.memory_space<vmem>>, vector<8x128xf32>
    %cst_17 = arith.constant dense<0.000000e+00> : vector<128x128xf32>
    %24 = tpu.matmul %4, %23, %cst_17 {dimension_numbers = #tpu.dot_dimension_numbers<[1], [0], [0], [1], [0, 0, 1, 1], [], []>} : vector<128x8xf32>, vector<8x128xf32>, vector<128x128xf32> -> vector<128x128xf32>
    %25 = arith.addf %22, %24 : vector<128x128xf32>
    %c0_18 = arith.constant 0 : index
    %c0_19 = arith.constant 0 : index
    %26 = vector.load %arg8[%c0_18, %c0_19] : memref<1x128xf32, #tpu.memory_space<vmem>>, vector<1x128xf32>
    %27 = vector.broadcast %26 : vector<1x128xf32> to vector<128x128xf32>
    %28 = arith.addf %25, %27 : vector<128x128xf32>
    %cst_20 = arith.constant 0.000000e+00 : f32
    %29 = vector.broadcast %cst_20 : f32 to vector<128x128xf32>
    %30 = arith.maximumf %28, %29 : vector<128x128xf32>
    %c0_21 = arith.constant 0 : index
    %c0_22 = arith.constant 0 : index
    %31 = vector.load %arg10[%c0_21, %c0_22] : memref<128x128xf32, #tpu.memory_space<vmem>>, vector<128x128xf32>
    %cst_23 = arith.constant dense<0.000000e+00> : vector<128x128xf32>
    %32 = tpu.matmul %30, %31, %cst_23 {dimension_numbers = #tpu.dot_dimension_numbers<[1], [0], [0], [1], [0, 0, 1, 1], [], []>} : vector<128x128xf32>, vector<128x128xf32>, vector<128x128xf32> -> vector<128x128xf32>
    %c0_24 = arith.constant 0 : index
    %c0_25 = arith.constant 0 : index
    %33 = vector.load %arg11[%c0_24, %c0_25] : memref<1x128xf32, #tpu.memory_space<vmem>>, vector<1x128xf32>
    %34 = vector.broadcast %33 : vector<1x128xf32> to vector<128x128xf32>
    %35 = arith.addf %32, %34 : vector<128x128xf32>
    %c0_26 = arith.constant 0 : index
    %c0_27 = arith.constant 0 : index
    %36 = vector.load %arg9[%c0_26, %c0_27] : memref<8x128xf32, #tpu.memory_space<vmem>>, vector<8x128xf32>
    %cst_28 = arith.constant dense<0.000000e+00> : vector<128x128xf32>
    %37 = tpu.matmul %4, %36, %cst_28 {dimension_numbers = #tpu.dot_dimension_numbers<[1], [0], [0], [1], [0, 0, 1, 1], [], []>} : vector<128x8xf32>, vector<8x128xf32>, vector<128x128xf32> -> vector<128x128xf32>
    %38 = arith.addf %35, %37 : vector<128x128xf32>
    %c0_29 = arith.constant 0 : index
    %c0_30 = arith.constant 0 : index
    %39 = vector.load %arg22[%c0_29, %c0_30] : memref<128x128xf32, #tpu.memory_space<vmem>>, vector<128x128xf32>
    tpu.vector_store %arg22[%c0_29, %c0_30], %38 {strides = array<i32>} : memref<128x128xf32, #tpu.memory_space<vmem>>, vector<128x128xf32>,
    %c0_31 = arith.constant 0 : index
    %c0_32 = arith.constant 0 : index
    %40 = vector.load %arg12[%c0_31, %c0_32] : memref<128x128xf32, #tpu.memory_space<vmem>>, vector<128x128xf32>
    %cst_33 = arith.constant dense<0.000000e+00> : vector<128x128xf32>
    %41 = tpu.matmul %17, %40, %cst_33 {dimension_numbers = #tpu.dot_dimension_numbers<[1], [0], [0], [1], [0, 0, 1, 1], [], []>} : vector<128x128xf32>, vector<128x128xf32>, vector<128x128xf32> -> vector<128x128xf32>
    %c0_34 = arith.constant 0 : index
    %c0_35 = arith.constant 0 : index
    %42 = vector.load %arg13[%c0_34, %c0_35] : memref<128x128xf32, #tpu.memory_space<vmem>>, vector<128x128xf32>
    %cst_36 = arith.constant dense<0.000000e+00> : vector<128x128xf32>
    %43 = tpu.matmul %38, %42, %cst_36 {dimension_numbers = #tpu.dot_dimension_numbers<[1], [0], [0], [1], [0, 0, 1, 1], [], []>} : vector<128x128xf32>, vector<128x128xf32>, vector<128x128xf32> -> vector<128x128xf32>
    %44 = arith.addf %41, %43 : vector<128x128xf32>
    %c0_37 = arith.constant 0 : index
    %c0_38 = arith.constant 0 : index
    %45 = vector.load %arg14[%c0_37, %c0_38] : memref<1x128xf32, #tpu.memory_space<vmem>>, vector<1x128xf32>
    %46 = vector.broadcast %45 : vector<1x128xf32> to vector<128x128xf32>
    %47 = arith.addf %44, %46 : vector<128x128xf32>
    %cst_39 = arith.constant 0.000000e+00 : f32
    %48 = vector.broadcast %cst_39 : f32 to vector<128x128xf32>
    %49 = arith.maximumf %47, %48 : vector<128x128xf32>
    %c0_40 = arith.constant 0 : index
    %c0_41 = arith.constant 0 : index
    %50 = vector.load %arg15[%c0_40, %c0_41] : memref<128x128xf32, #tpu.memory_space<vmem>>, vector<128x128xf32>
    %cst_42 = arith.constant dense<0.000000e+00> : vector<128x128xf32>
    %51 = tpu.matmul %49, %50, %cst_42 {dimension_numbers = #tpu.dot_dimension_numbers<[1], [0], [0], [1], [0, 0, 1, 1], [], []>} : vector<128x128xf32>, vector<128x128xf32>, vector<128x128xf32> -> vector<128x128xf32>
    %c0_43 = arith.constant 0 : index
    %c0_44 = arith.constant 0 : index
    %52 = vector.load %arg16[%c0_43, %c0_44] : memref<1x128xf32, #tpu.memory_space<vmem>>, vector<1x128xf32>
    %53 = vector.broadcast %52 : vector<1x128xf32> to vector<128x128xf32>
    %54 = arith.addf %51, %53 : vector<128x128xf32>
    %55 = tpu.iota {dimensions = array<i32: 1>} : vector<1x128xi32>
    %c32_i32 = arith.constant 32 : i32
    %56 = vector.broadcast %c32_i32 : i32 to vector<1x128xi32>
    %57 = arith.cmpi eq, %55, %56 : vector<1x128xi32>
    %58 = arith.extui %57 : vector<1x128xi1> to vector<1x128xi32>
    %59 = arith.sitofp %58 : vector<1x128xi32> to vector<1x128xf32>
    %c0_45 = arith.constant 0 : index
    %c0_46 = arith.constant 0 : index
    %60 = vector.load %arg24[%c0_45, %c0_46] : memref<16x128xf32, #tpu.memory_space<vmem>>, vector<16x128xf32>
    %61 = vector.broadcast %59 : vector<1x128xf32> to vector<128x128xf32>
    %62 = arith.addf %54, %61 : vector<128x128xf32>
    %cst_47 = arith.constant dense<0.000000e+00> : vector<16x128xf32>
    %63 = tpu.matmul %11, %62, %cst_47 {dimension_numbers = #tpu.dot_dimension_numbers<[1], [0], [0], [1], [0, 0, 1, 1], [], []>} : vector<16x128xf32>, vector<128x128xf32>, vector<16x128xf32> -> vector<16x128xf32>
    %64 = arith.addf %60, %63 : vector<16x128xf32>
    %c0_48 = arith.constant 0 : index
    %c0_49 = arith.constant 0 : index
    %65 = vector.load %arg24[%c0_48, %c0_49] : memref<16x128xf32, #tpu.memory_space<vmem>>, vector<16x128xf32>
    tpu.vector_store %arg24[%c0_48, %c0_49], %64 {strides = array<i32>} : memref<16x128xf32, #tpu.memory_space<vmem>>, vector<16x128xf32>,
    %c0_i32_50 = arith.constant 0 : i32
    %66 = arith.cmpi eq, %arg0, %c0_i32_50 : i32
    %67 = arith.extui %66 : i1 to i32
    %c0_i32_51 = arith.constant 0 : i32
    %68 = arith.cmpi ne, %67, %c0_i32_51 : i32
    scf.if %68 {
      %c0_52 = arith.constant 0 : index
      %c0_53 = arith.constant 0 : index
      %69 = vector.load %arg24[%c0_52, %c0_53] : memref<16x128xf32, #tpu.memory_space<vmem>>, vector<16x128xf32>
      %70 = vector.extract_strided_slice %69 {offsets = [0, 32], sizes = [16, 1], strides = [1, 1]} : vector<16x128xf32> to vector<16x1xf32>
      %cst_54 = arith.constant 1.000000e+00 : f32
      %71 = vector.broadcast %cst_54 : f32 to vector<16x1xf32>
      %72 = arith.maximumf %70, %71 : vector<16x1xf32>
      %73 = vector.broadcast %72 : vector<16x1xf32> to vector<16x128xf32>
      %74 = arith.divf %69, %73 : vector<16x128xf32>
      %c0_55 = arith.constant 0 : index
      %c0_56 = arith.constant 0 : index
      %75 = vector.load %arg17[%c0_55, %c0_56] : memref<128x128xf32, #tpu.memory_space<vmem>>, vector<128x128xf32>
      %cst_57 = arith.constant dense<0.000000e+00> : vector<16x128xf32>
      %76 = tpu.matmul %3, %75, %cst_57 {dimension_numbers = #tpu.dot_dimension_numbers<[1], [0], [0], [1], [0, 0, 1, 1], [], []>} : vector<16x128xf32>, vector<128x128xf32>, vector<16x128xf32> -> vector<16x128xf32>
      %c0_58 = arith.constant 0 : index
      %c0_59 = arith.constant 0 : index
      %77 = vector.load %arg18[%c0_58, %c0_59] : memref<128x128xf32, #tpu.memory_space<vmem>>, vector<128x128xf32>
      %cst_60 = arith.constant dense<0.000000e+00> : vector<16x128xf32>
      %78 = tpu.matmul %74, %77, %cst_60 {dimension_numbers = #tpu.dot_dimension_numbers<[1], [0], [0], [1], [0, 0, 1, 1], [], []>} : vector<16x128xf32>, vector<128x128xf32>, vector<16x128xf32> -> vector<16x128xf32>
      %79 = arith.addf %76, %78 : vector<16x128xf32>
      %c0_61 = arith.constant 0 : index
      %c0_62 = arith.constant 0 : index
      %80 = vector.load %arg19[%c0_61, %c0_62] : memref<1x128xf32, #tpu.memory_space<vmem>>, vector<1x128xf32>
      %81 = vector.broadcast %80 : vector<1x128xf32> to vector<16x128xf32>
      %82 = arith.addf %79, %81 : vector<16x128xf32>
      %cst_63 = arith.constant 0.000000e+00 : f32
      %83 = vector.broadcast %cst_63 : f32 to vector<16x128xf32>
      %84 = arith.maximumf %82, %83 : vector<16x128xf32>
      %c0_64 = arith.constant 0 : index
      %c0_65 = arith.constant 0 : index
      %85 = vector.load %arg20[%c0_64, %c0_65] : memref<128x128xf32, #tpu.memory_space<vmem>>, vector<128x128xf32>
      %cst_66 = arith.constant dense<0.000000e+00> : vector<16x128xf32>
      %86 = tpu.matmul %84, %85, %cst_66 {dimension_numbers = #tpu.dot_dimension_numbers<[1], [0], [0], [1], [0, 0, 1, 1], [], []>} : vector<16x128xf32>, vector<128x128xf32>, vector<16x128xf32> -> vector<16x128xf32>
      %c0_67 = arith.constant 0 : index
      %c0_68 = arith.constant 0 : index
      %87 = vector.load %arg21[%c0_67, %c0_68] : memref<1x128xf32, #tpu.memory_space<vmem>>, vector<1x128xf32>
      %88 = vector.broadcast %87 : vector<1x128xf32> to vector<16x128xf32>
      %89 = arith.addf %86, %88 : vector<16x128xf32>
      %90 = arith.addf %89, %3 : vector<16x128xf32>
      %c0_69 = arith.constant 0 : index
      %c0_70 = arith.constant 0 : index
      %91 = vector.load %arg23[%c0_69, %c0_70] : memref<16x128xf32, #tpu.memory_space<vmem>>, vector<16x128xf32>
      tpu.vector_store %arg23[%c0_69, %c0_70], %90 {strides = array<i32>} : memref<16x128xf32, #tpu.memory_space<vmem>>, vector<16x128xf32>,
    } else {
    }
    return
  }
  func.func @transform_0(%arg0: i32) -> (i32, i32) {
    %c0_i32 = arith.constant 0 : i32
    %c0_i32_0 = arith.constant 0 : i32
    return %c0_i32, %arg0 : i32, i32
  }
  func.func @transform_1(%arg0: i32) -> (i32, i32) {
    %c0_i32 = arith.constant 0 : i32
    %c0_i32_0 = arith.constant 0 : i32
    return %c0_i32, %arg0 : i32, i32
  }
  func.func @transform_2(%arg0: i32) -> (i32, i32) {
    %c0_i32 = arith.constant 0 : i32
    %c0_i32_0 = arith.constant 0 : i32
    %c0_i32_1 = arith.constant 0 : i32
    return %c0_i32, %c0_i32_0 : i32, i32
  }
  func.func @transform_3(%arg0: i32) -> (i32, i32) {
    %c0_i32 = arith.constant 0 : i32
    %c0_i32_0 = arith.constant 0 : i32
    return %arg0, %c0_i32 : i32, i32
  }
  func.func @transform_4(%arg0: i32) -> (i32, i32) {
    %c0_i32 = arith.constant 0 : i32
    %c0_i32_0 = arith.constant 0 : i32
    %c0_i32_1 = arith.constant 0 : i32
    return %c0_i32, %c0_i32_0 : i32, i32
  }
  func.func @transform_5(%arg0: i32) -> (i32, i32) {
    %c0_i32 = arith.constant 0 : i32
    %c0_i32_0 = arith.constant 0 : i32
    %c0_i32_1 = arith.constant 0 : i32
    return %c0_i32, %c0_i32_0 : i32, i32
  }
  func.func @transform_6(%arg0: i32) -> (i32, i32) {
    %c0_i32 = arith.constant 0 : i32
    %c0_i32_0 = arith.constant 0 : i32
    %c0_i32_1 = arith.constant 0 : i32
    return %c0_i32, %c0_i32_0 : i32, i32
  }
  func.func @transform_7(%arg0: i32) -> (i32, i32) {
    %c0_i32 = arith.constant 0 : i32
    %c0_i32_0 = arith.constant 0 : i32
    %c0_i32_1 = arith.constant 0 : i32
    return %c0_i32, %c0_i32_0 : i32, i32
  }
  func.func @transform_8(%arg0: i32) -> (i32, i32) {
    %c0_i32 = arith.constant 0 : i32
    %c0_i32_0 = arith.constant 0 : i32
    %c0_i32_1 = arith.constant 0 : i32
    return %c0_i32, %c0_i32_0 : i32, i32
  }
  func.func @transform_9(%arg0: i32) -> (i32, i32) {
    %c0_i32 = arith.constant 0 : i32
    %c0_i32_0 = arith.constant 0 : i32
    %c0_i32_1 = arith.constant 0 : i32
    return %c0_i32, %c0_i32_0 : i32, i32
  }
  func.func @transform_10(%arg0: i32) -> (i32, i32) {
    %c0_i32 = arith.constant 0 : i32
    %c0_i32_0 = arith.constant 0 : i32
    %c0_i32_1 = arith.constant 0 : i32
    return %c0_i32, %c0_i32_0 : i32, i32
  }
  func.func @transform_11(%arg0: i32) -> (i32, i32) {
    %c0_i32 = arith.constant 0 : i32
    %c0_i32_0 = arith.constant 0 : i32
    %c0_i32_1 = arith.constant 0 : i32
    return %c0_i32, %c0_i32_0 : i32, i32
  }
  func.func @transform_12(%arg0: i32) -> (i32, i32) {
    %c0_i32 = arith.constant 0 : i32
    %c0_i32_0 = arith.constant 0 : i32
    %c0_i32_1 = arith.constant 0 : i32
    return %c0_i32, %c0_i32_0 : i32, i32
  }
  func.func @transform_13(%arg0: i32) -> (i32, i32) {
    %c0_i32 = arith.constant 0 : i32
    %c0_i32_0 = arith.constant 0 : i32
    %c0_i32_1 = arith.constant 0 : i32
    return %c0_i32, %c0_i32_0 : i32, i32
  }
  func.func @transform_14(%arg0: i32) -> (i32, i32) {
    %c0_i32 = arith.constant 0 : i32
    %c0_i32_0 = arith.constant 0 : i32
    %c0_i32_1 = arith.constant 0 : i32
    return %c0_i32, %c0_i32_0 : i32, i32
  }
  func.func @transform_15(%arg0: i32) -> (i32, i32) {
    %c0_i32 = arith.constant 0 : i32
    %c0_i32_0 = arith.constant 0 : i32
    %c0_i32_1 = arith.constant 0 : i32
    return %c0_i32, %c0_i32_0 : i32, i32
  }
  func.func @transform_16(%arg0: i32) -> (i32, i32) {
    %c0_i32 = arith.constant 0 : i32
    %c0_i32_0 = arith.constant 0 : i32
    %c0_i32_1 = arith.constant 0 : i32
    return %c0_i32, %c0_i32_0 : i32, i32
  }
  func.func @transform_17(%arg0: i32) -> (i32, i32) {
    %c0_i32 = arith.constant 0 : i32
    %c0_i32_0 = arith.constant 0 : i32
    %c0_i32_1 = arith.constant 0 : i32
    return %c0_i32, %c0_i32_0 : i32, i32
  }
  func.func @transform_18(%arg0: i32) -> (i32, i32) {
    %c0_i32 = arith.constant 0 : i32
    %c0_i32_0 = arith.constant 0 : i32
    %c0_i32_1 = arith.constant 0 : i32
    return %c0_i32, %c0_i32_0 : i32, i32
  }
  func.func @transform_19(%arg0: i32) -> (i32, i32) {
    %c0_i32 = arith.constant 0 : i32
    %c0_i32_0 = arith.constant 0 : i32
    %c0_i32_1 = arith.constant 0 : i32
    return %c0_i32, %c0_i32_0 : i32, i32
  }
  func.func @transform_20(%arg0: i32) -> (i32, i32) {
    %c0_i32 = arith.constant 0 : i32
    %c0_i32_0 = arith.constant 0 : i32
    %c0_i32_1 = arith.constant 0 : i32
    return %c0_i32, %c0_i32_0 : i32, i32
  }
  func.func @transform_21(%arg0: i32) -> (i32, i32) {
    %c0_i32 = arith.constant 0 : i32
    %c0_i32_0 = arith.constant 0 : i32
    return %arg0, %c0_i32 : i32, i32
  }
  func.func @transform_22(%arg0: i32) -> (i32, i32) {
    %c0_i32 = arith.constant 0 : i32
    %c0_i32_0 = arith.constant 0 : i32
    %c0_i32_1 = arith.constant 0 : i32
    return %c0_i32, %c0_i32_0 : i32, i32
  }
}

module attributes {stable_mosaic.version = 11 : i64} {
  func.func @kernel(%arg0: i32, %arg1: memref<1x128xi32, #tpu.memory_space<vmem>>, %arg2: memref<1x128xi32, #tpu.memory_space<vmem>>, %arg3: memref<16x128xf32, #tpu.memory_space<vmem>>, %arg4: memref<128x8xf32, #tpu.memory_space<vmem>>, %arg5: memref<128x128xf32, #tpu.memory_space<vmem>>, %arg6: memref<128x128xf32, #tpu.memory_space<vmem>>, %arg7: memref<8x128xf32, #tpu.memory_space<vmem>>, %arg8: memref<1x128xf32, #tpu.memory_space<vmem>>, %arg9: memref<8x128xf32, #tpu.memory_space<vmem>>, %arg10: memref<128x128xf32, #tpu.memory_space<vmem>>, %arg11: memref<1x128xf32, #tpu.memory_space<vmem>>, %arg12: memref<128x128xf32, #tpu.memory_space<vmem>>, %arg13: memref<128x128xf32, #tpu.memory_space<vmem>>, %arg14: memref<1x128xf32, #tpu.memory_space<vmem>>, %arg15: memref<128x128xf32, #tpu.memory_space<vmem>>, %arg16: memref<1x128xf32, #tpu.memory_space<vmem>>, %arg17: memref<128x128xf32, #tpu.memory_space<vmem>>, %arg18: memref<128x128xf32, #tpu.memory_space<vmem>>, %arg19: memref<1x128xf32, #tpu.memory_space<vmem>>, %arg20: memref<128x128xf32, #tpu.memory_space<vmem>>, %arg21: memref<1x128xf32, #tpu.memory_space<vmem>>, %arg22: memref<128x128xf32, #tpu.memory_space<vmem>>, %arg23: memref<16x128xf32, #tpu.memory_space<vmem>>, %arg24: memref<16x128xf32, #tpu.memory_space<vmem>>) attributes {dimension_semantics = [#tpu.dimension_semantics<arbitrary>], iteration_bounds = array<i64: 1>, scalar_prefetch = 0 : i64, scratch_operands = 1 : i64, tpu.core_type = #tpu.core_type<tc>, window_params = [{transform_indices = @transform_0, window_bounds = array<i64: 1, 128>}, {transform_indices = @transform_1, window_bounds = array<i64: 1, 128>}, {pipeline_mode = #tpu.pipeline_mode<synchronous>, transform_indices = @transform_2, window_bounds = array<i64: 16, 128>}, {transform_indices = @transform_3, window_bounds = array<i64: 128, 8>}, {pipeline_mode = #tpu.pipeline_mode<synchronous>, transform_indices = @transform_4, window_bounds = array<i64: 128, 128>}, {pipeline_mode = #tpu.pipeline_mode<synchronous>, transform_indices = @transform_5, window_bounds = array<i64: 128, 128>}, {pipeline_mode = #tpu.pipeline_mode<synchronous>, transform_indices = @transform_6, window_bounds = array<i64: 8, 128>}, {pipeline_mode = #tpu.pipeline_mode<synchronous>, transform_indices = @transform_7, window_bounds = array<i64: 1, 128>}, {pipeline_mode = #tpu.pipeline_mode<synchronous>, transform_indices = @transform_8, window_bounds = array<i64: 8, 128>}, {pipeline_mode = #tpu.pipeline_mode<synchronous>, transform_indices = @transform_9, window_bounds = array<i64: 128, 128>}, {pipeline_mode = #tpu.pipeline_mode<synchronous>, transform_indices = @transform_10, window_bounds = array<i64: 1, 128>}, {pipeline_mode = #tpu.pipeline_mode<synchronous>, transform_indices = @transform_11, window_bounds = array<i64: 128, 128>}, {pipeline_mode = #tpu.pipeline_mode<synchronous>, transform_indices = @transform_12, window_bounds = array<i64: 128, 128>}, {pipeline_mode = #tpu.pipeline_mode<synchronous>, transform_indices = @transform_13, window_bounds = array<i64: 1, 128>}, {pipeline_mode = #tpu.pipeline_mode<synchronous>, transform_indices = @transform_14, window_bounds = array<i64: 128, 128>}, {pipeline_mode = #tpu.pipeline_mode<synchronous>, transform_indices = @transform_15, window_bounds = array<i64: 1, 128>}, {pipeline_mode = #tpu.pipeline_mode<synchronous>, transform_indices = @transform_16, window_bounds = array<i64: 128, 128>}, {pipeline_mode = #tpu.pipeline_mode<synchronous>, transform_indices = @transform_17, window_bounds = array<i64: 128, 128>}, {pipeline_mode = #tpu.pipeline_mode<synchronous>, transform_indices = @transform_18, window_bounds = array<i64: 1, 128>}, {pipeline_mode = #tpu.pipeline_mode<synchronous>, transform_indices = @transform_19, window_bounds = array<i64: 128, 128>}, {pipeline_mode = #tpu.pipeline_mode<synchronous>, transform_indices = @transform_20, window_bounds = array<i64: 1, 128>}, {transform_indices = @transform_21, window_bounds = array<i64: 128, 128>}, {pipeline_mode = #tpu.pipeline_mode<synchronous>, transform_indices = @transform_22, window_bounds = array<i64: 16, 128>}]} {
    %c0_i32 = arith.constant 0 : i32
    %0 = arith.cmpi eq, %arg0, %c0_i32 : i32
    %1 = arith.extui %0 : i1 to i32
    %c0_i32_0 = arith.constant 0 : i32
    %2 = arith.cmpi ne, %1, %c0_i32_0 : i32
    scf.if %2 {
      %cst_52 = arith.constant 0.000000e+00 : f32
      %69 = vector.broadcast %cst_52 : f32 to vector<16x128xf32>
      %c0_53 = arith.constant 0 : index
      %c0_54 = arith.constant 0 : index
      %70 = vector.load %arg24[%c0_53, %c0_54] : memref<16x128xf32, #tpu.memory_space<vmem>>, vector<16x128xf32>
      tpu.vector_store %arg24[%c0_53, %c0_54], %69 {strides = array<i32>} : memref<16x128xf32, #tpu.memory_space<vmem>>, vector<16x128xf32>,
    } else {
    }
    %c0 = arith.constant 0 : index
    %c0_1 = arith.constant 0 : index
    %3 = vector.load %arg3[%c0, %c0_1] : memref<16x128xf32, #tpu.memory_space<vmem>>, vector<16x128xf32>
    %c0_2 = arith.constant 0 : index
    %c0_3 = arith.constant 0 : index
    %4 = vector.load %arg4[%c0_2, %c0_3] : memref<128x8xf32, #tpu.memory_space<vmem>>, vector<128x8xf32>
    %c0_4 = arith.constant 0 : index
    %c0_5 = arith.constant 0 : index
    %5 = vector.load %arg1[%c0_4, %c0_5] : memref<1x128xi32, #tpu.memory_space<vmem>>, vector<1x128xi32>
    %c0_6 = arith.constant 0 : index
    %c0_7 = arith.constant 0 : index
    %6 = vector.load %arg2[%c0_6, %c0_7] : memref<1x128xi32, #tpu.memory_space<vmem>>, vector<1x128xi32>
    %7 = tpu.iota {dimensions = array<i32: 0>} : vector<16x128xi32>
    %8 = vector.broadcast %5 : vector<1x128xi32> to vector<16x128xi32>
    %9 = arith.cmpi eq, %7, %8 : vector<16x128xi32>
    %10 = arith.extui %9 : vector<16x128xi1> to vector<16x128xi32>
    %11 = arith.sitofp %10 : vector<16x128xi32> to vector<16x128xf32>
    %12 = vector.broadcast %6 : vector<1x128xi32> to vector<16x128xi32>
    %13 = arith.cmpi eq, %7, %12 : vector<16x128xi32>
    %14 = arith.extui %13 : vector<16x128xi1> to vector<16x128xi32>
    %15 = arith.sitofp %14 : vector<16x128xi32> to vector<16x128xf32>
    %cst = arith.constant dense<0.000000e+00> : vector<128x128xf32>
    %16 = tpu.matmul %11, %3, %cst {dimension_numbers = #tpu.dot_dimension_numbers<[0], [0], [1], [1], [0, 1, 1, 1], [], []>} : vector<16x128xf32>, vector<16x128xf32>, vector<128x128xf32> -> vector<128x128xf32>
    %cst_8 = arith.constant dense<0.000000e+00> : vector<128x128xf32>
    %17 = tpu.matmul %15, %3, %cst_8 {dimension_numbers = #tpu.dot_dimension_numbers<[0], [0], [1], [1], [0, 1, 1, 1], [], []>} : vector<16x128xf32>, vector<16x128xf32>, vector<128x128xf32> -> vector<128x128xf32>
    %c0_9 = arith.constant 0 : index
    %c0_10 = arith.constant 0 : index
    %18 = vector.load %arg5[%c0_9, %c0_10] : memref<128x128xf32, #tpu.memory_space<vmem>>, vector<128x128xf32>
    %cst_11 = arith.constant dense<0.000000e+00> : vector<128x128xf32>
    %19 = tpu.matmul %16, %18, %cst_11 {dimension_numbers = #tpu.dot_dimension_numbers<[1], [0], [0], [1], [0, 0, 1, 1], [], []>} : vector<128x128xf32>, vector<128x128xf32>, vector<128x128xf32> -> vector<128x128xf32>
    %c0_12 = arith.constant 0 : index
    %c0_13 = arith.constant 0 : index
    %20 = vector.load %arg6[%c0_12, %c0_13] : memref<128x128xf32, #tpu.memory_space<vmem>>, vector<128x128xf32>
    %cst_14 = arith.constant dense<0.000000e+00> : vector<128x128xf32>
    %21 = tpu.matmul %17, %20, %cst_14 {dimension_numbers = #tpu.dot_dimension_numbers<[1], [0], [0], [1], [0, 0, 1, 1], [], []>} : vector<128x128xf32>, vector<128x128xf32>, vector<128x128xf32> -> vector<128x128xf32>
    %22 = arith.addf %19, %21 : vector<128x128xf32>
    %c0_15 = arith.constant 0 : index
    %c0_16 = arith.constant 0 : index
    %23 = vector.load %arg7[%c0_15, %c0_16] : memref<8x128xf32, #tpu.memory_space<vmem>>, vector<8x128xf32>
    %cst_17 = arith.constant dense<0.000000e+00> : vector<128x128xf32>
    %24 = tpu.matmul %4, %23, %cst_17 {dimension_numbers = #tpu.dot_dimension_numbers<[1], [0], [0], [1], [0, 0, 1, 1], [], []>} : vector<128x8xf32>, vector<8x128xf32>, vector<128x128xf32> -> vector<128x128xf32>
    %25 = arith.addf %22, %24 : vector<128x128xf32>
    %c0_18 = arith.constant 0 : index
    %c0_19 = arith.constant 0 : index
    %26 = vector.load %arg8[%c0_18, %c0_19] : memref<1x128xf32, #tpu.memory_space<vmem>>, vector<1x128xf32>
    %27 = vector.broadcast %26 : vector<1x128xf32> to vector<128x128xf32>
    %28 = arith.addf %25, %27 : vector<128x128xf32>
    %cst_20 = arith.constant 0.000000e+00 : f32
    %29 = vector.broadcast %cst_20 : f32 to vector<128x128xf32>
    %30 = arith.maximumf %28, %29 : vector<128x128xf32>
    %c0_21 = arith.constant 0 : index
    %c0_22 = arith.constant 0 : index
    %31 = vector.load %arg10[%c0_21, %c0_22] : memref<128x128xf32, #tpu.memory_space<vmem>>, vector<128x128xf32>
    %cst_23 = arith.constant dense<0.000000e+00> : vector<128x128xf32>
    %32 = tpu.matmul %30, %31, %cst_23 {dimension_numbers = #tpu.dot_dimension_numbers<[1], [0], [0], [1], [0, 0, 1, 1], [], []>} : vector<128x128xf32>, vector<128x128xf32>, vector<128x128xf32> -> vector<128x128xf32>
    %c0_24 = arith.constant 0 : index
    %c0_25 = arith.constant 0 : index
    %33 = vector.load %arg11[%c0_24, %c0_25] : memref<1x128xf32, #tpu.memory_space<vmem>>, vector<1x128xf32>
    %34 = vector.broadcast %33 : vector<1x128xf32> to vector<128x128xf32>
    %35 = arith.addf %32, %34 : vector<128x128xf32>
    %c0_26 = arith.constant 0 : index
    %c0_27 = arith.constant 0 : index
    %36 = vector.load %arg9[%c0_26, %c0_27] : memref<8x128xf32, #tpu.memory_space<vmem>>, vector<8x128xf32>
    %cst_28 = arith.constant dense<0.000000e+00> : vector<128x128xf32>
    %37 = tpu.matmul %4, %36, %cst_28 {dimension_numbers = #tpu.dot_dimension_numbers<[1], [0], [0], [1], [0, 0, 1, 1], [], []>} : vector<128x8xf32>, vector<8x128xf32>, vector<128x128xf32> -> vector<128x128xf32>
    %38 = arith.addf %35, %37 : vector<128x128xf32>
    %c0_29 = arith.constant 0 : index
    %c0_30 = arith.constant 0 : index
    %39 = vector.load %arg22[%c0_29, %c0_30] : memref<128x128xf32, #tpu.memory_space<vmem>>, vector<128x128xf32>
    tpu.vector_store %arg22[%c0_29, %c0_30], %38 {strides = array<i32>} : memref<128x128xf32, #tpu.memory_space<vmem>>, vector<128x128xf32>,
    %c0_31 = arith.constant 0 : index
    %c0_32 = arith.constant 0 : index
    %40 = vector.load %arg12[%c0_31, %c0_32] : memref<128x128xf32, #tpu.memory_space<vmem>>, vector<128x128xf32>
    %cst_33 = arith.constant dense<0.000000e+00> : vector<128x128xf32>
    %41 = tpu.matmul %17, %40, %cst_33 {dimension_numbers = #tpu.dot_dimension_numbers<[1], [0], [0], [1], [0, 0, 1, 1], [], []>} : vector<128x128xf32>, vector<128x128xf32>, vector<128x128xf32> -> vector<128x128xf32>
    %c0_34 = arith.constant 0 : index
    %c0_35 = arith.constant 0 : index
    %42 = vector.load %arg13[%c0_34, %c0_35] : memref<128x128xf32, #tpu.memory_space<vmem>>, vector<128x128xf32>
    %cst_36 = arith.constant dense<0.000000e+00> : vector<128x128xf32>
    %43 = tpu.matmul %38, %42, %cst_36 {dimension_numbers = #tpu.dot_dimension_numbers<[1], [0], [0], [1], [0, 0, 1, 1], [], []>} : vector<128x128xf32>, vector<128x128xf32>, vector<128x128xf32> -> vector<128x128xf32>
    %44 = arith.addf %41, %43 : vector<128x128xf32>
    %c0_37 = arith.constant 0 : index
    %c0_38 = arith.constant 0 : index
    %45 = vector.load %arg14[%c0_37, %c0_38] : memref<1x128xf32, #tpu.memory_space<vmem>>, vector<1x128xf32>
    %46 = vector.broadcast %45 : vector<1x128xf32> to vector<128x128xf32>
    %47 = arith.addf %44, %46 : vector<128x128xf32>
    %cst_39 = arith.constant 0.000000e+00 : f32
    %48 = vector.broadcast %cst_39 : f32 to vector<128x128xf32>
    %49 = arith.maximumf %47, %48 : vector<128x128xf32>
    %c0_40 = arith.constant 0 : index
    %c0_41 = arith.constant 0 : index
    %50 = vector.load %arg15[%c0_40, %c0_41] : memref<128x128xf32, #tpu.memory_space<vmem>>, vector<128x128xf32>
    %cst_42 = arith.constant dense<0.000000e+00> : vector<128x128xf32>
    %51 = tpu.matmul %49, %50, %cst_42 {dimension_numbers = #tpu.dot_dimension_numbers<[1], [0], [0], [1], [0, 0, 1, 1], [], []>} : vector<128x128xf32>, vector<128x128xf32>, vector<128x128xf32> -> vector<128x128xf32>
    %c0_43 = arith.constant 0 : index
    %c0_44 = arith.constant 0 : index
    %52 = vector.load %arg16[%c0_43, %c0_44] : memref<1x128xf32, #tpu.memory_space<vmem>>, vector<1x128xf32>
    %53 = vector.broadcast %52 : vector<1x128xf32> to vector<128x128xf32>
    %54 = arith.addf %51, %53 : vector<128x128xf32>
    %55 = tpu.iota {dimensions = array<i32: 1>} : vector<1x128xi32>
    %c32_i32 = arith.constant 32 : i32
    %56 = vector.broadcast %c32_i32 : i32 to vector<1x128xi32>
    %57 = arith.cmpi eq, %55, %56 : vector<1x128xi32>
    %58 = arith.extui %57 : vector<1x128xi1> to vector<1x128xi32>
    %59 = arith.sitofp %58 : vector<1x128xi32> to vector<1x128xf32>
    %c0_45 = arith.constant 0 : index
    %c0_46 = arith.constant 0 : index
    %60 = vector.load %arg24[%c0_45, %c0_46] : memref<16x128xf32, #tpu.memory_space<vmem>>, vector<16x128xf32>
    %61 = vector.broadcast %59 : vector<1x128xf32> to vector<128x128xf32>
    %62 = arith.addf %54, %61 : vector<128x128xf32>
    %cst_47 = arith.constant dense<0.000000e+00> : vector<16x128xf32>
    %63 = tpu.matmul %11, %62, %cst_47 {dimension_numbers = #tpu.dot_dimension_numbers<[1], [0], [0], [1], [0, 0, 1, 1], [], []>} : vector<16x128xf32>, vector<128x128xf32>, vector<16x128xf32> -> vector<16x128xf32>
    %64 = arith.addf %60, %63 : vector<16x128xf32>
    %c0_48 = arith.constant 0 : index
    %c0_49 = arith.constant 0 : index
    %65 = vector.load %arg24[%c0_48, %c0_49] : memref<16x128xf32, #tpu.memory_space<vmem>>, vector<16x128xf32>
    tpu.vector_store %arg24[%c0_48, %c0_49], %64 {strides = array<i32>} : memref<16x128xf32, #tpu.memory_space<vmem>>, vector<16x128xf32>,
    %c0_i32_50 = arith.constant 0 : i32
    %66 = arith.cmpi eq, %arg0, %c0_i32_50 : i32
    %67 = arith.extui %66 : i1 to i32
    %c0_i32_51 = arith.constant 0 : i32
    %68 = arith.cmpi ne, %67, %c0_i32_51 : i32
    scf.if %68 {
      %c0_52 = arith.constant 0 : index
      %c0_53 = arith.constant 0 : index
      %69 = vector.load %arg24[%c0_52, %c0_53] : memref<16x128xf32, #tpu.memory_space<vmem>>, vector<16x128xf32>
      %70 = vector.extract_strided_slice %69 {offsets = [0, 32], sizes = [16, 1], strides = [1, 1]} : vector<16x128xf32> to vector<16x1xf32>
      %cst_54 = arith.constant 1.000000e+00 : f32
      %71 = vector.broadcast %cst_54 : f32 to vector<16x1xf32>
      %72 = arith.maximumf %70, %71 : vector<16x1xf32>
      %73 = vector.broadcast %72 : vector<16x1xf32> to vector<16x128xf32>
      %74 = arith.divf %69, %73 : vector<16x128xf32>
      %c0_55 = arith.constant 0 : index
      %c0_56 = arith.constant 0 : index
      %75 = vector.load %arg17[%c0_55, %c0_56] : memref<128x128xf32, #tpu.memory_space<vmem>>, vector<128x128xf32>
      %cst_57 = arith.constant dense<0.000000e+00> : vector<16x128xf32>
      %76 = tpu.matmul %3, %75, %cst_57 {dimension_numbers = #tpu.dot_dimension_numbers<[1], [0], [0], [1], [0, 0, 1, 1], [], []>} : vector<16x128xf32>, vector<128x128xf32>, vector<16x128xf32> -> vector<16x128xf32>
      %c0_58 = arith.constant 0 : index
      %c0_59 = arith.constant 0 : index
      %77 = vector.load %arg18[%c0_58, %c0_59] : memref<128x128xf32, #tpu.memory_space<vmem>>, vector<128x128xf32>
      %cst_60 = arith.constant dense<0.000000e+00> : vector<16x128xf32>
      %78 = tpu.matmul %74, %77, %cst_60 {dimension_numbers = #tpu.dot_dimension_numbers<[1], [0], [0], [1], [0, 0, 1, 1], [], []>} : vector<16x128xf32>, vector<128x128xf32>, vector<16x128xf32> -> vector<16x128xf32>
      %79 = arith.addf %76, %78 : vector<16x128xf32>
      %c0_61 = arith.constant 0 : index
      %c0_62 = arith.constant 0 : index
      %80 = vector.load %arg19[%c0_61, %c0_62] : memref<1x128xf32, #tpu.memory_space<vmem>>, vector<1x128xf32>
      %81 = vector.broadcast %80 : vector<1x128xf32> to vector<16x128xf32>
      %82 = arith.addf %79, %81 : vector<16x128xf32>
      %cst_63 = arith.constant 0.000000e+00 : f32
      %83 = vector.broadcast %cst_63 : f32 to vector<16x128xf32>
      %84 = arith.maximumf %82, %83 : vector<16x128xf32>
      %c0_64 = arith.constant 0 : index
      %c0_65 = arith.constant 0 : index
      %85 = vector.load %arg20[%c0_64, %c0_65] : memref<128x128xf32, #tpu.memory_space<vmem>>, vector<128x128xf32>
      %cst_66 = arith.constant dense<0.000000e+00> : vector<16x128xf32>
      %86 = tpu.matmul %84, %85, %cst_66 {dimension_numbers = #tpu.dot_dimension_numbers<[1], [0], [0], [1], [0, 0, 1, 1], [], []>} : vector<16x128xf32>, vector<128x128xf32>, vector<16x128xf32> -> vector<16x128xf32>
      %c0_67 = arith.constant 0 : index
      %c0_68 = arith.constant 0 : index
      %87 = vector.load %arg21[%c0_67, %c0_68] : memref<1x128xf32, #tpu.memory_space<vmem>>, vector<1x128xf32>
      %88 = vector.broadcast %87 : vector<1x128xf32> to vector<16x128xf32>
      %89 = arith.addf %86, %88 : vector<16x128xf32>
      %90 = arith.addf %89, %3 : vector<16x128xf32>
      %c0_69 = arith.constant 0 : index
      %c0_70 = arith.constant 0 : index
      %91 = vector.load %arg23[%c0_69, %c0_70] : memref<16x128xf32, #tpu.memory_space<vmem>>, vector<16x128xf32>
      tpu.vector_store %arg23[%c0_69, %c0_70], %90 {strides = array<i32>} : memref<16x128xf32, #tpu.memory_space<vmem>>, vector<16x128xf32>,
    } else {
    }
    return
  }
  func.func @transform_0(%arg0: i32) -> (i32, i32) {
    %c0_i32 = arith.constant 0 : i32
    %c0_i32_0 = arith.constant 0 : i32
    return %c0_i32, %arg0 : i32, i32
  }
  func.func @transform_1(%arg0: i32) -> (i32, i32) {
    %c0_i32 = arith.constant 0 : i32
    %c0_i32_0 = arith.constant 0 : i32
    return %c0_i32, %arg0 : i32, i32
  }
  func.func @transform_2(%arg0: i32) -> (i32, i32) {
    %c0_i32 = arith.constant 0 : i32
    %c0_i32_0 = arith.constant 0 : i32
    %c0_i32_1 = arith.constant 0 : i32
    return %c0_i32, %c0_i32_0 : i32, i32
  }
  func.func @transform_3(%arg0: i32) -> (i32, i32) {
    %c0_i32 = arith.constant 0 : i32
    %c0_i32_0 = arith.constant 0 : i32
    return %arg0, %c0_i32 : i32, i32
  }
  func.func @transform_4(%arg0: i32) -> (i32, i32) {
    %c0_i32 = arith.constant 0 : i32
    %c0_i32_0 = arith.constant 0 : i32
    %c0_i32_1 = arith.constant 0 : i32
    return %c0_i32, %c0_i32_0 : i32, i32
  }
  func.func @transform_5(%arg0: i32) -> (i32, i32) {
    %c0_i32 = arith.constant 0 : i32
    %c0_i32_0 = arith.constant 0 : i32
    %c0_i32_1 = arith.constant 0 : i32
    return %c0_i32, %c0_i32_0 : i32, i32
  }
  func.func @transform_6(%arg0: i32) -> (i32, i32) {
    %c0_i32 = arith.constant 0 : i32
    %c0_i32_0 = arith.constant 0 : i32
    %c0_i32_1 = arith.constant 0 : i32
    return %c0_i32, %c0_i32_0 : i32, i32
  }
  func.func @transform_7(%arg0: i32) -> (i32, i32) {
    %c0_i32 = arith.constant 0 : i32
    %c0_i32_0 = arith.constant 0 : i32
    %c0_i32_1 = arith.constant 0 : i32
    return %c0_i32, %c0_i32_0 : i32, i32
  }
  func.func @transform_8(%arg0: i32) -> (i32, i32) {
    %c0_i32 = arith.constant 0 : i32
    %c0_i32_0 = arith.constant 0 : i32
    %c0_i32_1 = arith.constant 0 : i32
    return %c0_i32, %c0_i32_0 : i32, i32
  }
  func.func @transform_9(%arg0: i32) -> (i32, i32) {
    %c0_i32 = arith.constant 0 : i32
    %c0_i32_0 = arith.constant 0 : i32
    %c0_i32_1 = arith.constant 0 : i32
    return %c0_i32, %c0_i32_0 : i32, i32
  }
  func.func @transform_10(%arg0: i32) -> (i32, i32) {
    %c0_i32 = arith.constant 0 : i32
    %c0_i32_0 = arith.constant 0 : i32
    %c0_i32_1 = arith.constant 0 : i32
    return %c0_i32, %c0_i32_0 : i32, i32
  }
  func.func @transform_11(%arg0: i32) -> (i32, i32) {
    %c0_i32 = arith.constant 0 : i32
    %c0_i32_0 = arith.constant 0 : i32
    %c0_i32_1 = arith.constant 0 : i32
    return %c0_i32, %c0_i32_0 : i32, i32
  }
  func.func @transform_12(%arg0: i32) -> (i32, i32) {
    %c0_i32 = arith.constant 0 : i32
    %c0_i32_0 = arith.constant 0 : i32
    %c0_i32_1 = arith.constant 0 : i32
    return %c0_i32, %c0_i32_0 : i32, i32
  }
  func.func @transform_13(%arg0: i32) -> (i32, i32) {
    %c0_i32 = arith.constant 0 : i32
    %c0_i32_0 = arith.constant 0 : i32
    %c0_i32_1 = arith.constant 0 : i32
    return %c0_i32, %c0_i32_0 : i32, i32
  }
  func.func @transform_14(%arg0: i32) -> (i32, i32) {
    %c0_i32 = arith.constant 0 : i32
    %c0_i32_0 = arith.constant 0 : i32
    %c0_i32_1 = arith.constant 0 : i32
    return %c0_i32, %c0_i32_0 : i32, i32
  }
  func.func @transform_15(%arg0: i32) -> (i32, i32) {
    %c0_i32 = arith.constant 0 : i32
    %c0_i32_0 = arith.constant 0 : i32
    %c0_i32_1 = arith.constant 0 : i32
    return %c0_i32, %c0_i32_0 : i32, i32
  }
  func.func @transform_16(%arg0: i32) -> (i32, i32) {
    %c0_i32 = arith.constant 0 : i32
    %c0_i32_0 = arith.constant 0 : i32
    %c0_i32_1 = arith.constant 0 : i32
    return %c0_i32, %c0_i32_0 : i32, i32
  }
  func.func @transform_17(%arg0: i32) -> (i32, i32) {
    %c0_i32 = arith.constant 0 : i32
    %c0_i32_0 = arith.constant 0 : i32
    %c0_i32_1 = arith.constant 0 : i32
    return %c0_i32, %c0_i32_0 : i32, i32
  }
  func.func @transform_18(%arg0: i32) -> (i32, i32) {
    %c0_i32 = arith.constant 0 : i32
    %c0_i32_0 = arith.constant 0 : i32
    %c0_i32_1 = arith.constant 0 : i32
    return %c0_i32, %c0_i32_0 : i32, i32
  }
  func.func @transform_19(%arg0: i32) -> (i32, i32) {
    %c0_i32 = arith.constant 0 : i32
    %c0_i32_0 = arith.constant 0 : i32
    %c0_i32_1 = arith.constant 0 : i32
    return %c0_i32, %c0_i32_0 : i32, i32
  }
  func.func @transform_20(%arg0: i32) -> (i32, i32) {
    %c0_i32 = arith.constant 0 : i32
    %c0_i32_0 = arith.constant 0 : i32
    %c0_i32_1 = arith.constant 0 : i32
    return %c0_i32, %c0_i32_0 : i32, i32
  }
  func.func @transform_21(%arg0: i32) -> (i32, i32) {
    %c0_i32 = arith.constant 0 : i32
    %c0_i32_0 = arith.constant 0 : i32
    return %arg0, %c0_i32 : i32, i32
  }
  func.func @transform_22(%arg0: i32) -> (i32, i32) {
    %c0_i32 = arith.constant 0 : i32
    %c0_i32_0 = arith.constant 0 : i32
    %c0_i32_1 = arith.constant 0 : i32
    return %c0_i32, %c0_i32_0 : i32, i32
  }
}

</mosaic_0001>

<llo_original>
// kernel: tpu_custom_call.1
$region0: #{tpu_custom_call.1}
  #allocation0 [shape = 'u32[]', space=smem, size = 0x4, offset = 0x4, fixed_abs, tag = 'smem constant byte address 0x4 - core index']
  #allocation1 [shape = 'u32[144,128]{1,0:T(1,128)}', space=vmem, size = 0x12000, scoped, tag = 'internal scratch']
  #allocation2 [shape = 'f32[16,128]{1,0:T(8,128)}', space=vmem, size = 0x2000, scoped, tag = 'scratch operand']
  %s0 = inlined_call_operand.vmem [shape: s32[1,128], index: 0, kind: input, shape index: {}]
  %s1 = inlined_call_operand.hbm [shape: s32[1,128], index: 1, kind: input, shape index: {}]
  %s2 = inlined_call_operand.hbm [shape: f32[16,128], index: 2, kind: input, shape index: {}]
  %s3 = inlined_call_operand.vmem [shape: f32[128,8], index: 3, kind: input, shape index: {}]
  %s4 = inlined_call_operand.vmem [shape: f32[128,128], index: 4, kind: input, shape index: {}]
  %s5 = inlined_call_operand.hbm [shape: f32[128,128], index: 5, kind: input, shape index: {}]
  %s6 = inlined_call_operand.vmem [shape: f32[8,128], index: 6, kind: input, shape index: {}]
  %s7 = inlined_call_operand.vmem [shape: f32[1,128], index: 7, kind: input, shape index: {}]
  %s8 = inlined_call_operand.vmem [shape: f32[8,128], index: 8, kind: input, shape index: {}]
  %s9 = inlined_call_operand.hbm [shape: f32[128,128], index: 9, kind: input, shape index: {}]
  %s10 = inlined_call_operand.vmem [shape: f32[1,128], index: 10, kind: input, shape index: {}]
  %s11 = inlined_call_operand.hbm [shape: f32[128,128], index: 11, kind: input, shape index: {}]
  %s12 = inlined_call_operand.hbm [shape: f32[128,128], index: 12, kind: input, shape index: {}]
  %s13 = inlined_call_operand.vmem [shape: f32[1,128], index: 13, kind: input, shape index: {}]
  %s14 = inlined_call_operand.hbm [shape: f32[128,128], index: 14, kind: input, shape index: {}]
  %s15 = inlined_call_operand.vmem [shape: f32[1,128], index: 15, kind: input, shape index: {}]
  %s16 = inlined_call_operand.hbm [shape: f32[128,128], index: 16, kind: input, shape index: {}]
  %s17 = inlined_call_operand.hbm [shape: f32[128,128], index: 17, kind: input, shape index: {}]
  %s18 = inlined_call_operand.vmem [shape: f32[1,128], index: 18, kind: input, shape index: {}]
  %s19 = inlined_call_operand.hbm [shape: f32[128,128], index: 19, kind: input, shape index: {}]
  %s20 = inlined_call_operand.vmem [shape: f32[1,128], index: 20, kind: input, shape index: {}]
  %s21 = inlined_call_operand.hbm [shape: f32[128,128], index: 21, kind: output, shape index: {0}]
  %s22 = inlined_call_operand.hbm [shape: f32[16,128], index: 22, kind: output, shape index: {1}]
  %23 = xla_tuple %s21, %s22
  %s24 = sld [smem:[#allocation0]]
  $region150: #{tpu_custom_call.1} parent=0
    _
  %s26 = ssub.s32 1, %s24
  %s27 = scalar_select 0, %s26, %s24
  $region1: #{tpu_custom_call.1} parent=0
    #allocation3 [shape = 'u8[512]{0}', space=vmem, size = 0x400, scoped, tag = 'input window, operand 1, single buffered']
    #allocation4 [shape = 's32[1]{0}', space=sflag, size = 0x4, scoped, tag = 'scoped memory for tpu_custom_call.1']
    #allocation5 [shape = 's32[1]{0}', space=sflag, size = 0x4, scoped, tag = 'scoped memory for tpu_custom_call.1']
    #allocation6 [shape = 'u8[8192]{0}', space=vmem, size = 0x2000, scoped, tag = 'input window, operand 2, single buffered']
    #allocation7 [shape = 's32[1]{0}', space=sflag, size = 0x4, scoped, tag = 'scoped memory for tpu_custom_call.1']
    #allocation8 [shape = 'u8[65536]{0}', space=vmem, size = 0x10000, scoped, tag = 'input window, operand 5, single buffered']
    #allocation9 [shape = 'u8[65536]{0}', space=vmem, size = 0x10000, scoped, tag = 'input window, operand 9, single buffered']
    #allocation10 [shape = 's32[1]{0}', space=sflag, size = 0x4, scoped, tag = 'scoped memory for tpu_custom_call.1']
    #allocation11 [shape = 'u8[65536]{0}', space=vmem, size = 0x10000, scoped, tag = 'input window, operand 11, single buffered']
    #allocation12 [shape = 'u8[65536]{0}', space=vmem, size = 0x10000, scoped, tag = 'input window, operand 12, single buffered']
    #allocation13 [shape = 's32[1]{0}', space=sflag, size = 0x4, scoped, tag = 'scoped memory for tpu_custom_call.1']
    #allocation14 [shape = 'u8[65536]{0}', space=vmem, size = 0x10000, scoped, tag = 'input window, operand 14, single buffered']
    #allocation15 [shape = 'u8[65536]{0}', space=vmem, size = 0x10000, scoped, tag = 'input window, operand 16, single buffered']
    #allocation16 [shape = 's32[1]{0}', space=sflag, size = 0x4, scoped, tag = 'scoped memory for tpu_custom_call.1']
    #allocation17 [shape = 'u8[65536]{0}', space=vmem, size = 0x10000, scoped, tag = 'input window, operand 17, single buffered']
    #allocation18 [shape = 'u8[65536]{0}', space=vmem, size = 0x10000, scoped, tag = 'input window, operand 19, single buffered']
    #allocation19 [shape = 's32[1]{0}', space=sflag, size = 0x4, scoped, tag = 'scoped memory for tpu_custom_call.1']
    #allocation20 [shape = 'u8[65536]{0}', space=vmem, size = 0x10000, scoped, tag = 'output window, operand 0, single buffered']
    #allocation21 [shape = 'u8[8192]{0}', space=vmem, size = 0x2000, scoped, tag = 'output window, operand 1, single buffered']
    #allocation22 [shape = 's32[1]{0}', space=sflag, size = 0x4, scoped, tag = 'scoped memory for tpu_custom_call.1']
    %28 = vsyncpa [#allocation4], 0
    %29 = vsyncpa [#allocation7], 0
    %30 = vsyncpa [#allocation10], 0
    %31 = vsyncpa [#allocation13], 0
    %32 = vsyncpa [#allocation16], 0
    %33 = vsyncpa [#allocation19], 0
    %34 = vsyncpa [#allocation5], 0
    %35 = vsyncpa [#allocation22], 0
    // Predicated region
    $region2: #{tpu_custom_call.1} parent=1 // pred_check
      _
    $region3: #{tpu_custom_call.1} parent=1 // pred_check_branch
      %37 = sbr.rel (0) target = $region5
    $region4: #{tpu_custom_call.1} parent=1 // pred_region
      _
    $region5: #{tpu_custom_call.1} parent=1 // pred_fallthru
      _
    // Predicated region
    $region6: #{tpu_custom_call.1} parent=1 // pred_check
      _
    $region7: #{tpu_custom_call.1} parent=1 // pred_check_branch
      %39 = sbr.rel (0) target = $region9
    $region8: #{tpu_custom_call.1} parent=1 // pred_region
      %s41 = ssub.s32 16, 16
      %42 = vsyncadd [#allocation4], %s41
      %s44 = sshll.u32 [#allocation3], 4
      %s45 = int_to_ptr.vmem [resolvable:$true] %s44
      %47 = dma.hbm_to_vmem [thread:$0]  %s1, 16, %s45, [#allocation4]
    $region9: #{tpu_custom_call.1} parent=1 // pred_fallthru
      _
    // Predicated region
    $region10: #{tpu_custom_call.1} parent=1 // pred_check
      _
    $region11: #{tpu_custom_call.1} parent=1 // pred_check_branch
      %49 = sbr.rel (0) target = $region13
    $region12: #{tpu_custom_call.1} parent=1 // pred_region
      %s51 = ssub.s32 256, 256
      %52 = vsyncadd [#allocation7], %s51
      %s53 = sshll.u32 [#allocation6], 4
      %s54 = int_to_ptr.vmem [resolvable:$true] %s53
      %59 = dma.hbm_to_vmem [thread:$0]  %s2, 256, %s54, [#allocation7], 128, 128, 8
    $region13: #{tpu_custom_call.1} parent=1 // pred_fallthru
      _
    // Predicated region
    $region14: #{tpu_custom_call.1} parent=1 // pred_check
      _
    $region15: #{tpu_custom_call.1} parent=1 // pred_check_branch
      %61 = sbr.rel (0) target = $region17
    $region16: #{tpu_custom_call.1} parent=1 // pred_region
      _
    $region17: #{tpu_custom_call.1} parent=1 // pred_fallthru
      _
    // Predicated region
    $region18: #{tpu_custom_call.1} parent=1 // pred_check
      _
    $region19: #{tpu_custom_call.1} parent=1 // pred_check_branch
      %63 = sbr.rel (0) target = $region21
    $region20: #{tpu_custom_call.1} parent=1 // pred_region
      _
    $region21: #{tpu_custom_call.1} parent=1 // pred_fallthru
      _
    // Predicated region
    $region22: #{tpu_custom_call.1} parent=1 // pred_check
      _
    $region23: #{tpu_custom_call.1} parent=1 // pred_check_branch
      %65 = sbr.rel (0) target = $region25
    $region24: #{tpu_custom_call.1} parent=1 // pred_region
      %s67 = ssub.s32 2048, 2048
      %68 = vsyncadd [#allocation7], %s67
      %s69 = sshll.u32 [#allocation8], 4
      %s70 = int_to_ptr.vmem [resolvable:$true] %s69
      %75 = dma.hbm_to_vmem [thread:$0]  %s5, 2048, %s70, [#allocation7], 128, 128, 8
    $region25: #{tpu_custom_call.1} parent=1 // pred_fallthru
      _
    // Predicated region
    $region26: #{tpu_custom_call.1} parent=1 // pred_check
      _
    $region27: #{tpu_custom_call.1} parent=1 // pred_check_branch
      %77 = sbr.rel (0) target = $region29
    $region28: #{tpu_custom_call.1} parent=1 // pred_region
      _
    $region29: #{tpu_custom_call.1} parent=1 // pred_fallthru
      _
    // Predicated region
    $region30: #{tpu_custom_call.1} parent=1 // pred_check
      _
    $region31: #{tpu_custom_call.1} parent=1 // pred_check_branch
      %79 = sbr.rel (0) target = $region33
    $region32: #{tpu_custom_call.1} parent=1 // pred_region
      _
    $region33: #{tpu_custom_call.1} parent=1 // pred_fallthru
      _
    // Predicated region
    $region34: #{tpu_custom_call.1} parent=1 // pred_check
      _
    $region35: #{tpu_custom_call.1} parent=1 // pred_check_branch
      %81 = sbr.rel (0) target = $region37
    $region36: #{tpu_custom_call.1} parent=1 // pred_region
      _
    $region37: #{tpu_custom_call.1} parent=1 // pred_fallthru
      _
    // Predicated region
    $region38: #{tpu_custom_call.1} parent=1 // pred_check
      _
    $region39: #{tpu_custom_call.1} parent=1 // pred_check_branch
      %83 = sbr.rel (0) target = $region41
    $region40: #{tpu_custom_call.1} parent=1 // pred_region
      %s85 = ssub.s32 2048, 2048
      %86 = vsyncadd [#allocation10], %s85
      %s87 = sshll.u32 [#allocation9], 4
      %s88 = int_to_ptr.vmem [resolvable:$true] %s87
      %93 = dma.hbm_to_vmem [thread:$0]  %s9, 2048, %s88, [#allocation10], 128, 128, 8
    $region41: #{tpu_custom_call.1} parent=1 // pred_fallthru
      _
    // Predicated region
    $region42: #{tpu_custom_call.1} parent=1 // pred_check
      _
    $region43: #{tpu_custom_call.1} parent=1 // pred_check_branch
      %95 = sbr.rel (0) target = $region45
    $region44: #{tpu_custom_call.1} parent=1 // pred_region
      _
    $region45: #{tpu_custom_call.1} parent=1 // pred_fallthru
      _
    // Predicated region
    $region46: #{tpu_custom_call.1} parent=1 // pred_check
      _
    $region47: #{tpu_custom_call.1} parent=1 // pred_check_branch
      %97 = sbr.rel (0) target = $region49
    $region48: #{tpu_custom_call.1} parent=1 // pred_region
      %s99 = ssub.s32 2048, 2048
      %100 = vsyncadd [#allocation10], %s99
      %s101 = sshll.u32 [#allocation11], 4
      %s102 = int_to_ptr.vmem [resolvable:$true] %s101
      %107 = dma.hbm_to_vmem [thread:$0]  %s11, 2048, %s102, [#allocation10], 128, 128, 8
    $region49: #{tpu_custom_call.1} parent=1 // pred_fallthru
      _
    // Predicated region
    $region50: #{tpu_custom_call.1} parent=1 // pred_check
      _
    $region51: #{tpu_custom_call.1} parent=1 // pred_check_branch
      %109 = sbr.rel (0) target = $region53
    $region52: #{tpu_custom_call.1} parent=1 // pred_region
      %s111 = ssub.s32 2048, 2048
      %112 = vsyncadd [#allocation13], %s111
      %s113 = sshll.u32 [#allocation12], 4
      %s114 = int_to_ptr.vmem [resolvable:$true] %s113
      %119 = dma.hbm_to_vmem [thread:$0]  %s12, 2048, %s114, [#allocation13], 128, 128, 8
    $region53: #{tpu_custom_call.1} parent=1 // pred_fallthru
      _
    // Predicated region
    $region54: #{tpu_custom_call.1} parent=1 // pred_check
      _
    $region55: #{tpu_custom_call.1} parent=1 // pred_check_branch
      %121 = sbr.rel (0) target = $region57
    $region56: #{tpu_custom_call.1} parent=1 // pred_region
      _
    $region57: #{tpu_custom_call.1} parent=1 // pred_fallthru
      _
    // Predicated region
    $region58: #{tpu_custom_call.1} parent=1 // pred_check
      _
    $region59: #{tpu_custom_call.1} parent=1 // pred_check_branch
      %123 = sbr.rel (0) target = $region61
    $region60: #{tpu_custom_call.1} parent=1 // pred_region
      %s125 = ssub.s32 2048, 2048
      %126 = vsyncadd [#allocation13], %s125
      %s127 = sshll.u32 [#allocation14], 4
      %s128 = int_to_ptr.vmem [resolvable:$true] %s127
      %133 = dma.hbm_to_vmem [thread:$0]  %s14, 2048, %s128, [#allocation13], 128, 128, 8
    $region61: #{tpu_custom_call.1} parent=1 // pred_fallthru
      _
    // Predicated region
    $region62: #{tpu_custom_call.1} parent=1 // pred_check
      _
    $region63: #{tpu_custom_call.1} parent=1 // pred_check_branch
      %135 = sbr.rel (0) target = $region65
    $region64: #{tpu_custom_call.1} parent=1 // pred_region
      _
    $region65: #{tpu_custom_call.1} parent=1 // pred_fallthru
      _
    // Predicated region
    $region66: #{tpu_custom_call.1} parent=1 // pred_check
      _
    $region67: #{tpu_custom_call.1} parent=1 // pred_check_branch
      %137 = sbr.rel (0) target = $region69
    $region68: #{tpu_custom_call.1} parent=1 // pred_region
      %s139 = ssub.s32 2048, 2048
      %140 = vsyncadd [#allocation16], %s139
      %s141 = sshll.u32 [#allocation15], 4
      %s142 = int_to_ptr.vmem [resolvable:$true] %s141
      %147 = dma.hbm_to_vmem [thread:$0]  %s16, 2048, %s142, [#allocation16], 128, 128, 8
    $region69: #{tpu_custom_call.1} parent=1 // pred_fallthru
      _
    // Predicated region
    $region70: #{tpu_custom_call.1} parent=1 // pred_check
      _
    $region71: #{tpu_custom_call.1} parent=1 // pred_check_branch
      %149 = sbr.rel (0) target = $region73
    $region72: #{tpu_custom_call.1} parent=1 // pred_region
      %s151 = ssub.s32 2048, 2048
      %152 = vsyncadd [#allocation16], %s151
      %s153 = sshll.u32 [#allocation17], 4
      %s154 = int_to_ptr.vmem [resolvable:$true] %s153
      %159 = dma.hbm_to_vmem [thread:$0]  %s17, 2048, %s154, [#allocation16], 128, 128, 8
    $region73: #{tpu_custom_call.1} parent=1 // pred_fallthru
      _
    // Predicated region
    $region74: #{tpu_custom_call.1} parent=1 // pred_check
      _
    $region75: #{tpu_custom_call.1} parent=1 // pred_check_branch
      %161 = sbr.rel (0) target = $region77
    $region76: #{tpu_custom_call.1} parent=1 // pred_region
      _
    $region77: #{tpu_custom_call.1} parent=1 // pred_fallthru
      _
    // Predicated region
    $region78: #{tpu_custom_call.1} parent=1 // pred_check
      _
    $region79: #{tpu_custom_call.1} parent=1 // pred_check_branch
      %163 = sbr.rel (0) target = $region81
    $region80: #{tpu_custom_call.1} parent=1 // pred_region
      %s165 = ssub.s32 2048, 2048
      %166 = vsyncadd [#allocation19], %s165
      %s167 = sshll.u32 [#allocation18], 4
      %s168 = int_to_ptr.vmem [resolvable:$true] %s167
      %173 = dma.hbm_to_vmem [thread:$0]  %s19, 2048, %s168, [#allocation19], 128, 128, 8
    $region81: #{tpu_custom_call.1} parent=1 // pred_fallthru
      _
    // Predicated region
    $region82: #{tpu_custom_call.1} parent=1 // pred_check
      _
    $region83: #{tpu_custom_call.1} parent=1 // pred_check_branch
      %175 = sbr.rel (0) target = $region85
    $region84: #{tpu_custom_call.1} parent=1 // pred_region
      _
    $region85: #{tpu_custom_call.1} parent=1 // pred_fallthru
      _
    // Predicated region
    $region86: #{tpu_custom_call.1} parent=1 // pred_check
      _
    $region87: #{tpu_custom_call.1} parent=1 // pred_check_branch
      %177 = sbr.rel (0) target = $region89
    $region88: #{tpu_custom_call.1} parent=1 // pred_region
      %178 = dma.done [#allocation4], 16
    $region89: #{tpu_custom_call.1} parent=1 // pred_fallthru
      _
    // Predicated region
    $region90: #{tpu_custom_call.1} parent=1 // pred_check
      _
    $region91: #{tpu_custom_call.1} parent=1 // pred_check_branch
      %180 = sbr.rel (0) target = $region93
    $region92: #{tpu_custom_call.1} parent=1 // pred_region
      %181 = dma.done [#allocation7], 256
    $region93: #{tpu_custom_call.1} parent=1 // pred_fallthru
      _
    // Predicated region
    $region94: #{tpu_custom_call.1} parent=1 // pred_check
      _
    $region95: #{tpu_custom_call.1} parent=1 // pred_check_branch
      %183 = sbr.rel (0) target = $region97
    $region96: #{tpu_custom_call.1} parent=1 // pred_region
      %184 = dma.done [#allocation7], 2048
    $region97: #{tpu_custom_call.1} parent=1 // pred_fallthru
      _
    // Predicated region
    $region98: #{tpu_custom_call.1} parent=1 // pred_check
      _
    $region99: #{tpu_custom_call.1} parent=1 // pred_check_branch
      %186 = sbr.rel (0) target = $region101
    $region100: #{tpu_custom_call.1} parent=1 // pred_region
      %187 = dma.done [#allocation10], 2048
    $region101: #{tpu_custom_call.1} parent=1 // pred_fallthru
      _
    // Predicated region
    $region102: #{tpu_custom_call.1} parent=1 // pred_check
      _
    $region103: #{tpu_custom_call.1} parent=1 // pred_check_branch
      %189 = sbr.rel (0) target = $region105
    $region104: #{tpu_custom_call.1} parent=1 // pred_region
      %190 = dma.done [#allocation10], 2048
    $region105: #{tpu_custom_call.1} parent=1 // pred_fallthru
      _
    // Predicated region
    $region106: #{tpu_custom_call.1} parent=1 // pred_check
      _
    $region107: #{tpu_custom_call.1} parent=1 // pred_check_branch
      %192 = sbr.rel (0) target = $region109
    $region108: #{tpu_custom_call.1} parent=1 // pred_region
      %193 = dma.done [#allocation13], 2048
    $region109: #{tpu_custom_call.1} parent=1 // pred_fallthru
      _
    // Predicated region
    $region110: #{tpu_custom_call.1} parent=1 // pred_check
      _
    $region111: #{tpu_custom_call.1} parent=1 // pred_check_branch
      %195 = sbr.rel (0) target = $region113
    $region112: #{tpu_custom_call.1} parent=1 // pred_region
      %196 = dma.done [#allocation13], 2048
    $region113: #{tpu_custom_call.1} parent=1 // pred_fallthru
      _
    // Predicated region
    $region114: #{tpu_custom_call.1} parent=1 // pred_check
      _
    $region115: #{tpu_custom_call.1} parent=1 // pred_check_branch
      %198 = sbr.rel (0) target = $region117
    $region116: #{tpu_custom_call.1} parent=1 // pred_region
      %199 = dma.done [#allocation16], 2048
    $region117: #{tpu_custom_call.1} parent=1 // pred_fallthru
      _
    // Predicated region
    $region118: #{tpu_custom_call.1} parent=1 // pred_check
      _
    $region119: #{tpu_custom_call.1} parent=1 // pred_check_branch
      %201 = sbr.rel (0) target = $region121
    $region120: #{tpu_custom_call.1} parent=1 // pred_region
      %202 = dma.done [#allocation16], 2048
    $region121: #{tpu_custom_call.1} parent=1 // pred_fallthru
      _
    // Predicated region
    $region122: #{tpu_custom_call.1} parent=1 // pred_check
      _
    $region123: #{tpu_custom_call.1} parent=1 // pred_check_branch
      %204 = sbr.rel (0) target = $region125
    $region124: #{tpu_custom_call.1} parent=1 // pred_region
      %205 = dma.done [#allocation19], 2048
    $region125: #{tpu_custom_call.1} parent=1 // pred_fallthru
      _
    %p206 = scmp.eq.s32.totalorder 0, 0
    // Predicated region
    $region126: #{tpu_custom_call.1} parent=1 // pred_check
      %p207 = pneg %p206
    $region127: #{tpu_custom_call.1} parent=1 // pred_check_branch
      %209 = sbr.rel (%p207) target = $region129
    $region128: #{tpu_custom_call.1} parent=1 // pred_region
      %210 = vst [vmem:[#allocation2] sm:$0xff] 0.0
      %211 = vst [vmem:[#allocation2 + $0x8] sm:$0xff] 0.0
    $region129: #{tpu_custom_call.1} parent=1 // pred_fallthru
      _
    %v212 = vld [vmem:[#allocation6] sm:$0xff]
    %v213 = vld [vmem:[#allocation6 + $0x8] sm:$0xff]
    %v214 = vld [vmem:[%s3] sm:$0xff]
    %v215 = vld [vmem:[%s3 + $0x8] sm:$0xff]
    %v216 = vld [vmem:[%s3 + $0x10] sm:$0xff]
    %v217 = vld [vmem:[%s3 + $0x18] sm:$0xff]
    %v218 = vld [vmem:[%s3 + $0x20] sm:$0xff]
    %v219 = vld [vmem:[%s3 + $0x28] sm:$0xff]
    %v220 = vld [vmem:[%s3 + $0x30] sm:$0xff]
    %v221 = vld [vmem:[%s3 + $0x38] sm:$0xff]
    %v222 = vld [vmem:[%s3 + $0x40] sm:$0xff]
    %v223 = vld [vmem:[%s3 + $0x48] sm:$0xff]
    %v224 = vld [vmem:[%s3 + $0x50] sm:$0xff]
    %v225 = vld [vmem:[%s3 + $0x58] sm:$0xff]
    %v226 = vld [vmem:[%s3 + $0x60] sm:$0xff]
    %v227 = vld [vmem:[%s3 + $0x68] sm:$0xff]
    %v228 = vld [vmem:[%s3 + $0x70] sm:$0xff]
    %v229 = vld [vmem:[%s3 + $0x78] sm:$0xff]
    %v230 = vld [vmem:[%s0] sm:$0x1]
    %v231 = vld [vmem:[#allocation3] sm:$0x1]
    %v232 = vlaneseq
    %v233 = vshrl.u32 %v232, 7
    %v234 = vadd.s32 %v233, 8
    %v235 = vlaneseq
    %v236 = vshrl.u32 %v235, 7
    %v237 = vsub.s32 0, %v236
    %v238 = vrot.slane %v230, %v237
    %vm239 = vcmp.eq.s32.totalorder %v233, %v238
    %vm240 = vcmp.eq.s32.totalorder %v234, %v238
    %v241 = vsel %vm239, 1, 0
    %v242 = vsel %vm240, 1, 0
    %v243 = vcvt.s32.f32 %v241
    %v244 = vcvt.s32.f32 %v242
    %v245 = vlaneseq
    %v246 = vshrl.u32 %v245, 7
    %v247 = vsub.s32 0, %v246
    %v248 = vrot.slane %v231, %v247
    %vm249 = vcmp.eq.s32.totalorder %v233, %v248
    %vm250 = vcmp.eq.s32.totalorder %v234, %v248
    %v251 = vsel %vm249, 1, 0
    %v252 = vsel %vm250, 1, 0
    %v253 = vcvt.s32.f32 %v251
    %v254 = vcvt.s32.f32 %v252
    %255 = vxpose.xlu0.b32.start [1/16] %v243, 128
    %256 = vxpose.xlu0.b32.cont [2/16] %v244, 128
    %257 = vxpose.xlu0.b32.cont [3/16] 0.0, 128
    %258 = vxpose.xlu0.b32.cont [4/16] 0.0, 128
    %259 = vxpose.xlu0.b32.cont [5/16] 0.0, 128
    %260 = vxpose.xlu0.b32.cont [6/16] 0.0, 128
    %261 = vxpose.xlu0.b32.cont [7/16] 0.0, 128
    %262 = vxpose.xlu0.b32.cont [8/16] 0.0, 128
    %263 = vxpose.xlu0.b32.cont [9/16] 0.0, 128
    %264 = vxpose.xlu0.b32.cont [10/16] 0.0, 128
    %265 = vxpose.xlu0.b32.cont [11/16] 0.0, 128
    %266 = vxpose.xlu0.b32.cont [12/16] 0.0, 128
    %267 = vxpose.xlu0.b32.cont [13/16] 0.0, 128
    %268 = vxpose.xlu0.b32.cont [14/16] 0.0, 128
    %269 = vxpose.xlu0.b32.cont [15/16] 0.0, 128
    %270 = vxpose.xlu0.b32.end [16/16] 0.0, 128
    %v271 = vpop.trf.xlu0
    %v272 = vpop.trf.xlu0
    %v273 = vpop.trf.xlu0
    %v274 = vpop.trf.xlu0
    %v275 = vpop.trf.xlu0
    %v276 = vpop.trf.xlu0
    %v277 = vpop.trf.xlu0
    %v278 = vpop.trf.xlu0
    %v279 = vpop.trf.xlu0
    %v280 = vpop.trf.xlu0
    %v281 = vpop.trf.xlu0
    %v282 = vpop.trf.xlu0
    %v283 = vpop.trf.xlu0
    %v284 = vpop.trf.xlu0
    %v285 = vpop.trf.xlu0
    %v286 = vpop.trf.xlu0
    %vm287 = vcmask 130048
    %v289 = vsel %vm287, %v271, 0
    %v292 = vsel %vm287, %v272, 0
    %v295 = vsel %vm287, %v273, 0
    %v298 = vsel %vm287, %v274, 0
    %v301 = vsel %vm287, %v275, 0
    %v304 = vsel %vm287, %v276, 0
    %v307 = vsel %vm287, %v277, 0
    %v310 = vsel %vm287, %v278, 0
    %v313 = vsel %vm287, %v279, 0
    %v316 = vsel %vm287, %v280, 0
    %v319 = vsel %vm287, %v281, 0
    %v322 = vsel %vm287, %v282, 0
    %v325 = vsel %vm287, %v283, 0
    %v328 = vsel %vm287, %v284, 0
    %v331 = vsel %vm287, %v285, 0
    %v334 = vsel %vm287, %v286, 0
    %336 = vmatprep.subr.mxu0 0.0
    %337 = vmatpush1.msra.mxu0 0.0
    %338 = vmatprep.subr.mxu0 0.0
    %339 = vmatpush1.msra.mxu0 0.0
    %340 = vmatprep.subr.mxu0 0.0
    %341 = vmatpush1.msra.mxu0 0.0
    %342 = vmatprep.subr.mxu0 0.0
    %343 = vmatpush1.msra.mxu0 0.0
    %344 = vmatprep.subr.mxu0 0.0
    %345 = vmatpush1.msra.mxu0 0.0
    %346 = vmatprep.subr.mxu0 0.0
    %347 = vmatpush1.msra.mxu0 0.0
    %348 = vmatprep.subr.mxu0 0.0
    %349 = vmatpush1.msra.mxu0 0.0
    %350 = vmatprep.subr.mxu0 0.0
    %351 = vmatpush1.msra.mxu0 0.0
    %352 = vmatprep.subr.mxu0 0.0
    %353 = vmatpush1.msra.mxu0 0.0
    %354 = vmatprep.subr.mxu0 0.0
    %355 = vmatpush1.msra.mxu0 0.0
    %356 = vmatprep.subr.mxu0 0.0
    %357 = vmatpush1.msra.mxu0 0.0
    %358 = vmatprep.subr.mxu0 0.0
    %359 = vmatpush1.msra.mxu0 0.0
    %360 = vmatprep.subr.mxu0 0.0
    %361 = vmatpush1.msra.mxu0 0.0
    %362 = vmatprep.subr.mxu0 0.0
    %363 = vmatpush1.msra.mxu0 0.0
    %364 = vmatprep.subr.mxu0 0.0
    %365 = vmatpush1.msra.mxu0 %v213
    %366 = vmatprep.subr.mxu0 0.0
    %367 = vmatpush1.msra.mxu0 %v212
    %368 = vmatprep.subr.mxu0 0.0
    %369 = vmatpush2.msra.mxu0 0.0
    %370 = vmatprep.subr.mxu0 0.0
    %371 = vmatpush2.msra.mxu0 0.0
    %372 = vmatprep.subr.mxu0 0.0
    %373 = vmatpush2.msra.mxu0 0.0
    %374 = vmatprep.subr.mxu0 0.0
    %375 = vmatpush2.msra.mxu0 0.0
    %376 = vmatprep.subr.mxu0 0.0
    %377 = vmatpush2.msra.mxu0 0.0
    %378 = vmatprep.subr.mxu0 0.0
    %379 = vmatpush2.msra.mxu0 0.0
    %380 = vmatprep.subr.mxu0 0.0
    %381 = vmatpush2.msra.mxu0 0.0
    %382 = vmatprep.subr.mxu0 0.0
    %383 = vmatpush2.msra.mxu0 0.0
    %384 = vmatprep.subr.mxu0 0.0
    %385 = vmatpush2.msra.mxu0 0.0
    %386 = vmatprep.subr.mxu0 0.0
    %387 = vmatpush2.msra.mxu0 0.0
    %388 = vmatprep.subr.mxu0 0.0
    %389 = vmatpush2.msra.mxu0 0.0
    %390 = vmatprep.subr.mxu0 0.0
    %391 = vmatpush2.msra.mxu0 0.0
    %392 = vmatprep.subr.mxu0 0.0
    %393 = vmatpush2.msra.mxu0 0.0
    %394 = vmatprep.subr.mxu0 0.0
    %395 = vmatpush2.msra.mxu0 0.0
    %396 = vmatprep.subr.mxu0 0.0
    %397 = vmatpush2.msra.mxu0 0.0
    %398 = vmatprep.subr.mxu0 0.0
    %399 = vmatpush2.msra.mxu0 0.0
    %400 = vmatprep.mubr.f32.mxu0 0.0
    %401 = vmatmul.mubr.f32.gmra.mxu0 %v289
    %v402 = vpop.f32.mrf.mxu0
    %v403 = vadd.f32 0.0, %v402
    %v404 = vpop.f32.mrf.mxu0
    %405 = vmatprep.mubr.f32.mxu0 0.0
    %406 = vmatmul.mubr.f32.gmra.mxu0 %v292
    %v407 = vpop.f32.mrf.mxu0
    %v408 = vadd.f32 0.0, %v407
    %v409 = vpop.f32.mrf.mxu0
    %410 = vmatprep.mubr.f32.mxu0 0.0
    %411 = vmatmul.mubr.f32.gmra.mxu0 %v295
    %v412 = vpop.f32.mrf.mxu0
    %v413 = vadd.f32 0.0, %v412
    %v414 = vpop.f32.mrf.mxu0
    %415 = vmatprep.mubr.f32.mxu0 0.0
    %416 = vmatmul.mubr.f32.gmra.mxu0 %v298
    %v417 = vpop.f32.mrf.mxu0
    %v418 = vadd.f32 0.0, %v417
    %v419 = vpop.f32.mrf.mxu0
    %420 = vmatprep.mubr.f32.mxu0 0.0
    %421 = vmatmul.mubr.f32.gmra.mxu0 %v301
    %v422 = vpop.f32.mrf.mxu0
    %v423 = vadd.f32 0.0, %v422
    %v424 = vpop.f32.mrf.mxu0
    %425 = vmatprep.mubr.f32.mxu0 0.0
    %426 = vmatmul.mubr.f32.gmra.mxu0 %v304
    %v427 = vpop.f32.mrf.mxu0
    %v428 = vadd.f32 0.0, %v427
    %v429 = vpop.f32.mrf.mxu0
    %430 = vmatprep.mubr.f32.mxu0 0.0
    %431 = vmatmul.mubr.f32.gmra.mxu0 %v307
    %v432 = vpop.f32.mrf.mxu0
    %v433 = vadd.f32 0.0, %v432
    %v434 = vpop.f32.mrf.mxu0
    %435 = vmatprep.mubr.f32.mxu0 0.0
    %436 = vmatmul.mubr.f32.gmra.mxu0 %v310
    %v437 = vpop.f32.mrf.mxu0
    %v438 = vadd.f32 0.0, %v437
    %v439 = vpop.f32.mrf.mxu0
    %440 = vmatprep.mubr.f32.mxu0 0.0
    %441 = vmatmul.mubr.f32.gmra.mxu0 %v313
    %v442 = vpop.f32.mrf.mxu0
    %v443 = vadd.f32 0.0, %v442
    %v444 = vpop.f32.mrf.mxu0
    %445 = vmatprep.mubr.f32.mxu0 0.0
    %446 = vmatmul.mubr.f32.gmra.mxu0 %v316
    %v447 = vpop.f32.mrf.mxu0
    %v448 = vadd.f32 0.0, %v447
    %v449 = vpop.f32.mrf.mxu0
    %450 = vmatprep.mubr.f32.mxu0 0.0
    %451 = vmatmul.mubr.f32.gmra.mxu0 %v319
    %v452 = vpop.f32.mrf.mxu0
    %v453 = vadd.f32 0.0, %v452
    %v454 = vpop.f32.mrf.mxu0
    %455 = vmatprep.mubr.f32.mxu0 0.0
    %456 = vmatmul.mubr.f32.gmra.mxu0 %v322
    %v457 = vpop.f32.mrf.mxu0
    %v458 = vadd.f32 0.0, %v457
    %v459 = vpop.f32.mrf.mxu0
    %460 = vmatprep.mubr.f32.mxu0 0.0
    %461 = vmatmul.mubr.f32.gmra.mxu0 %v325
    %v462 = vpop.f32.mrf.mxu0
    %v463 = vadd.f32 0.0, %v462
    %v464 = vpop.f32.mrf.mxu0
    %465 = vmatprep.mubr.f32.mxu0 0.0
    %466 = vmatmul.mubr.f32.gmra.mxu0 %v328
    %v467 = vpop.f32.mrf.mxu0
    %v468 = vadd.f32 0.0, %v467
    %v469 = vpop.f32.mrf.mxu0
    %470 = vmatprep.mubr.f32.mxu0 0.0
    %471 = vmatmul.mubr.f32.gmra.mxu0 %v331
    %v472 = vpop.f32.mrf.mxu0
    %v473 = vadd.f32 0.0, %v472
    %v474 = vpop.f32.mrf.mxu0
    %475 = vmatprep.mubr.f32.mxu0 0.0
    %476 = vmatmul.mubr.f32.gmra.mxu0 %v334
    %v477 = vpop.f32.mrf.mxu0
    %v478 = vadd.f32 0.0, %v477
    %v479 = vpop.f32.mrf.mxu0
    %480 = vdwg.mxu0
    %481 = vxpose.xlu0.b32.start [1/16] %v253, 128
    %482 = vxpose.xlu0.b32.cont [2/16] %v254, 128
    %483 = vxpose.xlu0.b32.cont [3/16] 0.0, 128
    %484 = vxpose.xlu0.b32.cont [4/16] 0.0, 128
    %485 = vxpose.xlu0.b32.cont [5/16] 0.0, 128
    %486 = vxpose.xlu0.b32.cont [6/16] 0.0, 128
    %487 = vxpose.xlu0.b32.cont [7/16] 0.0, 128
    %488 = vxpose.xlu0.b32.cont [8/16] 0.0, 128
    %489 = vxpose.xlu0.b32.cont [9/16] 0.0, 128
    %490 = vxpose.xlu0.b32.cont [10/16] 0.0, 128
    %491 = vxpose.xlu0.b32.cont [11/16] 0.0, 128
    %492 = vxpose.xlu0.b32.cont [12/16] 0.0, 128
    %493 = vxpose.xlu0.b32.cont [13/16] 0.0, 128
    %494 = vxpose.xlu0.b32.cont [14/16] 0.0, 128
    %495 = vxpose.xlu0.b32.cont [15/16] 0.0, 128
    %496 = vxpose.xlu0.b32.end [16/16] 0.0, 128
    %v497 = vpop.trf.xlu0
    %v498 = vpop.trf.xlu0
    %v499 = vpop.trf.xlu0
    %v500 = vpop.trf.xlu0
    %v501 = vpop.trf.xlu0
    %v502 = vpop.trf.xlu0
    %v503 = vpop.trf.xlu0
    %v504 = vpop.trf.xlu0
    %v505 = vpop.trf.xlu0
    %v506 = vpop.trf.xlu0
    %v507 = vpop.trf.xlu0
    %v508 = vpop.trf.xlu0
    %v509 = vpop.trf.xlu0
    %v510 = vpop.trf.xlu0
    %v511 = vpop.trf.xlu0
    %v512 = vpop.trf.xlu0
    %v514 = vsel %vm287, %v497, 0
    %v517 = vsel %vm287, %v498, 0
    %v520 = vsel %vm287, %v499, 0
    %v523 = vsel %vm287, %v500, 0
    %v526 = vsel %vm287, %v501, 0
    %v529 = vsel %vm287, %v502, 0
    %v532 = vsel %vm287, %v503, 0
    %v535 = vsel %vm287, %v504, 0
    %v538 = vsel %vm287, %v505, 0
    %v541 = vsel %vm287, %v506, 0
    %v544 = vsel %vm287, %v507, 0
    %v547 = vsel %vm287, %v508, 0
    %v550 = vsel %vm287, %v509, 0
    %v553 = vsel %vm287, %v510, 0
    %v556 = vsel %vm287, %v511, 0
    %v559 = vsel %vm287, %v512, 0
    %561 = vmatprep.subr.mxu0 0.0
    %562 = vmatpush1.msra.mxu0 0.0
    %563 = vmatprep.subr.mxu0 0.0
    %564 = vmatpush1.msra.mxu0 0.0
    %565 = vmatprep.subr.mxu0 0.0
    %566 = vmatpush1.msra.mxu0 0.0
    %567 = vmatprep.subr.mxu0 0.0
    %568 = vmatpush1.msra.mxu0 0.0
    %569 = vmatprep.subr.mxu0 0.0
    %570 = vmatpush1.msra.mxu0 0.0
    %571 = vmatprep.subr.mxu0 0.0
    %572 = vmatpush1.msra.mxu0 0.0
    %573 = vmatprep.subr.mxu0 0.0
    %574 = vmatpush1.msra.mxu0 0.0
    %575 = vmatprep.subr.mxu0 0.0
    %576 = vmatpush1.msra.mxu0 0.0
    %577 = vmatprep.subr.mxu0 0.0
    %578 = vmatpush1.msra.mxu0 0.0
    %579 = vmatprep.subr.mxu0 0.0
    %580 = vmatpush1.msra.mxu0 0.0
    %581 = vmatprep.subr.mxu0 0.0
    %582 = vmatpush1.msra.mxu0 0.0
    %583 = vmatprep.subr.mxu0 0.0
    %584 = vmatpush1.msra.mxu0 0.0
    %585 = vmatprep.subr.mxu0 0.0
    %586 = vmatpush1.msra.mxu0 0.0
    %587 = vmatprep.subr.mxu0 0.0
    %588 = vmatpush1.msra.mxu0 0.0
    %589 = vmatprep.subr.mxu0 0.0
    %590 = vmatpush1.msra.mxu0 %v213
    %591 = vmatprep.subr.mxu0 0.0
    %592 = vmatpush1.msra.mxu0 %v212
    %593 = vmatprep.subr.mxu0 0.0
    %594 = vmatpush2.msra.mxu0 0.0
    %595 = vmatprep.subr.mxu0 0.0
    %596 = vmatpush2.msra.mxu0 0.0
    %597 = vmatprep.subr.mxu0 0.0
    %598 = vmatpush2.msra.mxu0 0.0
    %599 = vmatprep.subr.mxu0 0.0
    %600 = vmatpush2.msra.mxu0 0.0
    %601 = vmatprep.subr.mxu0 0.0
    %602 = vmatpush2.msra.mxu0 0.0
    %603 = vmatprep.subr.mxu0 0.0
    %604 = vmatpush2.msra.mxu0 0.0
    %605 = vmatprep.subr.mxu0 0.0
    %606 = vmatpush2.msra.mxu0 0.0
    %607 = vmatprep.subr.mxu0 0.0
    %608 = vmatpush2.msra.mxu0 0.0
    %609 = vmatprep.subr.mxu0 0.0
    %610 = vmatpush2.msra.mxu0 0.0
    %611 = vmatprep.subr.mxu0 0.0
    %612 = vmatpush2.msra.mxu0 0.0
    %613 = vmatprep.subr.mxu0 0.0
    %614 = vmatpush2.msra.mxu0 0.0
    %615 = vmatprep.subr.mxu0 0.0
    %616 = vmatpush2.msra.mxu0 0.0
    %617 = vmatprep.subr.mxu0 0.0
    %618 = vmatpush2.msra.mxu0 0.0
    %619 = vmatprep.subr.mxu0 0.0
    %620 = vmatpush2.msra.mxu0 0.0
    %621 = vmatprep.subr.mxu0 0.0
    %622 = vmatpush2.msra.mxu0 0.0
    %623 = vmatprep.subr.mxu0 0.0
    %624 = vmatpush2.msra.mxu0 0.0
    %625 = vmatprep.mubr.f32.mxu0 0.0
    %626 = vmatmul.mubr.f32.gmra.mxu0 %v514
    %v627 = vpop.f32.mrf.mxu0
    %v628 = vadd.f32 0.0, %v627
    %v629 = vpop.f32.mrf.mxu0
    %630 = vmatprep.mubr.f32.mxu0 0.0
    %631 = vmatmul.mubr.f32.gmra.mxu0 %v517
    %v632 = vpop.f32.mrf.mxu0
    %v633 = vadd.f32 0.0, %v632
    %v634 = vpop.f32.mrf.mxu0
    %635 = vmatprep.mubr.f32.mxu0 0.0
    %636 = vmatmul.mubr.f32.gmra.mxu0 %v520
    %v637 = vpop.f32.mrf.mxu0
    %v638 = vadd.f32 0.0, %v637
    %v639 = vpop.f32.mrf.mxu0
    %640 = vmatprep.mubr.f32.mxu0 0.0
    %641 = vmatmul.mubr.f32.gmra.mxu0 %v523
    %v642 = vpop.f32.mrf.mxu0
    %v643 = vadd.f32 0.0, %v642
    %v644 = vpop.f32.mrf.mxu0
    %645 = vmatprep.mubr.f32.mxu0 0.0
    %646 = vmatmul.mubr.f32.gmra.mxu0 %v526
    %v647 = vpop.f32.mrf.mxu0
    %v648 = vadd.f32 0.0, %v647
    %v649 = vpop.f32.mrf.mxu0
    %650 = vmatprep.mubr.f32.mxu0 0.0
    %651 = vmatmul.mubr.f32.gmra.mxu0 %v529
    %v652 = vpop.f32.mrf.mxu0
    %v653 = vadd.f32 0.0, %v652
    %v654 = vpop.f32.mrf.mxu0
    %655 = vmatprep.mubr.f32.mxu0 0.0
    %656 = vmatmul.mubr.f32.gmra.mxu0 %v532
    %v657 = vpop.f32.mrf.mxu0
    %v658 = vadd.f32 0.0, %v657
    %v659 = vpop.f32.mrf.mxu0
    %660 = vmatprep.mubr.f32.mxu0 0.0
    %661 = vmatmul.mubr.f32.gmra.mxu0 %v535
    %v662 = vpop.f32.mrf.mxu0
    %v663 = vadd.f32 0.0, %v662
    %v664 = vpop.f32.mrf.mxu0
    %665 = vmatprep.mubr.f32.mxu0 0.0
    %666 = vmatmul.mubr.f32.gmra.mxu0 %v538
    %v667 = vpop.f32.mrf.mxu0
    %v668 = vadd.f32 0.0, %v667
    %v669 = vpop.f32.mrf.mxu0
    %670 = vmatprep.mubr.f32.mxu0 0.0
    %671 = vmatmul.mubr.f32.gmra.mxu0 %v541
    %v672 = vpop.f32.mrf.mxu0
    %v673 = vadd.f32 0.0, %v672
    %v674 = vpop.f32.mrf.mxu0
    %675 = vmatprep.mubr.f32.mxu0 0.0
    %676 = vmatmul.mubr.f32.gmra.mxu0 %v544
    %v677 = vpop.f32.mrf.mxu0
    %v678 = vadd.f32 0.0, %v677
    %v679 = vpop.f32.mrf.mxu0
    %680 = vmatprep.mubr.f32.mxu0 0.0
    %681 = vmatmul.mubr.f32.gmra.mxu0 %v547
    %v682 = vpop.f32.mrf.mxu0
    %v683 = vadd.f32 0.0, %v682
    %v684 = vpop.f32.mrf.mxu0
    %685 = vmatprep.mubr.f32.mxu0 0.0
    %686 = vmatmul.mubr.f32.gmra.mxu0 %v550
    %v687 = vpop.f32.mrf.mxu0
    %v688 = vadd.f32 0.0, %v687
    %v689 = vpop.f32.mrf.mxu0
    %690 = vmatprep.mubr.f32.mxu0 0.0
    %691 = vmatmul.mubr.f32.gmra.mxu0 %v553
    %v692 = vpop.f32.mrf.mxu0
    %v693 = vadd.f32 0.0, %v692
    %v694 = vpop.f32.mrf.mxu0
    %695 = vmatprep.mubr.f32.mxu0 0.0
    %696 = vmatmul.mubr.f32.gmra.mxu0 %v556
    %v697 = vpop.f32.mrf.mxu0
    %v698 = vadd.f32 0.0, %v697
    %v699 = vpop.f32.mrf.mxu0
    %700 = vmatprep.mubr.f32.mxu0 0.0
    %701 = vmatmul.mubr.f32.gmra.mxu0 %v559
    %v702 = vpop.f32.mrf.mxu0
    %v703 = vadd.f32 0.0, %v702
    %v704 = vpop.f32.mrf.mxu0
    %705 = vdwg.mxu0
    %v706 = vld [vmem:[%s4] sm:$0xff]
    %v707 = vld [vmem:[%s4 + $0x8] sm:$0xff]
    %v708 = vld [vmem:[%s4 + $0x10] sm:$0xff]
    %v709 = vld [vmem:[%s4 + $0x18] sm:$0xff]
    %v710 = vld [vmem:[%s4 + $0x20] sm:$0xff]
    %v711 = vld [vmem:[%s4 + $0x28] sm:$0xff]
    %v712 = vld [vmem:[%s4 + $0x30] sm:$0xff]
    %v713 = vld [vmem:[%s4 + $0x38] sm:$0xff]
    %v714 = vld [vmem:[%s4 + $0x40] sm:$0xff]
    %v715 = vld [vmem:[%s4 + $0x48] sm:$0xff]
    %v716 = vld [vmem:[%s4 + $0x50] sm:$0xff]
    %v717 = vld [vmem:[%s4 + $0x58] sm:$0xff]
    %v718 = vld [vmem:[%s4 + $0x60] sm:$0xff]
    %v719 = vld [vmem:[%s4 + $0x68] sm:$0xff]
    %v720 = vld [vmem:[%s4 + $0x70] sm:$0xff]
    %v721 = vld [vmem:[%s4 + $0x78] sm:$0xff]
    %v722 = vld [vmem:[#allocation8] sm:$0xff]
    %v723 = vld [vmem:[#allocation8 + $0x8] sm:$0xff]
    %v724 = vld [vmem:[#allocation8 + $0x10] sm:$0xff]
    %v725 = vld [vmem:[#allocation8 + $0x18] sm:$0xff]
    %v726 = vld [vmem:[#allocation8 + $0x20] sm:$0xff]
    %v727 = vld [vmem:[#allocation8 + $0x28] sm:$0xff]
    %v728 = vld [vmem:[#allocation8 + $0x30] sm:$0xff]
    %v729 = vld [vmem:[#allocation8 + $0x38] sm:$0xff]
    %v730 = vld [vmem:[#allocation8 + $0x40] sm:$0xff]
    %v731 = vld [vmem:[#allocation8 + $0x48] sm:$0xff]
    %v732 = vld [vmem:[#allocation8 + $0x50] sm:$0xff]
    %v733 = vld [vmem:[#allocation8 + $0x58] sm:$0xff]
    %v734 = vld [vmem:[#allocation8 + $0x60] sm:$0xff]
    %v735 = vld [vmem:[#allocation8 + $0x68] sm:$0xff]
    %v736 = vld [vmem:[#allocation8 + $0x70] sm:$0xff]
    %v737 = vld [vmem:[#allocation8 + $0x78] sm:$0xff]
    %738 = vmatprep.subr.mxu0 0.0
    %739 = vmatpush1.msra.mxu0 %v737
    %740 = vmatprep.subr.mxu0 0.0
    %741 = vmatpush1.msra.mxu0 %v736
    %742 = vmatprep.subr.mxu0 0.0
    %743 = vmatpush1.msra.mxu0 %v735
    %744 = vmatprep.subr.mxu0 0.0
    %745 = vmatpush1.msra.mxu0 %v734
    %746 = vmatprep.subr.mxu0 0.0
    %747 = vmatpush1.msra.mxu0 %v733
    %748 = vmatprep.subr.mxu0 0.0
    %749 = vmatpush1.msra.mxu0 %v732
    %750 = vmatprep.subr.mxu0 0.0
    %751 = vmatpush1.msra.mxu0 %v731
    %752 = vmatprep.subr.mxu0 0.0
    %753 = vmatpush1.msra.mxu0 %v730
    %754 = vmatprep.subr.mxu0 0.0
    %755 = vmatpush1.msra.mxu0 %v729
    %756 = vmatprep.subr.mxu0 0.0
    %757 = vmatpush1.msra.mxu0 %v728
    %758 = vmatprep.subr.mxu0 0.0
    %759 = vmatpush1.msra.mxu0 %v727
    %760 = vmatprep.subr.mxu0 0.0
    %761 = vmatpush1.msra.mxu0 %v726
    %762 = vmatprep.subr.mxu0 0.0
    %763 = vmatpush1.msra.mxu0 %v725
    %764 = vmatprep.subr.mxu0 0.0
    %765 = vmatpush1.msra.mxu0 %v724
    %766 = vmatprep.subr.mxu0 0.0
    %767 = vmatpush1.msra.mxu0 %v723
    %768 = vmatprep.subr.mxu0 0.0
    %769 = vmatpush1.msra.mxu0 %v722
    %770 = vmatprep.subr.mxu0 0.0
    %771 = vmatpush2.msra.mxu0 0.0
    %772 = vmatprep.subr.mxu0 0.0
    %773 = vmatpush2.msra.mxu0 0.0
    %774 = vmatprep.subr.mxu0 0.0
    %775 = vmatpush2.msra.mxu0 0.0
    %776 = vmatprep.subr.mxu0 0.0
    %777 = vmatpush2.msra.mxu0 0.0
    %778 = vmatprep.subr.mxu0 0.0
    %779 = vmatpush2.msra.mxu0 0.0
    %780 = vmatprep.subr.mxu0 0.0
    %781 = vmatpush2.msra.mxu0 0.0
    %782 = vmatprep.subr.mxu0 0.0
    %783 = vmatpush2.msra.mxu0 0.0
    %784 = vmatprep.subr.mxu0 0.0
    %785 = vmatpush2.msra.mxu0 0.0
    %786 = vmatprep.subr.mxu0 0.0
    %787 = vmatpush2.msra.mxu0 0.0
    %788 = vmatprep.subr.mxu0 0.0
    %789 = vmatpush2.msra.mxu0 0.0
    %790 = vmatprep.subr.mxu0 0.0
    %791 = vmatpush2.msra.mxu0 0.0
    %792 = vmatprep.subr.mxu0 0.0
    %793 = vmatpush2.msra.mxu0 0.0
    %794 = vmatprep.subr.mxu0 0.0
    %795 = vmatpush2.msra.mxu0 0.0
    %796 = vmatprep.subr.mxu0 0.0
    %797 = vmatpush2.msra.mxu0 0.0
    %798 = vmatprep.subr.mxu0 0.0
    %799 = vmatpush2.msra.mxu0 0.0
    %800 = vmatprep.subr.mxu0 0.0
    %801 = vmatpush2.msra.mxu0 0.0
    %802 = vmatprep.mubr.f32.mxu0 0.0
    %803 = vmatmul.mubr.f32.gmra.mxu0 %v628
    %v804 = vpop.f32.mrf.mxu0
    %v805 = vadd.f32 0.0, %v804
    %v806 = vpop.f32.mrf.mxu0
    %807 = vmatprep.mubr.f32.mxu0 0.0
    %808 = vmatmul.mubr.f32.gmra.mxu0 %v633
    %v809 = vpop.f32.mrf.mxu0
    %v810 = vadd.f32 0.0, %v809
    %v811 = vpop.f32.mrf.mxu0
    %812 = vmatprep.mubr.f32.mxu0 0.0
    %813 = vmatmul.mubr.f32.gmra.mxu0 %v638
    %v814 = vpop.f32.mrf.mxu0
    %v815 = vadd.f32 0.0, %v814
    %v816 = vpop.f32.mrf.mxu0
    %817 = vmatprep.mubr.f32.mxu0 0.0
    %818 = vmatmul.mubr.f32.gmra.mxu0 %v643
    %v819 = vpop.f32.mrf.mxu0
    %v820 = vadd.f32 0.0, %v819
    %v821 = vpop.f32.mrf.mxu0
    %822 = vmatprep.mubr.f32.mxu0 0.0
    %823 = vmatmul.mubr.f32.gmra.mxu0 %v648
    %v824 = vpop.f32.mrf.mxu0
    %v825 = vadd.f32 0.0, %v824
    %v826 = vpop.f32.mrf.mxu0
    %827 = vmatprep.mubr.f32.mxu0 0.0
    %828 = vmatmul.mubr.f32.gmra.mxu0 %v653
    %v829 = vpop.f32.mrf.mxu0
    %v830 = vadd.f32 0.0, %v829
    %v831 = vpop.f32.mrf.mxu0
    %832 = vmatprep.mubr.f32.mxu0 0.0
    %833 = vmatmul.mubr.f32.gmra.mxu0 %v658
    %v834 = vpop.f32.mrf.mxu0
    %v835 = vadd.f32 0.0, %v834
    %v836 = vpop.f32.mrf.mxu0
    %837 = vmatprep.mubr.f32.mxu0 0.0
    %838 = vmatmul.mubr.f32.gmra.mxu0 %v663
    %v839 = vpop.f32.mrf.mxu0
    %v840 = vadd.f32 0.0, %v839
    %v841 = vpop.f32.mrf.mxu0
    %842 = vmatprep.mubr.f32.mxu0 0.0
    %843 = vmatmul.mubr.f32.gmra.mxu0 %v668
    %v844 = vpop.f32.mrf.mxu0
    %v845 = vadd.f32 0.0, %v844
    %v846 = vpop.f32.mrf.mxu0
    %847 = vmatprep.mubr.f32.mxu0 0.0
    %848 = vmatmul.mubr.f32.gmra.mxu0 %v673
    %v849 = vpop.f32.mrf.mxu0
    %v850 = vadd.f32 0.0, %v849
    %v851 = vpop.f32.mrf.mxu0
    %852 = vmatprep.mubr.f32.mxu0 0.0
    %853 = vmatmul.mubr.f32.gmra.mxu0 %v678
    %v854 = vpop.f32.mrf.mxu0
    %v855 = vadd.f32 0.0, %v854
    %v856 = vpop.f32.mrf.mxu0
    %857 = vmatprep.mubr.f32.mxu0 0.0
    %858 = vmatmul.mubr.f32.gmra.mxu0 %v683
    %v859 = vpop.f32.mrf.mxu0
    %v860 = vadd.f32 0.0, %v859
    %v861 = vpop.f32.mrf.mxu0
    %862 = vmatprep.mubr.f32.mxu0 0.0
    %863 = vmatmul.mubr.f32.gmra.mxu0 %v688
    %v864 = vpop.f32.mrf.mxu0
    %v865 = vadd.f32 0.0, %v864
    %v866 = vpop.f32.mrf.mxu0
    %867 = vmatprep.mubr.f32.mxu0 0.0
    %868 = vmatmul.mubr.f32.gmra.mxu0 %v693
    %v869 = vpop.f32.mrf.mxu0
    %v870 = vadd.f32 0.0, %v869
    %v871 = vpop.f32.mrf.mxu0
    %872 = vmatprep.mubr.f32.mxu0 0.0
    %873 = vmatmul.mubr.f32.gmra.mxu0 %v698
    %v874 = vpop.f32.mrf.mxu0
    %v875 = vadd.f32 0.0, %v874
    %v876 = vpop.f32.mrf.mxu0
    %877 = vmatprep.mubr.f32.mxu0 0.0
    %878 = vmatmul.mubr.f32.gmra.mxu0 %v703
    %v879 = vpop.f32.mrf.mxu0
    %v880 = vadd.f32 0.0, %v879
    %v881 = vpop.f32.mrf.mxu0
    %882 = vdwg.mxu0
    %883 = vmatprep.subr.mxu0 0.0
    %884 = vmatpush1.msra.mxu0 %v721
    %885 = vmatprep.subr.mxu0 0.0
    %886 = vmatpush1.msra.mxu0 %v720
    %887 = vmatprep.subr.mxu0 0.0
    %888 = vmatpush1.msra.mxu0 %v719
    %889 = vmatprep.subr.mxu0 0.0
    %890 = vmatpush1.msra.mxu0 %v718
    %891 = vmatprep.subr.mxu0 0.0
    %892 = vmatpush1.msra.mxu0 %v717
    %893 = vmatprep.subr.mxu0 0.0
    %894 = vmatpush1.msra.mxu0 %v716
    %895 = vmatprep.subr.mxu0 0.0
    %896 = vmatpush1.msra.mxu0 %v715
    %897 = vmatprep.subr.mxu0 0.0
    %898 = vmatpush1.msra.mxu0 %v714
    %899 = vmatprep.subr.mxu0 0.0
    %900 = vmatpush1.msra.mxu0 %v713
    %901 = vmatprep.subr.mxu0 0.0
    %902 = vmatpush1.msra.mxu0 %v712
    %903 = vmatprep.subr.mxu0 0.0
    %904 = vmatpush1.msra.mxu0 %v711
    %905 = vmatprep.subr.mxu0 0.0
    %906 = vmatpush1.msra.mxu0 %v710
    %907 = vmatprep.subr.mxu0 0.0
    %908 = vmatpush1.msra.mxu0 %v709
    %909 = vmatprep.subr.mxu0 0.0
    %910 = vmatpush1.msra.mxu0 %v708
    %911 = vmatprep.subr.mxu0 0.0
    %912 = vmatpush1.msra.mxu0 %v707
    %913 = vmatprep.subr.mxu0 0.0
    %914 = vmatpush1.msra.mxu0 %v706
    %915 = vmatprep.subr.mxu0 0.0
    %916 = vmatpush2.msra.mxu0 0.0
    %917 = vmatprep.subr.mxu0 0.0
    %918 = vmatpush2.msra.mxu0 0.0
    %919 = vmatprep.subr.mxu0 0.0
    %920 = vmatpush2.msra.mxu0 0.0
    %921 = vmatprep.subr.mxu0 0.0
    %922 = vmatpush2.msra.mxu0 0.0
    %923 = vmatprep.subr.mxu0 0.0
    %924 = vmatpush2.msra.mxu0 0.0
    %925 = vmatprep.subr.mxu0 0.0
    %926 = vmatpush2.msra.mxu0 0.0
    %927 = vmatprep.subr.mxu0 0.0
    %928 = vmatpush2.msra.mxu0 0.0
    %929 = vmatprep.subr.mxu0 0.0
    %930 = vmatpush2.msra.mxu0 0.0
    %931 = vmatprep.subr.mxu0 0.0
    %932 = vmatpush2.msra.mxu0 0.0
    %933 = vmatprep.subr.mxu0 0.0
    %934 = vmatpush2.msra.mxu0 0.0
    %935 = vmatprep.subr.mxu0 0.0
    %936 = vmatpush2.msra.mxu0 0.0
    %937 = vmatprep.subr.mxu0 0.0
    %938 = vmatpush2.msra.mxu0 0.0
    %939 = vmatprep.subr.mxu0 0.0
    %940 = vmatpush2.msra.mxu0 0.0
    %941 = vmatprep.subr.mxu0 0.0
    %942 = vmatpush2.msra.mxu0 0.0
    %943 = vmatprep.subr.mxu0 0.0
    %944 = vmatpush2.msra.mxu0 0.0
    %945 = vmatprep.subr.mxu0 0.0
    %946 = vmatpush2.msra.mxu0 0.0
    %947 = vmatprep.mubr.f32.mxu0 0.0
    %948 = vmatmul.mubr.f32.gmra.mxu0 %v403
    %v949 = vpop.f32.mrf.mxu0
    %v950 = vadd.f32 %v805, %v949
    %v951 = vpop.f32.mrf.mxu0
    %952 = vmatprep.mubr.f32.mxu0 0.0
    %953 = vmatmul.mubr.f32.gmra.mxu0 %v408
    %v954 = vpop.f32.mrf.mxu0
    %v955 = vadd.f32 %v810, %v954
    %v956 = vpop.f32.mrf.mxu0
    %957 = vmatprep.mubr.f32.mxu0 0.0
    %958 = vmatmul.mubr.f32.gmra.mxu0 %v413
    %v959 = vpop.f32.mrf.mxu0
    %v960 = vadd.f32 %v815, %v959
    %v961 = vpop.f32.mrf.mxu0
    %962 = vmatprep.mubr.f32.mxu0 0.0
    %963 = vmatmul.mubr.f32.gmra.mxu0 %v418
    %v964 = vpop.f32.mrf.mxu0
    %v965 = vadd.f32 %v820, %v964
    %v966 = vpop.f32.mrf.mxu0
    %967 = vmatprep.mubr.f32.mxu0 0.0
    %968 = vmatmul.mubr.f32.gmra.mxu0 %v423
    %v969 = vpop.f32.mrf.mxu0
    %v970 = vadd.f32 %v825, %v969
    %v971 = vpop.f32.mrf.mxu0
    %972 = vmatprep.mubr.f32.mxu0 0.0
    %973 = vmatmul.mubr.f32.gmra.mxu0 %v428
    %v974 = vpop.f32.mrf.mxu0
    %v975 = vadd.f32 %v830, %v974
    %v976 = vpop.f32.mrf.mxu0
    %977 = vmatprep.mubr.f32.mxu0 0.0
    %978 = vmatmul.mubr.f32.gmra.mxu0 %v433
    %v979 = vpop.f32.mrf.mxu0
    %v980 = vadd.f32 %v835, %v979
    %v981 = vpop.f32.mrf.mxu0
    %982 = vmatprep.mubr.f32.mxu0 0.0
    %983 = vmatmul.mubr.f32.gmra.mxu0 %v438
    %v984 = vpop.f32.mrf.mxu0
    %v985 = vadd.f32 %v840, %v984
    %v986 = vpop.f32.mrf.mxu0
    %987 = vmatprep.mubr.f32.mxu0 0.0
    %988 = vmatmul.mubr.f32.gmra.mxu0 %v443
    %v989 = vpop.f32.mrf.mxu0
    %v990 = vadd.f32 %v845, %v989
    %v991 = vpop.f32.mrf.mxu0
    %992 = vmatprep.mubr.f32.mxu0 0.0
    %993 = vmatmul.mubr.f32.gmra.mxu0 %v448
    %v994 = vpop.f32.mrf.mxu0
    %v995 = vadd.f32 %v850, %v994
    %v996 = vpop.f32.mrf.mxu0
    %997 = vmatprep.mubr.f32.mxu0 0.0
    %998 = vmatmul.mubr.f32.gmra.mxu0 %v453
    %v999 = vpop.f32.mrf.mxu0
    %v1000 = vadd.f32 %v855, %v999
    %v1001 = vpop.f32.mrf.mxu0
    %1002 = vmatprep.mubr.f32.mxu0 0.0
    %1003 = vmatmul.mubr.f32.gmra.mxu0 %v458
    %v1004 = vpop.f32.mrf.mxu0
    %v1005 = vadd.f32 %v860, %v1004
    %v1006 = vpop.f32.mrf.mxu0
    %1007 = vmatprep.mubr.f32.mxu0 0.0
    %1008 = vmatmul.mubr.f32.gmra.mxu0 %v463
    %v1009 = vpop.f32.mrf.mxu0
    %v1010 = vadd.f32 %v865, %v1009
    %v1011 = vpop.f32.mrf.mxu0
    %1012 = vmatprep.mubr.f32.mxu0 0.0
    %1013 = vmatmul.mubr.f32.gmra.mxu0 %v468
    %v1014 = vpop.f32.mrf.mxu0
    %v1015 = vadd.f32 %v870, %v1014
    %v1016 = vpop.f32.mrf.mxu0
    %1017 = vmatprep.mubr.f32.mxu0 0.0
    %1018 = vmatmul.mubr.f32.gmra.mxu0 %v473
    %v1019 = vpop.f32.mrf.mxu0
    %v1020 = vadd.f32 %v875, %v1019
    %v1021 = vpop.f32.mrf.mxu0
    %1022 = vmatprep.mubr.f32.mxu0 0.0
    %1023 = vmatmul.mubr.f32.gmra.mxu0 %v478
    %v1024 = vpop.f32.mrf.mxu0
    %v1025 = vadd.f32 %v880, %v1024
    %v1026 = vpop.f32.mrf.mxu0
    %1027 = vdwg.mxu0
    %v1028 = vld [vmem:[%s6] sm:$0xff]
    %vm1029 = vcmask 64512
    %v1031 = vsel %vm1029, %v214, 0
    %v1034 = vsel %vm1029, %v215, 0
    %v1037 = vsel %vm1029, %v216, 0
    %v1040 = vsel %vm1029, %v217, 0
    %v1043 = vsel %vm1029, %v218, 0
    %v1046 = vsel %vm1029, %v219, 0
    %v1049 = vsel %vm1029, %v220, 0
    %v1052 = vsel %vm1029, %v221, 0
    %v1055 = vsel %vm1029, %v222, 0
    %v1058 = vsel %vm1029, %v223, 0
    %v1061 = vsel %vm1029, %v224, 0
    %v1064 = vsel %vm1029, %v225, 0
    %v1067 = vsel %vm1029, %v226, 0
    %v1070 = vsel %vm1029, %v227, 0
    %v1073 = vsel %vm1029, %v228, 0
    %v1076 = vsel %vm1029, %v229, 0
    %1078 = vmatprep.subr.mxu0 0.0
    %1079 = vmatpush1.msra.mxu0 0.0
    %1080 = vmatprep.subr.mxu0 0.0
    %1081 = vmatpush1.msra.mxu0 0.0
    %1082 = vmatprep.subr.mxu0 0.0
    %1083 = vmatpush1.msra.mxu0 0.0
    %1084 = vmatprep.subr.mxu0 0.0
    %1085 = vmatpush1.msra.mxu0 0.0
    %1086 = vmatprep.subr.mxu0 0.0
    %1087 = vmatpush1.msra.mxu0 0.0
    %1088 = vmatprep.subr.mxu0 0.0
    %1089 = vmatpush1.msra.mxu0 0.0
    %1090 = vmatprep.subr.mxu0 0.0
    %1091 = vmatpush1.msra.mxu0 0.0
    %1092 = vmatprep.subr.mxu0 0.0
    %1093 = vmatpush1.msra.mxu0 0.0
    %1094 = vmatprep.subr.mxu0 0.0
    %1095 = vmatpush1.msra.mxu0 0.0
    %1096 = vmatprep.subr.mxu0 0.0
    %1097 = vmatpush1.msra.mxu0 0.0
    %1098 = vmatprep.subr.mxu0 0.0
    %1099 = vmatpush1.msra.mxu0 0.0
    %1100 = vmatprep.subr.mxu0 0.0
    %1101 = vmatpush1.msra.mxu0 0.0
    %1102 = vmatprep.subr.mxu0 0.0
    %1103 = vmatpush1.msra.mxu0 0.0
    %1104 = vmatprep.subr.mxu0 0.0
    %1105 = vmatpush1.msra.mxu0 0.0
    %1106 = vmatprep.subr.mxu0 0.0
    %1107 = vmatpush1.msra.mxu0 0.0
    %1108 = vmatprep.subr.mxu0 0.0
    %1109 = vmatpush1.msra.mxu0 %v1028
    %1110 = vmatprep.subr.mxu0 0.0
    %1111 = vmatpush2.msra.mxu0 0.0
    %1112 = vmatprep.subr.mxu0 0.0
    %1113 = vmatpush2.msra.mxu0 0.0
    %1114 = vmatprep.subr.mxu0 0.0
    %1115 = vmatpush2.msra.mxu0 0.0
    %1116 = vmatprep.subr.mxu0 0.0
    %1117 = vmatpush2.msra.mxu0 0.0
    %1118 = vmatprep.subr.mxu0 0.0
    %1119 = vmatpush2.msra.mxu0 0.0
    %1120 = vmatprep.subr.mxu0 0.0
    %1121 = vmatpush2.msra.mxu0 0.0
    %1122 = vmatprep.subr.mxu0 0.0
    %1123 = vmatpush2.msra.mxu0 0.0
    %1124 = vmatprep.subr.mxu0 0.0
    %1125 = vmatpush2.msra.mxu0 0.0
    %1126 = vmatprep.subr.mxu0 0.0
    %1127 = vmatpush2.msra.mxu0 0.0
    %1128 = vmatprep.subr.mxu0 0.0
    %1129 = vmatpush2.msra.mxu0 0.0
    %1130 = vmatprep.subr.mxu0 0.0
    %1131 = vmatpush2.msra.mxu0 0.0
    %1132 = vmatprep.subr.mxu0 0.0
    %1133 = vmatpush2.msra.mxu0 0.0
    %1134 = vmatprep.subr.mxu0 0.0
    %1135 = vmatpush2.msra.mxu0 0.0
    %1136 = vmatprep.subr.mxu0 0.0
    %1137 = vmatpush2.msra.mxu0 0.0
    %1138 = vmatprep.subr.mxu0 0.0
    %1139 = vmatpush2.msra.mxu0 0.0
    %1140 = vmatprep.subr.mxu0 0.0
    %1141 = vmatpush2.msra.mxu0 0.0
    %1142 = vmatprep.mubr.f32.mxu0 0.0
    %1143 = vmatmul.mubr.f32.gmra.mxu0 %v1031
    %v1144 = vpop.f32.mrf.mxu0
    %v1145 = vadd.f32 0.0, %v1144
    %v1146 = vpop.f32.mrf.mxu0
    %1147 = vmatprep.mubr.f32.mxu0 0.0
    %1148 = vmatmul.mubr.f32.gmra.mxu0 %v1034
    %v1149 = vpop.f32.mrf.mxu0
    %v1150 = vadd.f32 0.0, %v1149
    %v1151 = vpop.f32.mrf.mxu0
    %1152 = vmatprep.mubr.f32.mxu0 0.0
    %1153 = vmatmul.mubr.f32.gmra.mxu0 %v1037
    %v1154 = vpop.f32.mrf.mxu0
    %v1155 = vadd.f32 0.0, %v1154
    %v1156 = vpop.f32.mrf.mxu0
    %1157 = vmatprep.mubr.f32.mxu0 0.0
    %1158 = vmatmul.mubr.f32.gmra.mxu0 %v1040
    %v1159 = vpop.f32.mrf.mxu0
    %v1160 = vadd.f32 0.0, %v1159
    %v1161 = vpop.f32.mrf.mxu0
    %1162 = vmatprep.mubr.f32.mxu0 0.0
    %1163 = vmatmul.mubr.f32.gmra.mxu0 %v1043
    %v1164 = vpop.f32.mrf.mxu0
    %v1165 = vadd.f32 0.0, %v1164
    %v1166 = vpop.f32.mrf.mxu0
    %1167 = vmatprep.mubr.f32.mxu0 0.0
    %1168 = vmatmul.mubr.f32.gmra.mxu0 %v1046
    %v1169 = vpop.f32.mrf.mxu0
    %v1170 = vadd.f32 0.0, %v1169
    %v1171 = vpop.f32.mrf.mxu0
    %1172 = vmatprep.mubr.f32.mxu0 0.0
    %1173 = vmatmul.mubr.f32.gmra.mxu0 %v1049
    %v1174 = vpop.f32.mrf.mxu0
    %v1175 = vadd.f32 0.0, %v1174
    %v1176 = vpop.f32.mrf.mxu0
    %1177 = vmatprep.mubr.f32.mxu0 0.0
    %1178 = vmatmul.mubr.f32.gmra.mxu0 %v1052
    %v1179 = vpop.f32.mrf.mxu0
    %v1180 = vadd.f32 0.0, %v1179
    %v1181 = vpop.f32.mrf.mxu0
    %1182 = vmatprep.mubr.f32.mxu0 0.0
    %1183 = vmatmul.mubr.f32.gmra.mxu0 %v1055
    %v1184 = vpop.f32.mrf.mxu0
    %v1185 = vadd.f32 0.0, %v1184
    %v1186 = vpop.f32.mrf.mxu0
    %1187 = vmatprep.mubr.f32.mxu0 0.0
    %1188 = vmatmul.mubr.f32.gmra.mxu0 %v1058
    %v1189 = vpop.f32.mrf.mxu0
    %v1190 = vadd.f32 0.0, %v1189
    %v1191 = vpop.f32.mrf.mxu0
    %1192 = vmatprep.mubr.f32.mxu0 0.0
    %1193 = vmatmul.mubr.f32.gmra.mxu0 %v1061
    %v1194 = vpop.f32.mrf.mxu0
    %v1195 = vadd.f32 0.0, %v1194
    %v1196 = vpop.f32.mrf.mxu0
    %1197 = vmatprep.mubr.f32.mxu0 0.0
    %1198 = vmatmul.mubr.f32.gmra.mxu0 %v1064
    %v1199 = vpop.f32.mrf.mxu0
    %v1200 = vadd.f32 0.0, %v1199
    %v1201 = vpop.f32.mrf.mxu0
    %1202 = vmatprep.mubr.f32.mxu0 0.0
    %1203 = vmatmul.mubr.f32.gmra.mxu0 %v1067
    %v1204 = vpop.f32.mrf.mxu0
    %v1205 = vadd.f32 0.0, %v1204
    %v1206 = vpop.f32.mrf.mxu0
    %1207 = vmatprep.mubr.f32.mxu0 0.0
    %1208 = vmatmul.mubr.f32.gmra.mxu0 %v1070
    %v1209 = vpop.f32.mrf.mxu0
    %v1210 = vadd.f32 0.0, %v1209
    %v1211 = vpop.f32.mrf.mxu0
    %1212 = vmatprep.mubr.f32.mxu0 0.0
    %1213 = vmatmul.mubr.f32.gmra.mxu0 %v1073
    %v1214 = vpop.f32.mrf.mxu0
    %v1215 = vadd.f32 0.0, %v1214
    %v1216 = vpop.f32.mrf.mxu0
    %1217 = vmatprep.mubr.f32.mxu0 0.0
    %1218 = vmatmul.mubr.f32.gmra.mxu0 %v1076
    %v1219 = vpop.f32.mrf.mxu0
    %v1220 = vadd.f32 0.0, %v1219
    %v1221 = vpop.f32.mrf.mxu0
    %1222 = vdwg.mxu0
    %v1223 = vadd.f32 %v950, %v1145
    %v1224 = vadd.f32 %v955, %v1150
    %v1225 = vadd.f32 %v960, %v1155
    %v1226 = vadd.f32 %v965, %v1160
    %v1227 = vadd.f32 %v970, %v1165
    %v1228 = vadd.f32 %v975, %v1170
    %v1229 = vadd.f32 %v980, %v1175
    %v1230 = vadd.f32 %v985, %v1180
    %v1231 = vadd.f32 %v990, %v1185
    %v1232 = vadd.f32 %v995, %v1190
    %v1233 = vadd.f32 %v1000, %v1195
    %v1234 = vadd.f32 %v1005, %v1200
    %v1235 = vadd.f32 %v1010, %v1205
    %v1236 = vadd.f32 %v1015, %v1210
    %v1237 = vadd.f32 %v1020, %v1215
    %v1238 = vadd.f32 %v1025, %v1220
    %v1239 = vld [vmem:[%s7] sm:$0x1]
    %v1241 = vlaneseq
    %v1242 = vshrl.u32 %v1241, 7
    %v1243 = vsub.s32 0, %v1242
    %v1244 = vrot.slane %v1239, %v1243
    %v1246 = vadd.f32 %v1223, %v1244
    %v1247 = vadd.f32 %v1224, %v1244
    %v1248 = vadd.f32 %v1225, %v1244
    %v1249 = vadd.f32 %v1226, %v1244
    %v1250 = vadd.f32 %v1227, %v1244
    %v1251 = vadd.f32 %v1228, %v1244
    %v1252 = vadd.f32 %v1229, %v1244
    %v1253 = vadd.f32 %v1230, %v1244
    %v1254 = vadd.f32 %v1231, %v1244
    %v1255 = vadd.f32 %v1232, %v1244
    %v1256 = vadd.f32 %v1233, %v1244
    %v1257 = vadd.f32 %v1234, %v1244
    %v1258 = vadd.f32 %v1235, %v1244
    %v1259 = vadd.f32 %v1236, %v1244
    %v1260 = vadd.f32 %v1237, %v1244
    %v1261 = vadd.f32 %v1238, %v1244
    %v1262 = vmax.f32 %v1246, 0.0
    %v1263 = vmax.f32 %v1247, 0.0
    %v1264 = vmax.f32 %v1248, 0.0
    %v1265 = vmax.f32 %v1249, 0.0
    %v1266 = vmax.f32 %v1250, 0.0
    %v1267 = vmax.f32 %v1251, 0.0
    %v1268 = vmax.f32 %v1252, 0.0
    %v1269 = vmax.f32 %v1253, 0.0
    %v1270 = vmax.f32 %v1254, 0.0
    %v1271 = vmax.f32 %v1255, 0.0
    %v1272 = vmax.f32 %v1256, 0.0
    %v1273 = vmax.f32 %v1257, 0.0
    %v1274 = vmax.f32 %v1258, 0.0
    %v1275 = vmax.f32 %v1259, 0.0
    %v1276 = vmax.f32 %v1260, 0.0
    %v1277 = vmax.f32 %v1261, 0.0
    %v1278 = vld [vmem:[#allocation9] sm:$0xff]
    %v1279 = vld [vmem:[#allocation9 + $0x8] sm:$0xff]
    %v1280 = vld [vmem:[#allocation9 + $0x10] sm:$0xff]
    %v1281 = vld [vmem:[#allocation9 + $0x18] sm:$0xff]
    %v1282 = vld [vmem:[#allocation9 + $0x20] sm:$0xff]
    %v1283 = vld [vmem:[#allocation9 + $0x28] sm:$0xff]
    %v1284 = vld [vmem:[#allocation9 + $0x30] sm:$0xff]
    %v1285 = vld [vmem:[#allocation9 + $0x38] sm:$0xff]
    %v1286 = vld [vmem:[#allocation9 + $0x40] sm:$0xff]
    %v1287 = vld [vmem:[#allocation9 + $0x48] sm:$0xff]
    %v1288 = vld [vmem:[#allocation9 + $0x50] sm:$0xff]
    %v1289 = vld [vmem:[#allocation9 + $0x58] sm:$0xff]
    %v1290 = vld [vmem:[#allocation9 + $0x60] sm:$0xff]
    %v1291 = vld [vmem:[#allocation9 + $0x68] sm:$0xff]
    %v1292 = vld [vmem:[#allocation9 + $0x70] sm:$0xff]
    %v1293 = vld [vmem:[#allocation9 + $0x78] sm:$0xff]
    %v1294 = vld [vmem:[%s10] sm:$0x1]
    %v1296 = vlaneseq
    %v1297 = vshrl.u32 %v1296, 7
    %v1298 = vsub.s32 0, %v1297
    %v1299 = vrot.slane %v1294, %v1298
    %1301 = vmatprep.subr.mxu0 0.0
    %1302 = vmatpush1.msra.mxu0 %v1293
    %1303 = vmatprep.subr.mxu0 0.0
    %1304 = vmatpush1.msra.mxu0 %v1292
    %1305 = vmatprep.subr.mxu0 0.0
    %1306 = vmatpush1.msra.mxu0 %v1291
    %1307 = vmatprep.subr.mxu0 0.0
    %1308 = vmatpush1.msra.mxu0 %v1290
    %1309 = vmatprep.subr.mxu0 0.0
    %1310 = vmatpush1.msra.mxu0 %v1289
    %1311 = vmatprep.subr.mxu0 0.0
    %1312 = vmatpush1.msra.mxu0 %v1288
    %1313 = vmatprep.subr.mxu0 0.0
    %1314 = vmatpush1.msra.mxu0 %v1287
    %1315 = vmatprep.subr.mxu0 0.0
    %1316 = vmatpush1.msra.mxu0 %v1286
    %1317 = vmatprep.subr.mxu0 0.0
    %1318 = vmatpush1.msra.mxu0 %v1285
    %1319 = vmatprep.subr.mxu0 0.0
    %1320 = vmatpush1.msra.mxu0 %v1284
    %1321 = vmatprep.subr.mxu0 0.0
    %1322 = vmatpush1.msra.mxu0 %v1283
    %1323 = vmatprep.subr.mxu0 0.0
    %1324 = vmatpush1.msra.mxu0 %v1282
    %1325 = vmatprep.subr.mxu0 0.0
    %1326 = vmatpush1.msra.mxu0 %v1281
    %1327 = vmatprep.subr.mxu0 0.0
    %1328 = vmatpush1.msra.mxu0 %v1280
    %1329 = vmatprep.subr.mxu0 0.0
    %1330 = vmatpush1.msra.mxu0 %v1279
    %1331 = vmatprep.subr.mxu0 0.0
    %1332 = vmatpush1.msra.mxu0 %v1278
    %1333 = vmatprep.subr.mxu0 0.0
    %1334 = vmatpush2.msra.mxu0 0.0
    %1335 = vmatprep.subr.mxu0 0.0
    %1336 = vmatpush2.msra.mxu0 0.0
    %1337 = vmatprep.subr.mxu0 0.0
    %1338 = vmatpush2.msra.mxu0 0.0
    %1339 = vmatprep.subr.mxu0 0.0
    %1340 = vmatpush2.msra.mxu0 0.0
    %1341 = vmatprep.subr.mxu0 0.0
    %1342 = vmatpush2.msra.mxu0 0.0
    %1343 = vmatprep.subr.mxu0 0.0
    %1344 = vmatpush2.msra.mxu0 0.0
    %1345 = vmatprep.subr.mxu0 0.0
    %1346 = vmatpush2.msra.mxu0 0.0
    %1347 = vmatprep.subr.mxu0 0.0
    %1348 = vmatpush2.msra.mxu0 0.0
    %1349 = vmatprep.subr.mxu0 0.0
    %1350 = vmatpush2.msra.mxu0 0.0
    %1351 = vmatprep.subr.mxu0 0.0
    %1352 = vmatpush2.msra.mxu0 0.0
    %1353 = vmatprep.subr.mxu0 0.0
    %1354 = vmatpush2.msra.mxu0 0.0
    %1355 = vmatprep.subr.mxu0 0.0
    %1356 = vmatpush2.msra.mxu0 0.0
    %1357 = vmatprep.subr.mxu0 0.0
    %1358 = vmatpush2.msra.mxu0 0.0
    %1359 = vmatprep.subr.mxu0 0.0
    %1360 = vmatpush2.msra.mxu0 0.0
    %1361 = vmatprep.subr.mxu0 0.0
    %1362 = vmatpush2.msra.mxu0 0.0
    %1363 = vmatprep.subr.mxu0 0.0
    %1364 = vmatpush2.msra.mxu0 0.0
    %1365 = vmatprep.mubr.f32.mxu0 0.0
    %1366 = vmatmul.mubr.f32.gmra.mxu0 %v1262
    %v1367 = vpop.f32.mrf.mxu0
    %v1368 = vadd.f32 %v1299, %v1367
    %v1369 = vpop.f32.mrf.mxu0
    %1370 = vmatprep.mubr.f32.mxu0 0.0
    %1371 = vmatmul.mubr.f32.gmra.mxu0 %v1263
    %v1372 = vpop.f32.mrf.mxu0
    %v1373 = vadd.f32 %v1299, %v1372
    %v1374 = vpop.f32.mrf.mxu0
    %1375 = vmatprep.mubr.f32.mxu0 0.0
    %1376 = vmatmul.mubr.f32.gmra.mxu0 %v1264
    %v1377 = vpop.f32.mrf.mxu0
    %v1378 = vadd.f32 %v1299, %v1377
    %v1379 = vpop.f32.mrf.mxu0
    %1380 = vmatprep.mubr.f32.mxu0 0.0
    %1381 = vmatmul.mubr.f32.gmra.mxu0 %v1265
    %v1382 = vpop.f32.mrf.mxu0
    %v1383 = vadd.f32 %v1299, %v1382
    %v1384 = vpop.f32.mrf.mxu0
    %1385 = vmatprep.mubr.f32.mxu0 0.0
    %1386 = vmatmul.mubr.f32.gmra.mxu0 %v1266
    %v1387 = vpop.f32.mrf.mxu0
    %v1388 = vadd.f32 %v1299, %v1387
    %v1389 = vpop.f32.mrf.mxu0
    %1390 = vmatprep.mubr.f32.mxu0 0.0
    %1391 = vmatmul.mubr.f32.gmra.mxu0 %v1267
    %v1392 = vpop.f32.mrf.mxu0
    %v1393 = vadd.f32 %v1299, %v1392
    %v1394 = vpop.f32.mrf.mxu0
    %1395 = vmatprep.mubr.f32.mxu0 0.0
    %1396 = vmatmul.mubr.f32.gmra.mxu0 %v1268
    %v1397 = vpop.f32.mrf.mxu0
    %v1398 = vadd.f32 %v1299, %v1397
    %v1399 = vpop.f32.mrf.mxu0
    %1400 = vmatprep.mubr.f32.mxu0 0.0
    %1401 = vmatmul.mubr.f32.gmra.mxu0 %v1269
    %v1402 = vpop.f32.mrf.mxu0
    %v1403 = vadd.f32 %v1299, %v1402
    %v1404 = vpop.f32.mrf.mxu0
    %1405 = vmatprep.mubr.f32.mxu0 0.0
    %1406 = vmatmul.mubr.f32.gmra.mxu0 %v1270
    %v1407 = vpop.f32.mrf.mxu0
    %v1408 = vadd.f32 %v1299, %v1407
    %v1409 = vpop.f32.mrf.mxu0
    %1410 = vmatprep.mubr.f32.mxu0 0.0
    %1411 = vmatmul.mubr.f32.gmra.mxu0 %v1271
    %v1412 = vpop.f32.mrf.mxu0
    %v1413 = vadd.f32 %v1299, %v1412
    %v1414 = vpop.f32.mrf.mxu0
    %1415 = vmatprep.mubr.f32.mxu0 0.0
    %1416 = vmatmul.mubr.f32.gmra.mxu0 %v1272
    %v1417 = vpop.f32.mrf.mxu0
    %v1418 = vadd.f32 %v1299, %v1417
    %v1419 = vpop.f32.mrf.mxu0
    %1420 = vmatprep.mubr.f32.mxu0 0.0
    %1421 = vmatmul.mubr.f32.gmra.mxu0 %v1273
    %v1422 = vpop.f32.mrf.mxu0
    %v1423 = vadd.f32 %v1299, %v1422
    %v1424 = vpop.f32.mrf.mxu0
    %1425 = vmatprep.mubr.f32.mxu0 0.0
    %1426 = vmatmul.mubr.f32.gmra.mxu0 %v1274
    %v1427 = vpop.f32.mrf.mxu0
    %v1428 = vadd.f32 %v1299, %v1427
    %v1429 = vpop.f32.mrf.mxu0
    %1430 = vmatprep.mubr.f32.mxu0 0.0
    %1431 = vmatmul.mubr.f32.gmra.mxu0 %v1275
    %v1432 = vpop.f32.mrf.mxu0
    %v1433 = vadd.f32 %v1299, %v1432
    %v1434 = vpop.f32.mrf.mxu0
    %1435 = vmatprep.mubr.f32.mxu0 0.0
    %1436 = vmatmul.mubr.f32.gmra.mxu0 %v1276
    %v1437 = vpop.f32.mrf.mxu0
    %v1438 = vadd.f32 %v1299, %v1437
    %v1439 = vpop.f32.mrf.mxu0
    %1440 = vmatprep.mubr.f32.mxu0 0.0
    %1441 = vmatmul.mubr.f32.gmra.mxu0 %v1277
    %v1442 = vpop.f32.mrf.mxu0
    %v1443 = vadd.f32 %v1299, %v1442
    %v1444 = vpop.f32.mrf.mxu0
    %1445 = vdwg.mxu0
    %v1446 = vld [vmem:[%s8] sm:$0xff]
    %1447 = vmatprep.subr.mxu0 0.0
    %1448 = vmatpush1.msra.mxu0 0.0
    %1449 = vmatprep.subr.mxu0 0.0
    %1450 = vmatpush1.msra.mxu0 0.0
    %1451 = vmatprep.subr.mxu0 0.0
    %1452 = vmatpush1.msra.mxu0 0.0
    %1453 = vmatprep.subr.mxu0 0.0
    %1454 = vmatpush1.msra.mxu0 0.0
    %1455 = vmatprep.subr.mxu0 0.0
    %1456 = vmatpush1.msra.mxu0 0.0
    %1457 = vmatprep.subr.mxu0 0.0
    %1458 = vmatpush1.msra.mxu0 0.0
    %1459 = vmatprep.subr.mxu0 0.0
    %1460 = vmatpush1.msra.mxu0 0.0
    %1461 = vmatprep.subr.mxu0 0.0
    %1462 = vmatpush1.msra.mxu0 0.0
    %1463 = vmatprep.subr.mxu0 0.0
    %1464 = vmatpush1.msra.mxu0 0.0
    %1465 = vmatprep.subr.mxu0 0.0
    %1466 = vmatpush1.msra.mxu0 0.0
    %1467 = vmatprep.subr.mxu0 0.0
    %1468 = vmatpush1.msra.mxu0 0.0
    %1469 = vmatprep.subr.mxu0 0.0
    %1470 = vmatpush1.msra.mxu0 0.0
    %1471 = vmatprep.subr.mxu0 0.0
    %1472 = vmatpush1.msra.mxu0 0.0
    %1473 = vmatprep.subr.mxu0 0.0
    %1474 = vmatpush1.msra.mxu0 0.0
    %1475 = vmatprep.subr.mxu0 0.0
    %1476 = vmatpush1.msra.mxu0 0.0
    %1477 = vmatprep.subr.mxu0 0.0
    %1478 = vmatpush1.msra.mxu0 %v1446
    %1479 = vmatprep.subr.mxu0 0.0
    %1480 = vmatpush2.msra.mxu0 0.0
    %1481 = vmatprep.subr.mxu0 0.0
    %1482 = vmatpush2.msra.mxu0 0.0
    %1483 = vmatprep.subr.mxu0 0.0
    %1484 = vmatpush2.msra.mxu0 0.0
    %1485 = vmatprep.subr.mxu0 0.0
    %1486 = vmatpush2.msra.mxu0 0.0
    %1487 = vmatprep.subr.mxu0 0.0
    %1488 = vmatpush2.msra.mxu0 0.0
    %1489 = vmatprep.subr.mxu0 0.0
    %1490 = vmatpush2.msra.mxu0 0.0
    %1491 = vmatprep.subr.mxu0 0.0
    %1492 = vmatpush2.msra.mxu0 0.0
    %1493 = vmatprep.subr.mxu0 0.0
    %1494 = vmatpush2.msra.mxu0 0.0
    %1495 = vmatprep.subr.mxu0 0.0
    %1496 = vmatpush2.msra.mxu0 0.0
    %1497 = vmatprep.subr.mxu0 0.0
    %1498 = vmatpush2.msra.mxu0 0.0
    %1499 = vmatprep.subr.mxu0 0.0
    %1500 = vmatpush2.msra.mxu0 0.0
    %1501 = vmatprep.subr.mxu0 0.0
    %1502 = vmatpush2.msra.mxu0 0.0
    %1503 = vmatprep.subr.mxu0 0.0
    %1504 = vmatpush2.msra.mxu0 0.0
    %1505 = vmatprep.subr.mxu0 0.0
    %1506 = vmatpush2.msra.mxu0 0.0
    %1507 = vmatprep.subr.mxu0 0.0
    %1508 = vmatpush2.msra.mxu0 0.0
    %1509 = vmatprep.subr.mxu0 0.0
    %1510 = vmatpush2.msra.mxu0 0.0
    %1511 = vmatprep.mubr.f32.mxu0 0.0
    %1512 = vmatmul.mubr.f32.gmra.mxu0 %v1031
    %v1513 = vpop.f32.mrf.mxu0
    %v1514 = vadd.f32 0.0, %v1513
    %v1515 = vpop.f32.mrf.mxu0
    %1516 = vmatprep.mubr.f32.mxu0 0.0
    %1517 = vmatmul.mubr.f32.gmra.mxu0 %v1034
    %v1518 = vpop.f32.mrf.mxu0
    %v1519 = vadd.f32 0.0, %v1518
    %v1520 = vpop.f32.mrf.mxu0
    %1521 = vmatprep.mubr.f32.mxu0 0.0
    %1522 = vmatmul.mubr.f32.gmra.mxu0 %v1037
    %v1523 = vpop.f32.mrf.mxu0
    %v1524 = vadd.f32 0.0, %v1523
    %v1525 = vpop.f32.mrf.mxu0
    %1526 = vmatprep.mubr.f32.mxu0 0.0
    %1527 = vmatmul.mubr.f32.gmra.mxu0 %v1040
    %v1528 = vpop.f32.mrf.mxu0
    %v1529 = vadd.f32 0.0, %v1528
    %v1530 = vpop.f32.mrf.mxu0
    %1531 = vmatprep.mubr.f32.mxu0 0.0
    %1532 = vmatmul.mubr.f32.gmra.mxu0 %v1043
    %v1533 = vpop.f32.mrf.mxu0
    %v1534 = vadd.f32 0.0, %v1533
    %v1535 = vpop.f32.mrf.mxu0
    %1536 = vmatprep.mubr.f32.mxu0 0.0
    %1537 = vmatmul.mubr.f32.gmra.mxu0 %v1046
    %v1538 = vpop.f32.mrf.mxu0
    %v1539 = vadd.f32 0.0, %v1538
    %v1540 = vpop.f32.mrf.mxu0
    %1541 = vmatprep.mubr.f32.mxu0 0.0
    %1542 = vmatmul.mubr.f32.gmra.mxu0 %v1049
    %v1543 = vpop.f32.mrf.mxu0
    %v1544 = vadd.f32 0.0, %v1543
    %v1545 = vpop.f32.mrf.mxu0
    %1546 = vmatprep.mubr.f32.mxu0 0.0
    %1547 = vmatmul.mubr.f32.gmra.mxu0 %v1052
    %v1548 = vpop.f32.mrf.mxu0
    %v1549 = vadd.f32 0.0, %v1548
    %v1550 = vpop.f32.mrf.mxu0
    %1551 = vmatprep.mubr.f32.mxu0 0.0
    %1552 = vmatmul.mubr.f32.gmra.mxu0 %v1055
    %v1553 = vpop.f32.mrf.mxu0
    %v1554 = vadd.f32 0.0, %v1553
    %v1555 = vpop.f32.mrf.mxu0
    %1556 = vmatprep.mubr.f32.mxu0 0.0
    %1557 = vmatmul.mubr.f32.gmra.mxu0 %v1058
    %v1558 = vpop.f32.mrf.mxu0
    %v1559 = vadd.f32 0.0, %v1558
    %v1560 = vpop.f32.mrf.mxu0
    %1561 = vmatprep.mubr.f32.mxu0 0.0
    %1562 = vmatmul.mubr.f32.gmra.mxu0 %v1061
    %v1563 = vpop.f32.mrf.mxu0
    %v1564 = vadd.f32 0.0, %v1563
    %v1565 = vpop.f32.mrf.mxu0
    %1566 = vmatprep.mubr.f32.mxu0 0.0
    %1567 = vmatmul.mubr.f32.gmra.mxu0 %v1064
    %v1568 = vpop.f32.mrf.mxu0
    %v1569 = vadd.f32 0.0, %v1568
    %v1570 = vpop.f32.mrf.mxu0
    %1571 = vmatprep.mubr.f32.mxu0 0.0
    %1572 = vmatmul.mubr.f32.gmra.mxu0 %v1067
    %v1573 = vpop.f32.mrf.mxu0
    %v1574 = vadd.f32 0.0, %v1573
    %v1575 = vpop.f32.mrf.mxu0
    %1576 = vmatprep.mubr.f32.mxu0 0.0
    %1577 = vmatmul.mubr.f32.gmra.mxu0 %v1070
    %v1578 = vpop.f32.mrf.mxu0
    %v1579 = vadd.f32 0.0, %v1578
    %v1580 = vpop.f32.mrf.mxu0
    %1581 = vmatprep.mubr.f32.mxu0 0.0
    %1582 = vmatmul.mubr.f32.gmra.mxu0 %v1073
    %v1583 = vpop.f32.mrf.mxu0
    %v1584 = vadd.f32 0.0, %v1583
    %v1585 = vpop.f32.mrf.mxu0
    %1586 = vmatprep.mubr.f32.mxu0 0.0
    %1587 = vmatmul.mubr.f32.gmra.mxu0 %v1076
    %v1588 = vpop.f32.mrf.mxu0
    %v1589 = vadd.f32 0.0, %v1588
    %v1590 = vpop.f32.mrf.mxu0
    %1591 = vdwg.mxu0
    %v1592 = vadd.f32 %v1368, %v1514
    %v1593 = vadd.f32 %v1373, %v1519
    %v1594 = vadd.f32 %v1378, %v1524
    %v1595 = vadd.f32 %v1383, %v1529
    %v1596 = vadd.f32 %v1388, %v1534
    %v1597 = vadd.f32 %v1393, %v1539
    %v1598 = vadd.f32 %v1398, %v1544
    %v1599 = vadd.f32 %v1403, %v1549
    %v1600 = vadd.f32 %v1408, %v1554
    %v1601 = vadd.f32 %v1413, %v1559
    %v1602 = vadd.f32 %v1418, %v1564
    %v1603 = vadd.f32 %v1423, %v1569
    %v1604 = vadd.f32 %v1428, %v1574
    %v1605 = vadd.f32 %v1433, %v1579
    %v1606 = vadd.f32 %v1438, %v1584
    %v1607 = vadd.f32 %v1443, %v1589
    %1608 = vst [vmem:[#allocation20] sm:$0xff] %v1592
    %1609 = vst [vmem:[#allocation20 + $0x8] sm:$0xff] %v1593
    %1610 = vst [vmem:[#allocation20 + $0x10] sm:$0xff] %v1594
    %1611 = vst [vmem:[#allocation20 + $0x18] sm:$0xff] %v1595
    %1612 = vst [vmem:[#allocation20 + $0x20] sm:$0xff] %v1596
    %1613 = vst [vmem:[#allocation20 + $0x28] sm:$0xff] %v1597
    %1614 = vst [vmem:[#allocation20 + $0x30] sm:$0xff] %v1598
    %1615 = vst [vmem:[#allocation20 + $0x38] sm:$0xff] %v1599
    %1616 = vst [vmem:[#allocation20 + $0x40] sm:$0xff] %v1600
    %1617 = vst [vmem:[#allocation20 + $0x48] sm:$0xff] %v1601
    %1618 = vst [vmem:[#allocation20 + $0x50] sm:$0xff] %v1602
    %1619 = vst [vmem:[#allocation20 + $0x58] sm:$0xff] %v1603
    %1620 = vst [vmem:[#allocation20 + $0x60] sm:$0xff] %v1604
    %1621 = vst [vmem:[#allocation20 + $0x68] sm:$0xff] %v1605
    %1622 = vst [vmem:[#allocation20 + $0x70] sm:$0xff] %v1606
    %1623 = vst [vmem:[#allocation20 + $0x78] sm:$0xff] %v1607
    %v1624 = vld [vmem:[#allocation11] sm:$0xff]
    %v1625 = vld [vmem:[#allocation11 + $0x8] sm:$0xff]
    %v1626 = vld [vmem:[#allocation11 + $0x10] sm:$0xff]
    %v1627 = vld [vmem:[#allocation11 + $0x18] sm:$0xff]
    %v1628 = vld [vmem:[#allocation11 + $0x20] sm:$0xff]
    %v1629 = vld [vmem:[#allocation11 + $0x28] sm:$0xff]
    %v1630 = vld [vmem:[#allocation11 + $0x30] sm:$0xff]
    %v1631 = vld [vmem:[#allocation11 + $0x38] sm:$0xff]
    %v1632 = vld [vmem:[#allocation11 + $0x40] sm:$0xff]
    %v1633 = vld [vmem:[#allocation11 + $0x48] sm:$0xff]
    %v1634 = vld [vmem:[#allocation11 + $0x50] sm:$0xff]
    %v1635 = vld [vmem:[#allocation11 + $0x58] sm:$0xff]
    %v1636 = vld [vmem:[#allocation11 + $0x60] sm:$0xff]
    %v1637 = vld [vmem:[#allocation11 + $0x68] sm:$0xff]
    %v1638 = vld [vmem:[#allocation11 + $0x70] sm:$0xff]
    %v1639 = vld [vmem:[#allocation11 + $0x78] sm:$0xff]
    %v1640 = vld [vmem:[#allocation12] sm:$0xff]
    %v1641 = vld [vmem:[#allocation12 + $0x8] sm:$0xff]
    %v1642 = vld [vmem:[#allocation12 + $0x10] sm:$0xff]
    %v1643 = vld [vmem:[#allocation12 + $0x18] sm:$0xff]
    %v1644 = vld [vmem:[#allocation12 + $0x20] sm:$0xff]
    %v1645 = vld [vmem:[#allocation12 + $0x28] sm:$0xff]
    %v1646 = vld [vmem:[#allocation12 + $0x30] sm:$0xff]
    %v1647 = vld [vmem:[#allocation12 + $0x38] sm:$0xff]
    %v1648 = vld [vmem:[#allocation12 + $0x40] sm:$0xff]
    %v1649 = vld [vmem:[#allocation12 + $0x48] sm:$0xff]
    %v1650 = vld [vmem:[#allocation12 + $0x50] sm:$0xff]
    %v1651 = vld [vmem:[#allocation12 + $0x58] sm:$0xff]
    %v1652 = vld [vmem:[#allocation12 + $0x60] sm:$0xff]
    %v1653 = vld [vmem:[#allocation12 + $0x68] sm:$0xff]
    %v1654 = vld [vmem:[#allocation12 + $0x70] sm:$0xff]
    %v1655 = vld [vmem:[#allocation12 + $0x78] sm:$0xff]
    %1656 = vmatprep.subr.mxu0 0.0
    %1657 = vmatpush1.msra.mxu0 %v1655
    %1658 = vmatprep.subr.mxu0 0.0
    %1659 = vmatpush1.msra.mxu0 %v1654
    %1660 = vmatprep.subr.mxu0 0.0
    %1661 = vmatpush1.msra.mxu0 %v1653
    %1662 = vmatprep.subr.mxu0 0.0
    %1663 = vmatpush1.msra.mxu0 %v1652
    %1664 = vmatprep.subr.mxu0 0.0
    %1665 = vmatpush1.msra.mxu0 %v1651
    %1666 = vmatprep.subr.mxu0 0.0
    %1667 = vmatpush1.msra.mxu0 %v1650
    %1668 = vmatprep.subr.mxu0 0.0
    %1669 = vmatpush1.msra.mxu0 %v1649
    %1670 = vmatprep.subr.mxu0 0.0
    %1671 = vmatpush1.msra.mxu0 %v1648
    %1672 = vmatprep.subr.mxu0 0.0
    %1673 = vmatpush1.msra.mxu0 %v1647
    %1674 = vmatprep.subr.mxu0 0.0
    %1675 = vmatpush1.msra.mxu0 %v1646
    %1676 = vmatprep.subr.mxu0 0.0
    %1677 = vmatpush1.msra.mxu0 %v1645
    %1678 = vmatprep.subr.mxu0 0.0
    %1679 = vmatpush1.msra.mxu0 %v1644
    %1680 = vmatprep.subr.mxu0 0.0
    %1681 = vmatpush1.msra.mxu0 %v1643
    %1682 = vmatprep.subr.mxu0 0.0
    %1683 = vmatpush1.msra.mxu0 %v1642
    %1684 = vmatprep.subr.mxu0 0.0
    %1685 = vmatpush1.msra.mxu0 %v1641
    %1686 = vmatprep.subr.mxu0 0.0
    %1687 = vmatpush1.msra.mxu0 %v1640
    %1688 = vmatprep.subr.mxu0 0.0
    %1689 = vmatpush2.msra.mxu0 0.0
    %1690 = vmatprep.subr.mxu0 0.0
    %1691 = vmatpush2.msra.mxu0 0.0
    %1692 = vmatprep.subr.mxu0 0.0
    %1693 = vmatpush2.msra.mxu0 0.0
    %1694 = vmatprep.subr.mxu0 0.0
    %1695 = vmatpush2.msra.mxu0 0.0
    %1696 = vmatprep.subr.mxu0 0.0
    %1697 = vmatpush2.msra.mxu0 0.0
    %1698 = vmatprep.subr.mxu0 0.0
    %1699 = vmatpush2.msra.mxu0 0.0
    %1700 = vmatprep.subr.mxu0 0.0
    %1701 = vmatpush2.msra.mxu0 0.0
    %1702 = vmatprep.subr.mxu0 0.0
    %1703 = vmatpush2.msra.mxu0 0.0
    %1704 = vmatprep.subr.mxu0 0.0
    %1705 = vmatpush2.msra.mxu0 0.0
    %1706 = vmatprep.subr.mxu0 0.0
    %1707 = vmatpush2.msra.mxu0 0.0
    %1708 = vmatprep.subr.mxu0 0.0
    %1709 = vmatpush2.msra.mxu0 0.0
    %1710 = vmatprep.subr.mxu0 0.0
    %1711 = vmatpush2.msra.mxu0 0.0
    %1712 = vmatprep.subr.mxu0 0.0
    %1713 = vmatpush2.msra.mxu0 0.0
    %1714 = vmatprep.subr.mxu0 0.0
    %1715 = vmatpush2.msra.mxu0 0.0
    %1716 = vmatprep.subr.mxu0 0.0
    %1717 = vmatpush2.msra.mxu0 0.0
    %1718 = vmatprep.subr.mxu0 0.0
    %1719 = vmatpush2.msra.mxu0 0.0
    %1720 = vmatprep.mubr.f32.mxu0 0.0
    %1721 = vmatmul.mubr.f32.gmra.mxu0 %v1592
    %v1722 = vpop.f32.mrf.mxu0
    %v1723 = vadd.f32 0.0, %v1722
    %v1724 = vpop.f32.mrf.mxu0
    %1725 = vmatprep.mubr.f32.mxu0 0.0
    %1726 = vmatmul.mubr.f32.gmra.mxu0 %v1593
    %v1727 = vpop.f32.mrf.mxu0
    %v1728 = vadd.f32 0.0, %v1727
    %v1729 = vpop.f32.mrf.mxu0
    %1730 = vmatprep.mubr.f32.mxu0 0.0
    %1731 = vmatmul.mubr.f32.gmra.mxu0 %v1594
    %v1732 = vpop.f32.mrf.mxu0
    %v1733 = vadd.f32 0.0, %v1732
    %v1734 = vpop.f32.mrf.mxu0
    %1735 = vmatprep.mubr.f32.mxu0 0.0
    %1736 = vmatmul.mubr.f32.gmra.mxu0 %v1595
    %v1737 = vpop.f32.mrf.mxu0
    %v1738 = vadd.f32 0.0, %v1737
    %v1739 = vpop.f32.mrf.mxu0
    %1740 = vmatprep.mubr.f32.mxu0 0.0
    %1741 = vmatmul.mubr.f32.gmra.mxu0 %v1596
    %v1742 = vpop.f32.mrf.mxu0
    %v1743 = vadd.f32 0.0, %v1742
    %v1744 = vpop.f32.mrf.mxu0
    %1745 = vmatprep.mubr.f32.mxu0 0.0
    %1746 = vmatmul.mubr.f32.gmra.mxu0 %v1597
    %v1747 = vpop.f32.mrf.mxu0
    %v1748 = vadd.f32 0.0, %v1747
    %v1749 = vpop.f32.mrf.mxu0
    %1750 = vmatprep.mubr.f32.mxu0 0.0
    %1751 = vmatmul.mubr.f32.gmra.mxu0 %v1598
    %v1752 = vpop.f32.mrf.mxu0
    %v1753 = vadd.f32 0.0, %v1752
    %v1754 = vpop.f32.mrf.mxu0
    %1755 = vmatprep.mubr.f32.mxu0 0.0
    %1756 = vmatmul.mubr.f32.gmra.mxu0 %v1599
    %v1757 = vpop.f32.mrf.mxu0
    %v1758 = vadd.f32 0.0, %v1757
    %v1759 = vpop.f32.mrf.mxu0
    %1760 = vmatprep.mubr.f32.mxu0 0.0
    %1761 = vmatmul.mubr.f32.gmra.mxu0 %v1600
    %v1762 = vpop.f32.mrf.mxu0
    %v1763 = vadd.f32 0.0, %v1762
    %v1764 = vpop.f32.mrf.mxu0
    %1765 = vmatprep.mubr.f32.mxu0 0.0
    %1766 = vmatmul.mubr.f32.gmra.mxu0 %v1601
    %v1767 = vpop.f32.mrf.mxu0
    %v1768 = vadd.f32 0.0, %v1767
    %v1769 = vpop.f32.mrf.mxu0
    %1770 = vmatprep.mubr.f32.mxu0 0.0
    %1771 = vmatmul.mubr.f32.gmra.mxu0 %v1602
    %v1772 = vpop.f32.mrf.mxu0
    %v1773 = vadd.f32 0.0, %v1772
    %v1774 = vpop.f32.mrf.mxu0
    %1775 = vmatprep.mubr.f32.mxu0 0.0
    %1776 = vmatmul.mubr.f32.gmra.mxu0 %v1603
    %v1777 = vpop.f32.mrf.mxu0
    %v1778 = vadd.f32 0.0, %v1777
    %v1779 = vpop.f32.mrf.mxu0
    %1780 = vmatprep.mubr.f32.mxu0 0.0
    %1781 = vmatmul.mubr.f32.gmra.mxu0 %v1604
    %v1782 = vpop.f32.mrf.mxu0
    %v1783 = vadd.f32 0.0, %v1782
    %v1784 = vpop.f32.mrf.mxu0
    %1785 = vmatprep.mubr.f32.mxu0 0.0
    %1786 = vmatmul.mubr.f32.gmra.mxu0 %v1605
    %v1787 = vpop.f32.mrf.mxu0
    %v1788 = vadd.f32 0.0, %v1787
    %v1789 = vpop.f32.mrf.mxu0
    %1790 = vmatprep.mubr.f32.mxu0 0.0
    %1791 = vmatmul.mubr.f32.gmra.mxu0 %v1606
    %v1792 = vpop.f32.mrf.mxu0
    %v1793 = vadd.f32 0.0, %v1792
    %v1794 = vpop.f32.mrf.mxu0
    %1795 = vmatprep.mubr.f32.mxu0 0.0
    %1796 = vmatmul.mubr.f32.gmra.mxu0 %v1607
    %v1797 = vpop.f32.mrf.mxu0
    %v1798 = vadd.f32 0.0, %v1797
    %v1799 = vpop.f32.mrf.mxu0
    %1800 = vdwg.mxu0
    %1801 = vmatprep.subr.mxu0 0.0
    %1802 = vmatpush1.msra.mxu0 %v1639
    %1803 = vmatprep.subr.mxu0 0.0
    %1804 = vmatpush1.msra.mxu0 %v1638
    %1805 = vmatprep.subr.mxu0 0.0
    %1806 = vmatpush1.msra.mxu0 %v1637
    %1807 = vmatprep.subr.mxu0 0.0
    %1808 = vmatpush1.msra.mxu0 %v1636
    %1809 = vmatprep.subr.mxu0 0.0
    %1810 = vmatpush1.msra.mxu0 %v1635
    %1811 = vmatprep.subr.mxu0 0.0
    %1812 = vmatpush1.msra.mxu0 %v1634
    %1813 = vmatprep.subr.mxu0 0.0
    %1814 = vmatpush1.msra.mxu0 %v1633
    %1815 = vmatprep.subr.mxu0 0.0
    %1816 = vmatpush1.msra.mxu0 %v1632
    %1817 = vmatprep.subr.mxu0 0.0
    %1818 = vmatpush1.msra.mxu0 %v1631
    %1819 = vmatprep.subr.mxu0 0.0
    %1820 = vmatpush1.msra.mxu0 %v1630
    %1821 = vmatprep.subr.mxu0 0.0
    %1822 = vmatpush1.msra.mxu0 %v1629
    %1823 = vmatprep.subr.mxu0 0.0
    %1824 = vmatpush1.msra.mxu0 %v1628
    %1825 = vmatprep.subr.mxu0 0.0
    %1826 = vmatpush1.msra.mxu0 %v1627
    %1827 = vmatprep.subr.mxu0 0.0
    %1828 = vmatpush1.msra.mxu0 %v1626
    %1829 = vmatprep.subr.mxu0 0.0
    %1830 = vmatpush1.msra.mxu0 %v1625
    %1831 = vmatprep.subr.mxu0 0.0
    %1832 = vmatpush1.msra.mxu0 %v1624
    %1833 = vmatprep.subr.mxu0 0.0
    %1834 = vmatpush2.msra.mxu0 0.0
    %1835 = vmatprep.subr.mxu0 0.0
    %1836 = vmatpush2.msra.mxu0 0.0
    %1837 = vmatprep.subr.mxu0 0.0
    %1838 = vmatpush2.msra.mxu0 0.0
    %1839 = vmatprep.subr.mxu0 0.0
    %1840 = vmatpush2.msra.mxu0 0.0
    %1841 = vmatprep.subr.mxu0 0.0
    %1842 = vmatpush2.msra.mxu0 0.0
    %1843 = vmatprep.subr.mxu0 0.0
    %1844 = vmatpush2.msra.mxu0 0.0
    %1845 = vmatprep.subr.mxu0 0.0
    %1846 = vmatpush2.msra.mxu0 0.0
    %1847 = vmatprep.subr.mxu0 0.0
    %1848 = vmatpush2.msra.mxu0 0.0
    %1849 = vmatprep.subr.mxu0 0.0
    %1850 = vmatpush2.msra.mxu0 0.0
    %1851 = vmatprep.subr.mxu0 0.0
    %1852 = vmatpush2.msra.mxu0 0.0
    %1853 = vmatprep.subr.mxu0 0.0
    %1854 = vmatpush2.msra.mxu0 0.0
    %1855 = vmatprep.subr.mxu0 0.0
    %1856 = vmatpush2.msra.mxu0 0.0
    %1857 = vmatprep.subr.mxu0 0.0
    %1858 = vmatpush2.msra.mxu0 0.0
    %1859 = vmatprep.subr.mxu0 0.0
    %1860 = vmatpush2.msra.mxu0 0.0
    %1861 = vmatprep.subr.mxu0 0.0
    %1862 = vmatpush2.msra.mxu0 0.0
    %1863 = vmatprep.subr.mxu0 0.0
    %1864 = vmatpush2.msra.mxu0 0.0
    %1865 = vmatprep.mubr.f32.mxu0 0.0
    %1866 = vmatmul.mubr.f32.gmra.mxu0 %v628
    %v1867 = vpop.f32.mrf.mxu0
    %v1868 = vadd.f32 %v1723, %v1867
    %v1869 = vpop.f32.mrf.mxu0
    %1870 = vmatprep.mubr.f32.mxu0 0.0
    %1871 = vmatmul.mubr.f32.gmra.mxu0 %v633
    %v1872 = vpop.f32.mrf.mxu0
    %v1873 = vadd.f32 %v1728, %v1872
    %v1874 = vpop.f32.mrf.mxu0
    %1875 = vmatprep.mubr.f32.mxu0 0.0
    %1876 = vmatmul.mubr.f32.gmra.mxu0 %v638
    %v1877 = vpop.f32.mrf.mxu0
    %v1878 = vadd.f32 %v1733, %v1877
    %v1879 = vpop.f32.mrf.mxu0
    %1880 = vmatprep.mubr.f32.mxu0 0.0
    %1881 = vmatmul.mubr.f32.gmra.mxu0 %v643
    %v1882 = vpop.f32.mrf.mxu0
    %v1883 = vadd.f32 %v1738, %v1882
    %v1884 = vpop.f32.mrf.mxu0
    %1885 = vmatprep.mubr.f32.mxu0 0.0
    %1886 = vmatmul.mubr.f32.gmra.mxu0 %v648
    %v1887 = vpop.f32.mrf.mxu0
    %v1888 = vadd.f32 %v1743, %v1887
    %v1889 = vpop.f32.mrf.mxu0
    %1890 = vmatprep.mubr.f32.mxu0 0.0
    %1891 = vmatmul.mubr.f32.gmra.mxu0 %v653
    %v1892 = vpop.f32.mrf.mxu0
    %v1893 = vadd.f32 %v1748, %v1892
    %v1894 = vpop.f32.mrf.mxu0
    %1895 = vmatprep.mubr.f32.mxu0 0.0
    %1896 = vmatmul.mubr.f32.gmra.mxu0 %v658
    %v1897 = vpop.f32.mrf.mxu0
    %v1898 = vadd.f32 %v1753, %v1897
    %v1899 = vpop.f32.mrf.mxu0
    %1900 = vmatprep.mubr.f32.mxu0 0.0
    %1901 = vmatmul.mubr.f32.gmra.mxu0 %v663
    %v1902 = vpop.f32.mrf.mxu0
    %v1903 = vadd.f32 %v1758, %v1902
    %v1904 = vpop.f32.mrf.mxu0
    %1905 = vmatprep.mubr.f32.mxu0 0.0
    %1906 = vmatmul.mubr.f32.gmra.mxu0 %v668
    %v1907 = vpop.f32.mrf.mxu0
    %v1908 = vadd.f32 %v1763, %v1907
    %v1909 = vpop.f32.mrf.mxu0
    %1910 = vmatprep.mubr.f32.mxu0 0.0
    %1911 = vmatmul.mubr.f32.gmra.mxu0 %v673
    %v1912 = vpop.f32.mrf.mxu0
    %v1913 = vadd.f32 %v1768, %v1912
    %v1914 = vpop.f32.mrf.mxu0
    %1915 = vmatprep.mubr.f32.mxu0 0.0
    %1916 = vmatmul.mubr.f32.gmra.mxu0 %v678
    %v1917 = vpop.f32.mrf.mxu0
    %v1918 = vadd.f32 %v1773, %v1917
    %v1919 = vpop.f32.mrf.mxu0
    %1920 = vmatprep.mubr.f32.mxu0 0.0
    %1921 = vmatmul.mubr.f32.gmra.mxu0 %v683
    %v1922 = vpop.f32.mrf.mxu0
    %v1923 = vadd.f32 %v1778, %v1922
    %v1924 = vpop.f32.mrf.mxu0
    %1925 = vmatprep.mubr.f32.mxu0 0.0
    %1926 = vmatmul.mubr.f32.gmra.mxu0 %v688
    %v1927 = vpop.f32.mrf.mxu0
    %v1928 = vadd.f32 %v1783, %v1927
    %v1929 = vpop.f32.mrf.mxu0
    %1930 = vmatprep.mubr.f32.mxu0 0.0
    %1931 = vmatmul.mubr.f32.gmra.mxu0 %v693
    %v1932 = vpop.f32.mrf.mxu0
    %v1933 = vadd.f32 %v1788, %v1932
    %v1934 = vpop.f32.mrf.mxu0
    %1935 = vmatprep.mubr.f32.mxu0 0.0
    %1936 = vmatmul.mubr.f32.gmra.mxu0 %v698
    %v1937 = vpop.f32.mrf.mxu0
    %v1938 = vadd.f32 %v1793, %v1937
    %v1939 = vpop.f32.mrf.mxu0
    %1940 = vmatprep.mubr.f32.mxu0 0.0
    %1941 = vmatmul.mubr.f32.gmra.mxu0 %v703
    %v1942 = vpop.f32.mrf.mxu0
    %v1943 = vadd.f32 %v1798, %v1942
    %v1944 = vpop.f32.mrf.mxu0
    %1945 = vdwg.mxu0
    %v1946 = vld [vmem:[%s13] sm:$0x1]
    %v1948 = vlaneseq
    %v1949 = vshrl.u32 %v1948, 7
    %v1950 = vsub.s32 0, %v1949
    %v1951 = vrot.slane %v1946, %v1950
    %v1953 = vadd.f32 %v1868, %v1951
    %v1954 = vadd.f32 %v1873, %v1951
    %v1955 = vadd.f32 %v1878, %v1951
    %v1956 = vadd.f32 %v1883, %v1951
    %v1957 = vadd.f32 %v1888, %v1951
    %v1958 = vadd.f32 %v1893, %v1951
    %v1959 = vadd.f32 %v1898, %v1951
    %v1960 = vadd.f32 %v1903, %v1951
    %v1961 = vadd.f32 %v1908, %v1951
    %v1962 = vadd.f32 %v1913, %v1951
    %v1963 = vadd.f32 %v1918, %v1951
    %v1964 = vadd.f32 %v1923, %v1951
    %v1965 = vadd.f32 %v1928, %v1951
    %v1966 = vadd.f32 %v1933, %v1951
    %v1967 = vadd.f32 %v1938, %v1951
    %v1968 = vadd.f32 %v1943, %v1951
    %v1969 = vmax.f32 %v1953, 0.0
    %v1970 = vmax.f32 %v1954, 0.0
    %v1971 = vmax.f32 %v1955, 0.0
    %v1972 = vmax.f32 %v1956, 0.0
    %v1973 = vmax.f32 %v1957, 0.0
    %v1974 = vmax.f32 %v1958, 0.0
    %v1975 = vmax.f32 %v1959, 0.0
    %v1976 = vmax.f32 %v1960, 0.0
    %v1977 = vmax.f32 %v1961, 0.0
    %v1978 = vmax.f32 %v1962, 0.0
    %v1979 = vmax.f32 %v1963, 0.0
    %v1980 = vmax.f32 %v1964, 0.0
    %v1981 = vmax.f32 %v1965, 0.0
    %v1982 = vmax.f32 %v1966, 0.0
    %v1983 = vmax.f32 %v1967, 0.0
    %v1984 = vmax.f32 %v1968, 0.0
    %v1985 = vld [vmem:[#allocation14] sm:$0xff]
    %v1986 = vld [vmem:[#allocation14 + $0x8] sm:$0xff]
    %v1987 = vld [vmem:[#allocation14 + $0x10] sm:$0xff]
    %v1988 = vld [vmem:[#allocation14 + $0x18] sm:$0xff]
    %v1989 = vld [vmem:[#allocation14 + $0x20] sm:$0xff]
    %v1990 = vld [vmem:[#allocation14 + $0x28] sm:$0xff]
    %v1991 = vld [vmem:[#allocation14 + $0x30] sm:$0xff]
    %v1992 = vld [vmem:[#allocation14 + $0x38] sm:$0xff]
    %v1993 = vld [vmem:[#allocation14 + $0x40] sm:$0xff]
    %v1994 = vld [vmem:[#allocation14 + $0x48] sm:$0xff]
    %v1995 = vld [vmem:[#allocation14 + $0x50] sm:$0xff]
    %v1996 = vld [vmem:[#allocation14 + $0x58] sm:$0xff]
    %v1997 = vld [vmem:[#allocation14 + $0x60] sm:$0xff]
    %v1998 = vld [vmem:[#allocation14 + $0x68] sm:$0xff]
    %v1999 = vld [vmem:[#allocation14 + $0x70] sm:$0xff]
    %v2000 = vld [vmem:[#allocation14 + $0x78] sm:$0xff]
    %v2001 = vld [vmem:[%s15] sm:$0x1]
    %v2003 = vlaneseq
    %v2004 = vshrl.u32 %v2003, 7
    %v2005 = vsub.s32 0, %v2004
    %v2006 = vrot.slane %v2001, %v2005
    %2008 = vmatprep.subr.mxu0 0.0
    %2009 = vmatpush1.msra.mxu0 %v2000
    %2010 = vmatprep.subr.mxu0 0.0
    %2011 = vmatpush1.msra.mxu0 %v1999
    %2012 = vmatprep.subr.mxu0 0.0
    %2013 = vmatpush1.msra.mxu0 %v1998
    %2014 = vmatprep.subr.mxu0 0.0
    %2015 = vmatpush1.msra.mxu0 %v1997
    %2016 = vmatprep.subr.mxu0 0.0
    %2017 = vmatpush1.msra.mxu0 %v1996
    %2018 = vmatprep.subr.mxu0 0.0
    %2019 = vmatpush1.msra.mxu0 %v1995
    %2020 = vmatprep.subr.mxu0 0.0
    %2021 = vmatpush1.msra.mxu0 %v1994
    %2022 = vmatprep.subr.mxu0 0.0
    %2023 = vmatpush1.msra.mxu0 %v1993
    %2024 = vmatprep.subr.mxu0 0.0
    %2025 = vmatpush1.msra.mxu0 %v1992
    %2026 = vmatprep.subr.mxu0 0.0
    %2027 = vmatpush1.msra.mxu0 %v1991
    %2028 = vmatprep.subr.mxu0 0.0
    %2029 = vmatpush1.msra.mxu0 %v1990
    %2030 = vmatprep.subr.mxu0 0.0
    %2031 = vmatpush1.msra.mxu0 %v1989
    %2032 = vmatprep.subr.mxu0 0.0
    %2033 = vmatpush1.msra.mxu0 %v1988
    %2034 = vmatprep.subr.mxu0 0.0
    %2035 = vmatpush1.msra.mxu0 %v1987
    %2036 = vmatprep.subr.mxu0 0.0
    %2037 = vmatpush1.msra.mxu0 %v1986
    %2038 = vmatprep.subr.mxu0 0.0
    %2039 = vmatpush1.msra.mxu0 %v1985
    %2040 = vmatprep.subr.mxu0 0.0
    %2041 = vmatpush2.msra.mxu0 0.0
    %2042 = vmatprep.subr.mxu0 0.0
    %2043 = vmatpush2.msra.mxu0 0.0
    %2044 = vmatprep.subr.mxu0 0.0
    %2045 = vmatpush2.msra.mxu0 0.0
    %2046 = vmatprep.subr.mxu0 0.0
    %2047 = vmatpush2.msra.mxu0 0.0
    %2048 = vmatprep.subr.mxu0 0.0
    %2049 = vmatpush2.msra.mxu0 0.0
    %2050 = vmatprep.subr.mxu0 0.0
    %2051 = vmatpush2.msra.mxu0 0.0
    %2052 = vmatprep.subr.mxu0 0.0
    %2053 = vmatpush2.msra.mxu0 0.0
    %2054 = vmatprep.subr.mxu0 0.0
    %2055 = vmatpush2.msra.mxu0 0.0
    %2056 = vmatprep.subr.mxu0 0.0
    %2057 = vmatpush2.msra.mxu0 0.0
    %2058 = vmatprep.subr.mxu0 0.0
    %2059 = vmatpush2.msra.mxu0 0.0
    %2060 = vmatprep.subr.mxu0 0.0
    %2061 = vmatpush2.msra.mxu0 0.0
    %2062 = vmatprep.subr.mxu0 0.0
    %2063 = vmatpush2.msra.mxu0 0.0
    %2064 = vmatprep.subr.mxu0 0.0
    %2065 = vmatpush2.msra.mxu0 0.0
    %2066 = vmatprep.subr.mxu0 0.0
    %2067 = vmatpush2.msra.mxu0 0.0
    %2068 = vmatprep.subr.mxu0 0.0
    %2069 = vmatpush2.msra.mxu0 0.0
    %2070 = vmatprep.subr.mxu0 0.0
    %2071 = vmatpush2.msra.mxu0 0.0
    %2072 = vmatprep.mubr.f32.mxu0 0.0
    %2073 = vmatmul.mubr.f32.gmra.mxu0 %v1969
    %v2074 = vpop.f32.mrf.mxu0
    %v2075 = vadd.f32 %v2006, %v2074
    %v2076 = vpop.f32.mrf.mxu0
    %2077 = vmatprep.mubr.f32.mxu0 0.0
    %2078 = vmatmul.mubr.f32.gmra.mxu0 %v1970
    %v2079 = vpop.f32.mrf.mxu0
    %v2080 = vadd.f32 %v2006, %v2079
    %v2081 = vpop.f32.mrf.mxu0
    %2082 = vmatprep.mubr.f32.mxu0 0.0
    %2083 = vmatmul.mubr.f32.gmra.mxu0 %v1971
    %v2084 = vpop.f32.mrf.mxu0
    %v2085 = vadd.f32 %v2006, %v2084
    %v2086 = vpop.f32.mrf.mxu0
    %2087 = vmatprep.mubr.f32.mxu0 0.0
    %2088 = vmatmul.mubr.f32.gmra.mxu0 %v1972
    %v2089 = vpop.f32.mrf.mxu0
    %v2090 = vadd.f32 %v2006, %v2089
    %v2091 = vpop.f32.mrf.mxu0
    %2092 = vmatprep.mubr.f32.mxu0 0.0
    %2093 = vmatmul.mubr.f32.gmra.mxu0 %v1973
    %v2094 = vpop.f32.mrf.mxu0
    %v2095 = vadd.f32 %v2006, %v2094
    %v2096 = vpop.f32.mrf.mxu0
    %2097 = vmatprep.mubr.f32.mxu0 0.0
    %2098 = vmatmul.mubr.f32.gmra.mxu0 %v1974
    %v2099 = vpop.f32.mrf.mxu0
    %v2100 = vadd.f32 %v2006, %v2099
    %v2101 = vpop.f32.mrf.mxu0
    %2102 = vmatprep.mubr.f32.mxu0 0.0
    %2103 = vmatmul.mubr.f32.gmra.mxu0 %v1975
    %v2104 = vpop.f32.mrf.mxu0
    %v2105 = vadd.f32 %v2006, %v2104
    %v2106 = vpop.f32.mrf.mxu0
    %2107 = vmatprep.mubr.f32.mxu0 0.0
    %2108 = vmatmul.mubr.f32.gmra.mxu0 %v1976
    %v2109 = vpop.f32.mrf.mxu0
    %v2110 = vadd.f32 %v2006, %v2109
    %v2111 = vpop.f32.mrf.mxu0
    %2112 = vmatprep.mubr.f32.mxu0 0.0
    %2113 = vmatmul.mubr.f32.gmra.mxu0 %v1977
    %v2114 = vpop.f32.mrf.mxu0
    %v2115 = vadd.f32 %v2006, %v2114
    %v2116 = vpop.f32.mrf.mxu0
    %2117 = vmatprep.mubr.f32.mxu0 0.0
    %2118 = vmatmul.mubr.f32.gmra.mxu0 %v1978
    %v2119 = vpop.f32.mrf.mxu0
    %v2120 = vadd.f32 %v2006, %v2119
    %v2121 = vpop.f32.mrf.mxu0
    %2122 = vmatprep.mubr.f32.mxu0 0.0
    %2123 = vmatmul.mubr.f32.gmra.mxu0 %v1979
    %v2124 = vpop.f32.mrf.mxu0
    %v2125 = vadd.f32 %v2006, %v2124
    %v2126 = vpop.f32.mrf.mxu0
    %2127 = vmatprep.mubr.f32.mxu0 0.0
    %2128 = vmatmul.mubr.f32.gmra.mxu0 %v1980
    %v2129 = vpop.f32.mrf.mxu0
    %v2130 = vadd.f32 %v2006, %v2129
    %v2131 = vpop.f32.mrf.mxu0
    %2132 = vmatprep.mubr.f32.mxu0 0.0
    %2133 = vmatmul.mubr.f32.gmra.mxu0 %v1981
    %v2134 = vpop.f32.mrf.mxu0
    %v2135 = vadd.f32 %v2006, %v2134
    %v2136 = vpop.f32.mrf.mxu0
    %2137 = vmatprep.mubr.f32.mxu0 0.0
    %2138 = vmatmul.mubr.f32.gmra.mxu0 %v1982
    %v2139 = vpop.f32.mrf.mxu0
    %v2140 = vadd.f32 %v2006, %v2139
    %v2141 = vpop.f32.mrf.mxu0
    %2142 = vmatprep.mubr.f32.mxu0 0.0
    %2143 = vmatmul.mubr.f32.gmra.mxu0 %v1983
    %v2144 = vpop.f32.mrf.mxu0
    %v2145 = vadd.f32 %v2006, %v2144
    %v2146 = vpop.f32.mrf.mxu0
    %2147 = vmatprep.mubr.f32.mxu0 0.0
    %2148 = vmatmul.mubr.f32.gmra.mxu0 %v1984
    %v2149 = vpop.f32.mrf.mxu0
    %v2150 = vadd.f32 %v2006, %v2149
    %v2151 = vpop.f32.mrf.mxu0
    %2152 = vdwg.mxu0
    %v2153 = vlaneseq
    %v2154 = vand.u32 %v2153, 127
    %vm2155 = vcmp.eq.s32.totalorder %v2154, 32
    %v2156 = vsel %vm2155, 1, 0
    %v2157 = vcvt.s32.f32 %v2156
    %v2158 = vld [vmem:[#allocation2] sm:$0xff]
    %v2159 = vld [vmem:[#allocation2 + $0x8] sm:$0xff]
    %v2160 = vadd.f32 %v2075, %v2157
    %v2161 = vadd.f32 %v2080, %v2157
    %v2162 = vadd.f32 %v2085, %v2157
    %v2163 = vadd.f32 %v2090, %v2157
    %v2164 = vadd.f32 %v2095, %v2157
    %v2165 = vadd.f32 %v2100, %v2157
    %v2166 = vadd.f32 %v2105, %v2157
    %v2167 = vadd.f32 %v2110, %v2157
    %v2168 = vadd.f32 %v2115, %v2157
    %v2169 = vadd.f32 %v2120, %v2157
    %v2170 = vadd.f32 %v2125, %v2157
    %v2171 = vadd.f32 %v2130, %v2157
    %v2172 = vadd.f32 %v2135, %v2157
    %v2173 = vadd.f32 %v2140, %v2157
    %v2174 = vadd.f32 %v2145, %v2157
    %v2175 = vadd.f32 %v2150, %v2157
    %2176 = vmatprep.subr.mxu0 0.0
    %2177 = vmatpush1.msra.mxu0 %v2175
    %2178 = vmatprep.subr.mxu0 0.0
    %2179 = vmatpush1.msra.mxu0 %v2174
    %2180 = vmatprep.subr.mxu0 0.0
    %2181 = vmatpush1.msra.mxu0 %v2173
    %2182 = vmatprep.subr.mxu0 0.0
    %2183 = vmatpush1.msra.mxu0 %v2172
    %2184 = vmatprep.subr.mxu0 0.0
    %2185 = vmatpush1.msra.mxu0 %v2171
    %2186 = vmatprep.subr.mxu0 0.0
    %2187 = vmatpush1.msra.mxu0 %v2170
    %2188 = vmatprep.subr.mxu0 0.0
    %2189 = vmatpush1.msra.mxu0 %v2169
    %2190 = vmatprep.subr.mxu0 0.0
    %2191 = vmatpush1.msra.mxu0 %v2168
    %2192 = vmatprep.subr.mxu0 0.0
    %2193 = vmatpush1.msra.mxu0 %v2167
    %2194 = vmatprep.subr.mxu0 0.0
    %2195 = vmatpush1.msra.mxu0 %v2166
    %2196 = vmatprep.subr.mxu0 0.0
    %2197 = vmatpush1.msra.mxu0 %v2165
    %2198 = vmatprep.subr.mxu0 0.0
    %2199 = vmatpush1.msra.mxu0 %v2164
    %2200 = vmatprep.subr.mxu0 0.0
    %2201 = vmatpush1.msra.mxu0 %v2163
    %2202 = vmatprep.subr.mxu0 0.0
    %2203 = vmatpush1.msra.mxu0 %v2162
    %2204 = vmatprep.subr.mxu0 0.0
    %2205 = vmatpush1.msra.mxu0 %v2161
    %2206 = vmatprep.subr.mxu0 0.0
    %2207 = vmatpush1.msra.mxu0 %v2160
    %2208 = vmatprep.subr.mxu0 0.0
    %2209 = vmatpush2.msra.mxu0 0.0
    %2210 = vmatprep.subr.mxu0 0.0
    %2211 = vmatpush2.msra.mxu0 0.0
    %2212 = vmatprep.subr.mxu0 0.0
    %2213 = vmatpush2.msra.mxu0 0.0
    %2214 = vmatprep.subr.mxu0 0.0
    %2215 = vmatpush2.msra.mxu0 0.0
    %2216 = vmatprep.subr.mxu0 0.0
    %2217 = vmatpush2.msra.mxu0 0.0
    %2218 = vmatprep.subr.mxu0 0.0
    %2219 = vmatpush2.msra.mxu0 0.0
    %2220 = vmatprep.subr.mxu0 0.0
    %2221 = vmatpush2.msra.mxu0 0.0
    %2222 = vmatprep.subr.mxu0 0.0
    %2223 = vmatpush2.msra.mxu0 0.0
    %2224 = vmatprep.subr.mxu0 0.0
    %2225 = vmatpush2.msra.mxu0 0.0
    %2226 = vmatprep.subr.mxu0 0.0
    %2227 = vmatpush2.msra.mxu0 0.0
    %2228 = vmatprep.subr.mxu0 0.0
    %2229 = vmatpush2.msra.mxu0 0.0
    %2230 = vmatprep.subr.mxu0 0.0
    %2231 = vmatpush2.msra.mxu0 0.0
    %2232 = vmatprep.subr.mxu0 0.0
    %2233 = vmatpush2.msra.mxu0 0.0
    %2234 = vmatprep.subr.mxu0 0.0
    %2235 = vmatpush2.msra.mxu0 0.0
    %2236 = vmatprep.subr.mxu0 0.0
    %2237 = vmatpush2.msra.mxu0 0.0
    %2238 = vmatprep.subr.mxu0 0.0
    %2239 = vmatpush2.msra.mxu0 0.0
    %2240 = vmatprep.mubr.f32.mxu0 0.0
    %2241 = vmatmul.mubr.f32.gmra.mxu0 %v243
    %v2242 = vpop.f32.mrf.mxu0
    %v2243 = vadd.f32 0.0, %v2242
    %v2244 = vpop.f32.mrf.mxu0
    %2245 = vmatprep.mubr.f32.mxu0 0.0
    %2246 = vmatmul.mubr.f32.gmra.mxu0 %v244
    %v2247 = vpop.f32.mrf.mxu0
    %v2248 = vadd.f32 0.0, %v2247
    %v2249 = vpop.f32.mrf.mxu0
    %2250 = vdwg.mxu0
    %v2251 = vadd.f32 %v2158, %v2243
    %v2252 = vadd.f32 %v2159, %v2248
    %2253 = vst [vmem:[#allocation2] sm:$0xff] %v2251
    %2254 = vst [vmem:[#allocation2 + $0x8] sm:$0xff] %v2252
    // Predicated region
    $region130: #{tpu_custom_call.1} parent=1 // pred_check
      %p2255 = pneg %p206
    $region131: #{tpu_custom_call.1} parent=1 // pred_check_branch
      %2257 = sbr.rel (%p2255) target = $region133
    $region132: #{tpu_custom_call.1} parent=1 // pred_region
      %v2258 = vld [vmem:[#allocation2] sm:$0xff]
      %v2259 = vld [vmem:[#allocation2 + $0x8] sm:$0xff]
      %v2260 = vmax.f32 %v2258, 1.0
      %v2261 = vmax.f32 %v2259, 1.0
      %2263 = vset.pattern.permute.xlu0 32
      %2264 = vperm.xlu0 %2263, %v2260
      %v2265 = vpop.permute.xlu0 %2264
      %2268 = vset.pattern.permute.xlu0 32
      %2269 = vperm.xlu0 %2268, %v2261
      %v2270 = vpop.permute.xlu0 %2269
      %v2272 = vrcp.pop %v2265
      %v2273 = vmul.f32 %v2258, %v2272
      %v2274 = vrcp.pop %v2270
      %v2275 = vmul.f32 %v2259, %v2274
      %v2276 = vld [vmem:[#allocation15] sm:$0xff]
      %v2277 = vld [vmem:[#allocation15 + $0x8] sm:$0xff]
      %v2278 = vld [vmem:[#allocation15 + $0x10] sm:$0xff]
      %v2279 = vld [vmem:[#allocation15 + $0x18] sm:$0xff]
      %v2280 = vld [vmem:[#allocation15 + $0x20] sm:$0xff]
      %v2281 = vld [vmem:[#allocation15 + $0x28] sm:$0xff]
      %v2282 = vld [vmem:[#allocation15 + $0x30] sm:$0xff]
      %v2283 = vld [vmem:[#allocation15 + $0x38] sm:$0xff]
      %v2284 = vld [vmem:[#allocation15 + $0x40] sm:$0xff]
      %v2285 = vld [vmem:[#allocation15 + $0x48] sm:$0xff]
      %v2286 = vld [vmem:[#allocation15 + $0x50] sm:$0xff]
      %v2287 = vld [vmem:[#allocation15 + $0x58] sm:$0xff]
      %v2288 = vld [vmem:[#allocation15 + $0x60] sm:$0xff]
      %v2289 = vld [vmem:[#allocation15 + $0x68] sm:$0xff]
      %v2290 = vld [vmem:[#allocation15 + $0x70] sm:$0xff]
      %v2291 = vld [vmem:[#allocation15 + $0x78] sm:$0xff]
      %v2292 = vld [vmem:[#allocation17] sm:$0xff]
      %v2293 = vld [vmem:[#allocation17 + $0x8] sm:$0xff]
      %v2294 = vld [vmem:[#allocation17 + $0x10] sm:$0xff]
      %v2295 = vld [vmem:[#allocation17 + $0x18] sm:$0xff]
      %v2296 = vld [vmem:[#allocation17 + $0x20] sm:$0xff]
      %v2297 = vld [vmem:[#allocation17 + $0x28] sm:$0xff]
      %v2298 = vld [vmem:[#allocation17 + $0x30] sm:$0xff]
      %v2299 = vld [vmem:[#allocation17 + $0x38] sm:$0xff]
      %v2300 = vld [vmem:[#allocation17 + $0x40] sm:$0xff]
      %v2301 = vld [vmem:[#allocation17 + $0x48] sm:$0xff]
      %v2302 = vld [vmem:[#allocation17 + $0x50] sm:$0xff]
      %v2303 = vld [vmem:[#allocation17 + $0x58] sm:$0xff]
      %v2304 = vld [vmem:[#allocation17 + $0x60] sm:$0xff]
      %v2305 = vld [vmem:[#allocation17 + $0x68] sm:$0xff]
      %v2306 = vld [vmem:[#allocation17 + $0x70] sm:$0xff]
      %v2307 = vld [vmem:[#allocation17 + $0x78] sm:$0xff]
      %2308 = vmatprep.subr.mxu0 0.0
      %2309 = vmatpush1.msra.mxu0 %v2307
      %2310 = vmatprep.subr.mxu0 0.0
      %2311 = vmatpush1.msra.mxu0 %v2306
      %2312 = vmatprep.subr.mxu0 0.0
      %2313 = vmatpush1.msra.mxu0 %v2305
      %2314 = vmatprep.subr.mxu0 0.0
      %2315 = vmatpush1.msra.mxu0 %v2304
      %2316 = vmatprep.subr.mxu0 0.0
      %2317 = vmatpush1.msra.mxu0 %v2303
      %2318 = vmatprep.subr.mxu0 0.0
      %2319 = vmatpush1.msra.mxu0 %v2302
      %2320 = vmatprep.subr.mxu0 0.0
      %2321 = vmatpush1.msra.mxu0 %v2301
      %2322 = vmatprep.subr.mxu0 0.0
      %2323 = vmatpush1.msra.mxu0 %v2300
      %2324 = vmatprep.subr.mxu0 0.0
      %2325 = vmatpush1.msra.mxu0 %v2299
      %2326 = vmatprep.subr.mxu0 0.0
      %2327 = vmatpush1.msra.mxu0 %v2298
      %2328 = vmatprep.subr.mxu0 0.0
      %2329 = vmatpush1.msra.mxu0 %v2297
      %2330 = vmatprep.subr.mxu0 0.0
      %2331 = vmatpush1.msra.mxu0 %v2296
      %2332 = vmatprep.subr.mxu0 0.0
      %2333 = vmatpush1.msra.mxu0 %v2295
      %2334 = vmatprep.subr.mxu0 0.0
      %2335 = vmatpush1.msra.mxu0 %v2294
      %2336 = vmatprep.subr.mxu0 0.0
      %2337 = vmatpush1.msra.mxu0 %v2293
      %2338 = vmatprep.subr.mxu0 0.0
      %2339 = vmatpush1.msra.mxu0 %v2292
      %2340 = vmatprep.subr.mxu0 0.0
      %2341 = vmatpush2.msra.mxu0 0.0
      %2342 = vmatprep.subr.mxu0 0.0
      %2343 = vmatpush2.msra.mxu0 0.0
      %2344 = vmatprep.subr.mxu0 0.0
      %2345 = vmatpush2.msra.mxu0 0.0
      %2346 = vmatprep.subr.mxu0 0.0
      %2347 = vmatpush2.msra.mxu0 0.0
      %2348 = vmatprep.subr.mxu0 0.0
      %2349 = vmatpush2.msra.mxu0 0.0
      %2350 = vmatprep.subr.mxu0 0.0
      %2351 = vmatpush2.msra.mxu0 0.0
      %2352 = vmatprep.subr.mxu0 0.0
      %2353 = vmatpush2.msra.mxu0 0.0
      %2354 = vmatprep.subr.mxu0 0.0
      %2355 = vmatpush2.msra.mxu0 0.0
      %2356 = vmatprep.subr.mxu0 0.0
      %2357 = vmatpush2.msra.mxu0 0.0
      %2358 = vmatprep.subr.mxu0 0.0
      %2359 = vmatpush2.msra.mxu0 0.0
      %2360 = vmatprep.subr.mxu0 0.0
      %2361 = vmatpush2.msra.mxu0 0.0
      %2362 = vmatprep.subr.mxu0 0.0
      %2363 = vmatpush2.msra.mxu0 0.0
      %2364 = vmatprep.subr.mxu0 0.0
      %2365 = vmatpush2.msra.mxu0 0.0
      %2366 = vmatprep.subr.mxu0 0.0
      %2367 = vmatpush2.msra.mxu0 0.0
      %2368 = vmatprep.subr.mxu0 0.0
      %2369 = vmatpush2.msra.mxu0 0.0
      %2370 = vmatprep.subr.mxu0 0.0
      %2371 = vmatpush2.msra.mxu0 0.0
      %2372 = vmatprep.mubr.f32.mxu0 0.0
      %2373 = vmatmul.mubr.f32.gmra.mxu0 %v2273
      %v2374 = vpop.f32.mrf.mxu0
      %v2375 = vadd.f32 0.0, %v2374
      %v2376 = vpop.f32.mrf.mxu0
      %2377 = vmatprep.mubr.f32.mxu0 0.0
      %2378 = vmatmul.mubr.f32.gmra.mxu0 %v2275
      %v2379 = vpop.f32.mrf.mxu0
      %v2380 = vadd.f32 0.0, %v2379
      %v2381 = vpop.f32.mrf.mxu0
      %2382 = vdwg.mxu0
      %2383 = vmatprep.subr.mxu0 0.0
      %2384 = vmatpush1.msra.mxu0 %v2291
      %2385 = vmatprep.subr.mxu0 0.0
      %2386 = vmatpush1.msra.mxu0 %v2290
      %2387 = vmatprep.subr.mxu0 0.0
      %2388 = vmatpush1.msra.mxu0 %v2289
      %2389 = vmatprep.subr.mxu0 0.0
      %2390 = vmatpush1.msra.mxu0 %v2288
      %2391 = vmatprep.subr.mxu0 0.0
      %2392 = vmatpush1.msra.mxu0 %v2287
      %2393 = vmatprep.subr.mxu0 0.0
      %2394 = vmatpush1.msra.mxu0 %v2286
      %2395 = vmatprep.subr.mxu0 0.0
      %2396 = vmatpush1.msra.mxu0 %v2285
      %2397 = vmatprep.subr.mxu0 0.0
      %2398 = vmatpush1.msra.mxu0 %v2284
      %2399 = vmatprep.subr.mxu0 0.0
      %2400 = vmatpush1.msra.mxu0 %v2283
      %2401 = vmatprep.subr.mxu0 0.0
      %2402 = vmatpush1.msra.mxu0 %v2282
      %2403 = vmatprep.subr.mxu0 0.0
      %2404 = vmatpush1.msra.mxu0 %v2281
      %2405 = vmatprep.subr.mxu0 0.0
      %2406 = vmatpush1.msra.mxu0 %v2280
      %2407 = vmatprep.subr.mxu0 0.0
      %2408 = vmatpush1.msra.mxu0 %v2279
      %2409 = vmatprep.subr.mxu0 0.0
      %2410 = vmatpush1.msra.mxu0 %v2278
      %2411 = vmatprep.subr.mxu0 0.0
      %2412 = vmatpush1.msra.mxu0 %v2277
      %2413 = vmatprep.subr.mxu0 0.0
      %2414 = vmatpush1.msra.mxu0 %v2276
      %2415 = vmatprep.subr.mxu0 0.0
      %2416 = vmatpush2.msra.mxu0 0.0
      %2417 = vmatprep.subr.mxu0 0.0
      %2418 = vmatpush2.msra.mxu0 0.0
      %2419 = vmatprep.subr.mxu0 0.0
      %2420 = vmatpush2.msra.mxu0 0.0
      %2421 = vmatprep.subr.mxu0 0.0
      %2422 = vmatpush2.msra.mxu0 0.0
      %2423 = vmatprep.subr.mxu0 0.0
      %2424 = vmatpush2.msra.mxu0 0.0
      %2425 = vmatprep.subr.mxu0 0.0
      %2426 = vmatpush2.msra.mxu0 0.0
      %2427 = vmatprep.subr.mxu0 0.0
      %2428 = vmatpush2.msra.mxu0 0.0
      %2429 = vmatprep.subr.mxu0 0.0
      %2430 = vmatpush2.msra.mxu0 0.0
      %2431 = vmatprep.subr.mxu0 0.0
      %2432 = vmatpush2.msra.mxu0 0.0
      %2433 = vmatprep.subr.mxu0 0.0
      %2434 = vmatpush2.msra.mxu0 0.0
      %2435 = vmatprep.subr.mxu0 0.0
      %2436 = vmatpush2.msra.mxu0 0.0
      %2437 = vmatprep.subr.mxu0 0.0
      %2438 = vmatpush2.msra.mxu0 0.0
      %2439 = vmatprep.subr.mxu0 0.0
      %2440 = vmatpush2.msra.mxu0 0.0
      %2441 = vmatprep.subr.mxu0 0.0
      %2442 = vmatpush2.msra.mxu0 0.0
      %2443 = vmatprep.subr.mxu0 0.0
      %2444 = vmatpush2.msra.mxu0 0.0
      %2445 = vmatprep.subr.mxu0 0.0
      %2446 = vmatpush2.msra.mxu0 0.0
      %2447 = vmatprep.mubr.f32.mxu0 0.0
      %2448 = vmatmul.mubr.f32.gmra.mxu0 %v212
      %v2449 = vpop.f32.mrf.mxu0
      %v2450 = vadd.f32 %v2375, %v2449
      %v2451 = vpop.f32.mrf.mxu0
      %2452 = vmatprep.mubr.f32.mxu0 0.0
      %2453 = vmatmul.mubr.f32.gmra.mxu0 %v213
      %v2454 = vpop.f32.mrf.mxu0
      %v2455 = vadd.f32 %v2380, %v2454
      %v2456 = vpop.f32.mrf.mxu0
      %2457 = vdwg.mxu0
      %v2458 = vld [vmem:[%s18] sm:$0x1]
      %v2460 = vlaneseq
      %v2461 = vshrl.u32 %v2460, 7
      %v2462 = vsub.s32 0, %v2461
      %v2463 = vrot.slane %v2458, %v2462
      %v2465 = vadd.f32 %v2450, %v2463
      %v2466 = vadd.f32 %v2455, %v2463
      %v2467 = vmax.f32 %v2465, 0.0
      %v2468 = vmax.f32 %v2466, 0.0
      %v2469 = vld [vmem:[#allocation18] sm:$0xff]
      %v2470 = vld [vmem:[#allocation18 + $0x8] sm:$0xff]
      %v2471 = vld [vmem:[#allocation18 + $0x10] sm:$0xff]
      %v2472 = vld [vmem:[#allocation18 + $0x18] sm:$0xff]
      %v2473 = vld [vmem:[#allocation18 + $0x20] sm:$0xff]
      %v2474 = vld [vmem:[#allocation18 + $0x28] sm:$0xff]
      %v2475 = vld [vmem:[#allocation18 + $0x30] sm:$0xff]
      %v2476 = vld [vmem:[#allocation18 + $0x38] sm:$0xff]
      %v2477 = vld [vmem:[#allocation18 + $0x40] sm:$0xff]
      %v2478 = vld [vmem:[#allocation18 + $0x48] sm:$0xff]
      %v2479 = vld [vmem:[#allocation18 + $0x50] sm:$0xff]
      %v2480 = vld [vmem:[#allocation18 + $0x58] sm:$0xff]
      %v2481 = vld [vmem:[#allocation18 + $0x60] sm:$0xff]
      %v2482 = vld [vmem:[#allocation18 + $0x68] sm:$0xff]
      %v2483 = vld [vmem:[#allocation18 + $0x70] sm:$0xff]
      %v2484 = vld [vmem:[#allocation18 + $0x78] sm:$0xff]
      %v2485 = vld [vmem:[%s20] sm:$0x1]
      %v2487 = vlaneseq
      %v2488 = vshrl.u32 %v2487, 7
      %v2489 = vsub.s32 0, %v2488
      %v2490 = vrot.slane %v2485, %v2489
      %2492 = vmatprep.subr.mxu0 0.0
      %2493 = vmatpush1.msra.mxu0 %v2484
      %2494 = vmatprep.subr.mxu0 0.0
      %2495 = vmatpush1.msra.mxu0 %v2483
      %2496 = vmatprep.subr.mxu0 0.0
      %2497 = vmatpush1.msra.mxu0 %v2482
      %2498 = vmatprep.subr.mxu0 0.0
      %2499 = vmatpush1.msra.mxu0 %v2481
      %2500 = vmatprep.subr.mxu0 0.0
      %2501 = vmatpush1.msra.mxu0 %v2480
      %2502 = vmatprep.subr.mxu0 0.0
      %2503 = vmatpush1.msra.mxu0 %v2479
      %2504 = vmatprep.subr.mxu0 0.0
      %2505 = vmatpush1.msra.mxu0 %v2478
      %2506 = vmatprep.subr.mxu0 0.0
      %2507 = vmatpush1.msra.mxu0 %v2477
      %2508 = vmatprep.subr.mxu0 0.0
      %2509 = vmatpush1.msra.mxu0 %v2476
      %2510 = vmatprep.subr.mxu0 0.0
      %2511 = vmatpush1.msra.mxu0 %v2475
      %2512 = vmatprep.subr.mxu0 0.0
      %2513 = vmatpush1.msra.mxu0 %v2474
      %2514 = vmatprep.subr.mxu0 0.0
      %2515 = vmatpush1.msra.mxu0 %v2473
      %2516 = vmatprep.subr.mxu0 0.0
      %2517 = vmatpush1.msra.mxu0 %v2472
      %2518 = vmatprep.subr.mxu0 0.0
      %2519 = vmatpush1.msra.mxu0 %v2471
      %2520 = vmatprep.subr.mxu0 0.0
      %2521 = vmatpush1.msra.mxu0 %v2470
      %2522 = vmatprep.subr.mxu0 0.0
      %2523 = vmatpush1.msra.mxu0 %v2469
      %2524 = vmatprep.subr.mxu0 0.0
      %2525 = vmatpush2.msra.mxu0 0.0
      %2526 = vmatprep.subr.mxu0 0.0
      %2527 = vmatpush2.msra.mxu0 0.0
      %2528 = vmatprep.subr.mxu0 0.0
      %2529 = vmatpush2.msra.mxu0 0.0
      %2530 = vmatprep.subr.mxu0 0.0
      %2531 = vmatpush2.msra.mxu0 0.0
      %2532 = vmatprep.subr.mxu0 0.0
      %2533 = vmatpush2.msra.mxu0 0.0
      %2534 = vmatprep.subr.mxu0 0.0
      %2535 = vmatpush2.msra.mxu0 0.0
      %2536 = vmatprep.subr.mxu0 0.0
      %2537 = vmatpush2.msra.mxu0 0.0
      %2538 = vmatprep.subr.mxu0 0.0
      %2539 = vmatpush2.msra.mxu0 0.0
      %2540 = vmatprep.subr.mxu0 0.0
      %2541 = vmatpush2.msra.mxu0 0.0
      %2542 = vmatprep.subr.mxu0 0.0
      %2543 = vmatpush2.msra.mxu0 0.0
      %2544 = vmatprep.subr.mxu0 0.0
      %2545 = vmatpush2.msra.mxu0 0.0
      %2546 = vmatprep.subr.mxu0 0.0
      %2547 = vmatpush2.msra.mxu0 0.0
      %2548 = vmatprep.subr.mxu0 0.0
      %2549 = vmatpush2.msra.mxu0 0.0
      %2550 = vmatprep.subr.mxu0 0.0
      %2551 = vmatpush2.msra.mxu0 0.0
      %2552 = vmatprep.subr.mxu0 0.0
      %2553 = vmatpush2.msra.mxu0 0.0
      %2554 = vmatprep.subr.mxu0 0.0
      %2555 = vmatpush2.msra.mxu0 0.0
      %2556 = vmatprep.mubr.f32.mxu0 0.0
      %2557 = vmatmul.mubr.f32.gmra.mxu0 %v2467
      %v2558 = vpop.f32.mrf.mxu0
      %v2559 = vadd.f32 %v2490, %v2558
      %v2560 = vpop.f32.mrf.mxu0
      %2561 = vmatprep.mubr.f32.mxu0 0.0
      %2562 = vmatmul.mubr.f32.gmra.mxu0 %v2468
      %v2563 = vpop.f32.mrf.mxu0
      %v2564 = vadd.f32 %v2490, %v2563
      %v2565 = vpop.f32.mrf.mxu0
      %2566 = vdwg.mxu0
      %v2567 = vadd.f32 %v2559, %v212
      %v2568 = vadd.f32 %v2564, %v213
      %2569 = vst [vmem:[#allocation21] sm:$0xff] %v2567
      %2570 = vst [vmem:[#allocation21 + $0x8] sm:$0xff] %v2568
    $region133: #{tpu_custom_call.1} parent=1 // pred_fallthru
      _
    // Predicated region
    $region134: #{tpu_custom_call.1} parent=1 // pred_check
      _
    $region135: #{tpu_custom_call.1} parent=1 // pred_check_branch
      %2572 = sbr.rel (0) target = $region137
    $region136: #{tpu_custom_call.1} parent=1 // pred_region
      %s2574 = ssub.s32 2048, 2048
      %2575 = vsyncadd [#allocation5], %s2574
      %s2576 = sshll.u32 [#allocation20], 4
      %s2577 = int_to_ptr.vmem [resolvable:$true] %s2576
      %2582 = dma.vmem_to_hbm [thread:$0]  %s2577, 2048, %s21, [#allocation5], 128, 128, 8
    $region137: #{tpu_custom_call.1} parent=1 // pred_fallthru
      _
    // Predicated region
    $region138: #{tpu_custom_call.1} parent=1 // pred_check
      _
    $region139: #{tpu_custom_call.1} parent=1 // pred_check_branch
      %2584 = sbr.rel (0) target = $region141
    $region140: #{tpu_custom_call.1} parent=1 // pred_region
      %s2586 = ssub.s32 256, 256
      %2587 = vsyncadd [#allocation22], %s2586
      %s2588 = sshll.u32 [#allocation21], 4
      %s2589 = int_to_ptr.vmem [resolvable:$true] %s2588
      %2594 = dma.vmem_to_hbm [thread:$0]  %s2589, 256, %s22, [#allocation22], 128, 128, 8
    $region141: #{tpu_custom_call.1} parent=1 // pred_fallthru
      _
    // Predicated region
    $region142: #{tpu_custom_call.1} parent=1 // pred_check
      _
    $region143: #{tpu_custom_call.1} parent=1 // pred_check_branch
      %2596 = sbr.rel (0) target = $region145
    $region144: #{tpu_custom_call.1} parent=1 // pred_region
      %2597 = dma.done [#allocation5], 2048
    $region145: #{tpu_custom_call.1} parent=1 // pred_fallthru
      _
    // Predicated region
    $region146: #{tpu_custom_call.1} parent=1 // pred_check
      _
    $region147: #{tpu_custom_call.1} parent=1 // pred_check_branch
      %2599 = sbr.rel (0) target = $region149
    $region148: #{tpu_custom_call.1} parent=1 // pred_region
      %2600 = dma.done [#allocation22], 256
    $region149: #{tpu_custom_call.1} parent=1 // pred_fallthru
      _
    %2601 = vsyncpa [#allocation4], 1
    %2602 = vsyncpa [#allocation7], 1
    %2603 = vsyncpa [#allocation10], 1
    %2604 = vsyncpa [#allocation13], 1
    %2605 = vsyncpa [#allocation16], 1
    %2606 = vsyncpa [#allocation19], 1
    %2607 = vsyncpa [#allocation5], 1
    %2608 = vsyncpa [#allocation22], 1

// kernel: tpu_custom_call.1
$region0: #{tpu_custom_call.1}
  #allocation0 [shape = 'u32[]', space=smem, size = 0x4, offset = 0x4, fixed_abs, tag = 'smem constant byte address 0x4 - core index']
  #allocation1 [shape = 'u32[144,128]{1,0:T(1,128)}', space=vmem, size = 0x12000, scoped, tag = 'internal scratch']
  #allocation2 [shape = 'f32[16,128]{1,0:T(8,128)}', space=vmem, size = 0x2000, scoped, tag = 'scratch operand']
  %s0 = inlined_call_operand.vmem [shape: s32[1,128], index: 0, kind: input, shape index: {}]
  %s1 = inlined_call_operand.hbm [shape: s32[1,128], index: 1, kind: input, shape index: {}]
  %s2 = inlined_call_operand.hbm [shape: f32[16,128], index: 2, kind: input, shape index: {}]
  %s3 = inlined_call_operand.vmem [shape: f32[128,8], index: 3, kind: input, shape index: {}]
  %s4 = inlined_call_operand.vmem [shape: f32[128,128], index: 4, kind: input, shape index: {}]
  %s5 = inlined_call_operand.hbm [shape: f32[128,128], index: 5, kind: input, shape index: {}]
  %s6 = inlined_call_operand.vmem [shape: f32[8,128], index: 6, kind: input, shape index: {}]
  %s7 = inlined_call_operand.vmem [shape: f32[1,128], index: 7, kind: input, shape index: {}]
  %s8 = inlined_call_operand.vmem [shape: f32[8,128], index: 8, kind: input, shape index: {}]
  %s9 = inlined_call_operand.hbm [shape: f32[128,128], index: 9, kind: input, shape index: {}]
  %s10 = inlined_call_operand.vmem [shape: f32[1,128], index: 10, kind: input, shape index: {}]
  %s11 = inlined_call_operand.hbm [shape: f32[128,128], index: 11, kind: input, shape index: {}]
  %s12 = inlined_call_operand.hbm [shape: f32[128,128], index: 12, kind: input, shape index: {}]
  %s13 = inlined_call_operand.vmem [shape: f32[1,128], index: 13, kind: input, shape index: {}]
  %s14 = inlined_call_operand.hbm [shape: f32[128,128], index: 14, kind: input, shape index: {}]
  %s15 = inlined_call_operand.vmem [shape: f32[1,128], index: 15, kind: input, shape index: {}]
  %s16 = inlined_call_operand.hbm [shape: f32[128,128], index: 16, kind: input, shape index: {}]
  %s17 = inlined_call_operand.hbm [shape: f32[128,128], index: 17, kind: input, shape index: {}]
  %s18 = inlined_call_operand.vmem [shape: f32[1,128], index: 18, kind: input, shape index: {}]
  %s19 = inlined_call_operand.hbm [shape: f32[128,128], index: 19, kind: input, shape index: {}]
  %s20 = inlined_call_operand.vmem [shape: f32[1,128], index: 20, kind: input, shape index: {}]
  %s21 = inlined_call_operand.hbm [shape: f32[128,128], index: 21, kind: output, shape index: {0}]
  %s22 = inlined_call_operand.hbm [shape: f32[16,128], index: 22, kind: output, shape index: {1}]
  %23 = xla_tuple %s21, %s22
  %s24 = sld [smem:[#allocation0]]
  $region150: #{tpu_custom_call.1} parent=0
    _
  %s26 = ssub.s32 1, %s24
  %s27 = scalar_select 0, %s26, %s24
  $region1: #{tpu_custom_call.1} parent=0
    #allocation3 [shape = 'u8[512]{0}', space=vmem, size = 0x400, scoped, tag = 'input window, operand 1, single buffered']
    #allocation4 [shape = 's32[1]{0}', space=sflag, size = 0x4, scoped, tag = 'scoped memory for tpu_custom_call.1']
    #allocation5 [shape = 's32[1]{0}', space=sflag, size = 0x4, scoped, tag = 'scoped memory for tpu_custom_call.1']
    #allocation6 [shape = 'u8[8192]{0}', space=vmem, size = 0x2000, scoped, tag = 'input window, operand 2, single buffered']
    #allocation7 [shape = 's32[1]{0}', space=sflag, size = 0x4, scoped, tag = 'scoped memory for tpu_custom_call.1']
    #allocation8 [shape = 'u8[65536]{0}', space=vmem, size = 0x10000, scoped, tag = 'input window, operand 5, single buffered']
    #allocation9 [shape = 'u8[65536]{0}', space=vmem, size = 0x10000, scoped, tag = 'input window, operand 9, single buffered']
    #allocation10 [shape = 's32[1]{0}', space=sflag, size = 0x4, scoped, tag = 'scoped memory for tpu_custom_call.1']
    #allocation11 [shape = 'u8[65536]{0}', space=vmem, size = 0x10000, scoped, tag = 'input window, operand 11, single buffered']
    #allocation12 [shape = 'u8[65536]{0}', space=vmem, size = 0x10000, scoped, tag = 'input window, operand 12, single buffered']
    #allocation13 [shape = 's32[1]{0}', space=sflag, size = 0x4, scoped, tag = 'scoped memory for tpu_custom_call.1']
    #allocation14 [shape = 'u8[65536]{0}', space=vmem, size = 0x10000, scoped, tag = 'input window, operand 14, single buffered']
    #allocation15 [shape = 'u8[65536]{0}', space=vmem, size = 0x10000, scoped, tag = 'input window, operand 16, single buffered']
    #allocation16 [shape = 's32[1]{0}', space=sflag, size = 0x4, scoped, tag = 'scoped memory for tpu_custom_call.1']
    #allocation17 [shape = 'u8[65536]{0}', space=vmem, size = 0x10000, scoped, tag = 'input window, operand 17, single buffered']
    #allocation18 [shape = 'u8[65536]{0}', space=vmem, size = 0x10000, scoped, tag = 'input window, operand 19, single buffered']
    #allocation19 [shape = 's32[1]{0}', space=sflag, size = 0x4, scoped, tag = 'scoped memory for tpu_custom_call.1']
    #allocation20 [shape = 'u8[65536]{0}', space=vmem, size = 0x10000, scoped, tag = 'output window, operand 0, single buffered']
    #allocation21 [shape = 'u8[8192]{0}', space=vmem, size = 0x2000, scoped, tag = 'output window, operand 1, single buffered']
    #allocation22 [shape = 's32[1]{0}', space=sflag, size = 0x4, scoped, tag = 'scoped memory for tpu_custom_call.1']
    %28 = vsyncpa [#allocation4], 0
    %29 = vsyncpa [#allocation7], 0
    %30 = vsyncpa [#allocation10], 0
    %31 = vsyncpa [#allocation13], 0
    %32 = vsyncpa [#allocation16], 0
    %33 = vsyncpa [#allocation19], 0
    %34 = vsyncpa [#allocation5], 0
    %35 = vsyncpa [#allocation22], 0
    // Predicated region
    $region2: #{tpu_custom_call.1} parent=1 // pred_check
      _
    $region3: #{tpu_custom_call.1} parent=1 // pred_check_branch
      %37 = sbr.rel (0) target = $region5
    $region4: #{tpu_custom_call.1} parent=1 // pred_region
      _
    $region5: #{tpu_custom_call.1} parent=1 // pred_fallthru
      _
    // Predicated region
    $region6: #{tpu_custom_call.1} parent=1 // pred_check
      _
    $region7: #{tpu_custom_call.1} parent=1 // pred_check_branch
      %39 = sbr.rel (0) target = $region9
    $region8: #{tpu_custom_call.1} parent=1 // pred_region
      %s41 = ssub.s32 16, 16
      %42 = vsyncadd [#allocation4], %s41
      %s44 = sshll.u32 [#allocation3], 4
      %s45 = int_to_ptr.vmem [resolvable:$true] %s44
      %47 = dma.hbm_to_vmem [thread:$0]  %s1, 16, %s45, [#allocation4]
    $region9: #{tpu_custom_call.1} parent=1 // pred_fallthru
      _
    // Predicated region
    $region10: #{tpu_custom_call.1} parent=1 // pred_check
      _
    $region11: #{tpu_custom_call.1} parent=1 // pred_check_branch
      %49 = sbr.rel (0) target = $region13
    $region12: #{tpu_custom_call.1} parent=1 // pred_region
      %s51 = ssub.s32 256, 256
      %52 = vsyncadd [#allocation7], %s51
      %s53 = sshll.u32 [#allocation6], 4
      %s54 = int_to_ptr.vmem [resolvable:$true] %s53
      %59 = dma.hbm_to_vmem [thread:$0]  %s2, 256, %s54, [#allocation7], 128, 128, 8
    $region13: #{tpu_custom_call.1} parent=1 // pred_fallthru
      _
    // Predicated region
    $region14: #{tpu_custom_call.1} parent=1 // pred_check
      _
    $region15: #{tpu_custom_call.1} parent=1 // pred_check_branch
      %61 = sbr.rel (0) target = $region17
    $region16: #{tpu_custom_call.1} parent=1 // pred_region
      _
    $region17: #{tpu_custom_call.1} parent=1 // pred_fallthru
      _
    // Predicated region
    $region18: #{tpu_custom_call.1} parent=1 // pred_check
      _
    $region19: #{tpu_custom_call.1} parent=1 // pred_check_branch
      %63 = sbr.rel (0) target = $region21
    $region20: #{tpu_custom_call.1} parent=1 // pred_region
      _
    $region21: #{tpu_custom_call.1} parent=1 // pred_fallthru
      _
    // Predicated region
    $region22: #{tpu_custom_call.1} parent=1 // pred_check
      _
    $region23: #{tpu_custom_call.1} parent=1 // pred_check_branch
      %65 = sbr.rel (0) target = $region25
    $region24: #{tpu_custom_call.1} parent=1 // pred_region
      %s67 = ssub.s32 2048, 2048
      %68 = vsyncadd [#allocation7], %s67
      %s69 = sshll.u32 [#allocation8], 4
      %s70 = int_to_ptr.vmem [resolvable:$true] %s69
      %75 = dma.hbm_to_vmem [thread:$0]  %s5, 2048, %s70, [#allocation7], 128, 128, 8
    $region25: #{tpu_custom_call.1} parent=1 // pred_fallthru
      _
    // Predicated region
    $region26: #{tpu_custom_call.1} parent=1 // pred_check
      _
    $region27: #{tpu_custom_call.1} parent=1 // pred_check_branch
      %77 = sbr.rel (0) target = $region29
    $region28: #{tpu_custom_call.1} parent=1 // pred_region
      _
    $region29: #{tpu_custom_call.1} parent=1 // pred_fallthru
      _
    // Predicated region
    $region30: #{tpu_custom_call.1} parent=1 // pred_check
      _
    $region31: #{tpu_custom_call.1} parent=1 // pred_check_branch
      %79 = sbr.rel (0) target = $region33
    $region32: #{tpu_custom_call.1} parent=1 // pred_region
      _
    $region33: #{tpu_custom_call.1} parent=1 // pred_fallthru
      _
    // Predicated region
    $region34: #{tpu_custom_call.1} parent=1 // pred_check
      _
    $region35: #{tpu_custom_call.1} parent=1 // pred_check_branch
      %81 = sbr.rel (0) target = $region37
    $region36: #{tpu_custom_call.1} parent=1 // pred_region
      _
    $region37: #{tpu_custom_call.1} parent=1 // pred_fallthru
      _
    // Predicated region
    $region38: #{tpu_custom_call.1} parent=1 // pred_check
      _
    $region39: #{tpu_custom_call.1} parent=1 // pred_check_branch
      %83 = sbr.rel (0) target = $region41
    $region40: #{tpu_custom_call.1} parent=1 // pred_region
      %s85 = ssub.s32 2048, 2048
      %86 = vsyncadd [#allocation10], %s85
      %s87 = sshll.u32 [#allocation9], 4
      %s88 = int_to_ptr.vmem [resolvable:$true] %s87
      %93 = dma.hbm_to_vmem [thread:$0]  %s9, 2048, %s88, [#allocation10], 128, 128, 8
    $region41: #{tpu_custom_call.1} parent=1 // pred_fallthru
      _
    // Predicated region
    $region42: #{tpu_custom_call.1} parent=1 // pred_check
      _
    $region43: #{tpu_custom_call.1} parent=1 // pred_check_branch
      %95 = sbr.rel (0) target = $region45
    $region44: #{tpu_custom_call.1} parent=1 // pred_region
      _
    $region45: #{tpu_custom_call.1} parent=1 // pred_fallthru
      _
    // Predicated region
    $region46: #{tpu_custom_call.1} parent=1 // pred_check
      _
    $region47: #{tpu_custom_call.1} parent=1 // pred_check_branch
      %97 = sbr.rel (0) target = $region49
    $region48: #{tpu_custom_call.1} parent=1 // pred_region
      %s99 = ssub.s32 2048, 2048
      %100 = vsyncadd [#allocation10], %s99
      %s101 = sshll.u32 [#allocation11], 4
      %s102 = int_to_ptr.vmem [resolvable:$true] %s101
      %107 = dma.hbm_to_vmem [thread:$0]  %s11, 2048, %s102, [#allocation10], 128, 128, 8
    $region49: #{tpu_custom_call.1} parent=1 // pred_fallthru
      _
    // Predicated region
    $region50: #{tpu_custom_call.1} parent=1 // pred_check
      _
    $region51: #{tpu_custom_call.1} parent=1 // pred_check_branch
      %109 = sbr.rel (0) target = $region53
    $region52: #{tpu_custom_call.1} parent=1 // pred_region
      %s111 = ssub.s32 2048, 2048
      %112 = vsyncadd [#allocation13], %s111
      %s113 = sshll.u32 [#allocation12], 4
      %s114 = int_to_ptr.vmem [resolvable:$true] %s113
      %119 = dma.hbm_to_vmem [thread:$0]  %s12, 2048, %s114, [#allocation13], 128, 128, 8
    $region53: #{tpu_custom_call.1} parent=1 // pred_fallthru
      _
    // Predicated region
    $region54: #{tpu_custom_call.1} parent=1 // pred_check
      _
    $region55: #{tpu_custom_call.1} parent=1 // pred_check_branch
      %121 = sbr.rel (0) target = $region57
    $region56: #{tpu_custom_call.1} parent=1 // pred_region
      _
    $region57: #{tpu_custom_call.1} parent=1 // pred_fallthru
      _
    // Predicated region
    $region58: #{tpu_custom_call.1} parent=1 // pred_check
      _
    $region59: #{tpu_custom_call.1} parent=1 // pred_check_branch
      %123 = sbr.rel (0) target = $region61
    $region60: #{tpu_custom_call.1} parent=1 // pred_region
      %s125 = ssub.s32 2048, 2048
      %126 = vsyncadd [#allocation13], %s125
      %s127 = sshll.u32 [#allocation14], 4
      %s128 = int_to_ptr.vmem [resolvable:$true] %s127
      %133 = dma.hbm_to_vmem [thread:$0]  %s14, 2048, %s128, [#allocation13], 128, 128, 8
    $region61: #{tpu_custom_call.1} parent=1 // pred_fallthru
      _
    // Predicated region
    $region62: #{tpu_custom_call.1} parent=1 // pred_check
      _
    $region63: #{tpu_custom_call.1} parent=1 // pred_check_branch
      %135 = sbr.rel (0) target = $region65
    $region64: #{tpu_custom_call.1} parent=1 // pred_region
      _
    $region65: #{tpu_custom_call.1} parent=1 // pred_fallthru
      _
    // Predicated region
    $region66: #{tpu_custom_call.1} parent=1 // pred_check
      _
    $region67: #{tpu_custom_call.1} parent=1 // pred_check_branch
      %137 = sbr.rel (0) target = $region69
    $region68: #{tpu_custom_call.1} parent=1 // pred_region
      %s139 = ssub.s32 2048, 2048
      %140 = vsyncadd [#allocation16], %s139
      %s141 = sshll.u32 [#allocation15], 4
      %s142 = int_to_ptr.vmem [resolvable:$true] %s141
      %147 = dma.hbm_to_vmem [thread:$0]  %s16, 2048, %s142, [#allocation16], 128, 128, 8
    $region69: #{tpu_custom_call.1} parent=1 // pred_fallthru
      _
    // Predicated region
    $region70: #{tpu_custom_call.1} parent=1 // pred_check
      _
    $region71: #{tpu_custom_call.1} parent=1 // pred_check_branch
      %149 = sbr.rel (0) target = $region73
    $region72: #{tpu_custom_call.1} parent=1 // pred_region
      %s151 = ssub.s32 2048, 2048
      %152 = vsyncadd [#allocation16], %s151
      %s153 = sshll.u32 [#allocation17], 4
      %s154 = int_to_ptr.vmem [resolvable:$true] %s153
      %159 = dma.hbm_to_vmem [thread:$0]  %s17, 2048, %s154, [#allocation16], 128, 128, 8
    $region73: #{tpu_custom_call.1} parent=1 // pred_fallthru
      _
    // Predicated region
    $region74: #{tpu_custom_call.1} parent=1 // pred_check
      _
    $region75: #{tpu_custom_call.1} parent=1 // pred_check_branch
      %161 = sbr.rel (0) target = $region77
    $region76: #{tpu_custom_call.1} parent=1 // pred_region
      _
    $region77: #{tpu_custom_call.1} parent=1 // pred_fallthru
      _
    // Predicated region
    $region78: #{tpu_custom_call.1} parent=1 // pred_check
      _
    $region79: #{tpu_custom_call.1} parent=1 // pred_check_branch
      %163 = sbr.rel (0) target = $region81
    $region80: #{tpu_custom_call.1} parent=1 // pred_region
      %s165 = ssub.s32 2048, 2048
      %166 = vsyncadd [#allocation19], %s165
      %s167 = sshll.u32 [#allocation18], 4
      %s168 = int_to_ptr.vmem [resolvable:$true] %s167
      %173 = dma.hbm_to_vmem [thread:$0]  %s19, 2048, %s168, [#allocation19], 128, 128, 8
    $region81: #{tpu_custom_call.1} parent=1 // pred_fallthru
      _
    // Predicated region
    $region82: #{tpu_custom_call.1} parent=1 // pred_check
      _
    $region83: #{tpu_custom_call.1} parent=1 // pred_check_branch
      %175 = sbr.rel (0) target = $region85
    $region84: #{tpu_custom_call.1} parent=1 // pred_region
      _
    $region85: #{tpu_custom_call.1} parent=1 // pred_fallthru
      _
    // Predicated region
    $region86: #{tpu_custom_call.1} parent=1 // pred_check
      _
    $region87: #{tpu_custom_call.1} parent=1 // pred_check_branch
      %177 = sbr.rel (0) target = $region89
    $region88: #{tpu_custom_call.1} parent=1 // pred_region
      %178 = dma.done [#allocation4], 16
    $region89: #{tpu_custom_call.1} parent=1 // pred_fallthru
      _
    // Predicated region
    $region90: #{tpu_custom_call.1} parent=1 // pred_check
      _
    $region91: #{tpu_custom_call.1} parent=1 // pred_check_branch
      %180 = sbr.rel (0) target = $region93
    $region92: #{tpu_custom_call.1} parent=1 // pred_region
      %181 = dma.done [#allocation7], 256
    $region93: #{tpu_custom_call.1} parent=1 // pred_fallthru
      _
    // Predicated region
    $region94: #{tpu_custom_call.1} parent=1 // pred_check
      _
    $region95: #{tpu_custom_call.1} parent=1 // pred_check_branch
      %183 = sbr.rel (0) target = $region97
    $region96: #{tpu_custom_call.1} parent=1 // pred_region
      %184 = dma.done [#allocation7], 2048
    $region97: #{tpu_custom_call.1} parent=1 // pred_fallthru
      _
    // Predicated region
    $region98: #{tpu_custom_call.1} parent=1 // pred_check
      _
    $region99: #{tpu_custom_call.1} parent=1 // pred_check_branch
      %186 = sbr.rel (0) target = $region101
    $region100: #{tpu_custom_call.1} parent=1 // pred_region
      %187 = dma.done [#allocation10], 2048
    $region101: #{tpu_custom_call.1} parent=1 // pred_fallthru
      _
    // Predicated region
    $region102: #{tpu_custom_call.1} parent=1 // pred_check
      _
    $region103: #{tpu_custom_call.1} parent=1 // pred_check_branch
      %189 = sbr.rel (0) target = $region105
    $region104: #{tpu_custom_call.1} parent=1 // pred_region
      %190 = dma.done [#allocation10], 2048
    $region105: #{tpu_custom_call.1} parent=1 // pred_fallthru
      _
    // Predicated region
    $region106: #{tpu_custom_call.1} parent=1 // pred_check
      _
    $region107: #{tpu_custom_call.1} parent=1 // pred_check_branch
      %192 = sbr.rel (0) target = $region109
    $region108: #{tpu_custom_call.1} parent=1 // pred_region
      %193 = dma.done [#allocation13], 2048
    $region109: #{tpu_custom_call.1} parent=1 // pred_fallthru
      _
    // Predicated region
    $region110: #{tpu_custom_call.1} parent=1 // pred_check
      _
    $region111: #{tpu_custom_call.1} parent=1 // pred_check_branch
      %195 = sbr.rel (0) target = $region113
    $region112: #{tpu_custom_call.1} parent=1 // pred_region
      %196 = dma.done [#allocation13], 2048
    $region113: #{tpu_custom_call.1} parent=1 // pred_fallthru
      _
    // Predicated region
    $region114: #{tpu_custom_call.1} parent=1 // pred_check
      _
    $region115: #{tpu_custom_call.1} parent=1 // pred_check_branch
      %198 = sbr.rel (0) target = $region117
    $region116: #{tpu_custom_call.1} parent=1 // pred_region
      %199 = dma.done [#allocation16], 2048
    $region117: #{tpu_custom_call.1} parent=1 // pred_fallthru
      _
    // Predicated region
    $region118: #{tpu_custom_call.1} parent=1 // pred_check
      _
    $region119: #{tpu_custom_call.1} parent=1 // pred_check_branch
      %201 = sbr.rel (0) target = $region121
    $region120: #{tpu_custom_call.1} parent=1 // pred_region
      %202 = dma.done [#allocation16], 2048
    $region121: #{tpu_custom_call.1} parent=1 // pred_fallthru
      _
    // Predicated region
    $region122: #{tpu_custom_call.1} parent=1 // pred_check
      _
    $region123: #{tpu_custom_call.1} parent=1 // pred_check_branch
      %204 = sbr.rel (0) target = $region125
    $region124: #{tpu_custom_call.1} parent=1 // pred_region
      %205 = dma.done [#allocation19], 2048
    $region125: #{tpu_custom_call.1} parent=1 // pred_fallthru
      _
    %p206 = scmp.eq.s32.totalorder 0, 0
    // Predicated region
    $region126: #{tpu_custom_call.1} parent=1 // pred_check
      %p207 = pneg %p206
    $region127: #{tpu_custom_call.1} parent=1 // pred_check_branch
      %209 = sbr.rel (%p207) target = $region129
    $region128: #{tpu_custom_call.1} parent=1 // pred_region
      %210 = vst [vmem:[#allocation2] sm:$0xff] 0.0
      %211 = vst [vmem:[#allocation2 + $0x8] sm:$0xff] 0.0
    $region129: #{tpu_custom_call.1} parent=1 // pred_fallthru
      _
    %v212 = vld [vmem:[#allocation6] sm:$0xff]
    %v213 = vld [vmem:[#allocation6 + $0x8] sm:$0xff]
    %v214 = vld [vmem:[%s3] sm:$0xff]
    %v215 = vld [vmem:[%s3 + $0x8] sm:$0xff]
    %v216 = vld [vmem:[%s3 + $0x10] sm:$0xff]
    %v217 = vld [vmem:[%s3 + $0x18] sm:$0xff]
    %v218 = vld [vmem:[%s3 + $0x20] sm:$0xff]
    %v219 = vld [vmem:[%s3 + $0x28] sm:$0xff]
    %v220 = vld [vmem:[%s3 + $0x30] sm:$0xff]
    %v221 = vld [vmem:[%s3 + $0x38] sm:$0xff]
    %v222 = vld [vmem:[%s3 + $0x40] sm:$0xff]
    %v223 = vld [vmem:[%s3 + $0x48] sm:$0xff]
    %v224 = vld [vmem:[%s3 + $0x50] sm:$0xff]
    %v225 = vld [vmem:[%s3 + $0x58] sm:$0xff]
    %v226 = vld [vmem:[%s3 + $0x60] sm:$0xff]
    %v227 = vld [vmem:[%s3 + $0x68] sm:$0xff]
    %v228 = vld [vmem:[%s3 + $0x70] sm:$0xff]
    %v229 = vld [vmem:[%s3 + $0x78] sm:$0xff]
    %v230 = vld [vmem:[%s0] sm:$0x1]
    %v231 = vld [vmem:[#allocation3] sm:$0x1]
    %v232 = vlaneseq
    %v233 = vshrl.u32 %v232, 7
    %v234 = vadd.s32 %v233, 8
    %v235 = vlaneseq
    %v236 = vshrl.u32 %v235, 7
    %v237 = vsub.s32 0, %v236
    %v238 = vrot.slane %v230, %v237
    %vm239 = vcmp.eq.s32.totalorder %v233, %v238
    %vm240 = vcmp.eq.s32.totalorder %v234, %v238
    %v241 = vsel %vm239, 1, 0
    %v242 = vsel %vm240, 1, 0
    %v243 = vcvt.s32.f32 %v241
    %v244 = vcvt.s32.f32 %v242
    %v245 = vlaneseq
    %v246 = vshrl.u32 %v245, 7
    %v247 = vsub.s32 0, %v246
    %v248 = vrot.slane %v231, %v247
    %vm249 = vcmp.eq.s32.totalorder %v233, %v248
    %vm250 = vcmp.eq.s32.totalorder %v234, %v248
    %v251 = vsel %vm249, 1, 0
    %v252 = vsel %vm250, 1, 0
    %v253 = vcvt.s32.f32 %v251
    %v254 = vcvt.s32.f32 %v252
    %255 = vxpose.xlu0.b32.start [1/16] %v243, 128
    %256 = vxpose.xlu0.b32.cont [2/16] %v244, 128
    %257 = vxpose.xlu0.b32.cont [3/16] 0.0, 128
    %258 = vxpose.xlu0.b32.cont [4/16] 0.0, 128
    %259 = vxpose.xlu0.b32.cont [5/16] 0.0, 128
    %260 = vxpose.xlu0.b32.cont [6/16] 0.0, 128
    %261 = vxpose.xlu0.b32.cont [7/16] 0.0, 128
    %262 = vxpose.xlu0.b32.cont [8/16] 0.0, 128
    %263 = vxpose.xlu0.b32.cont [9/16] 0.0, 128
    %264 = vxpose.xlu0.b32.cont [10/16] 0.0, 128
    %265 = vxpose.xlu0.b32.cont [11/16] 0.0, 128
    %266 = vxpose.xlu0.b32.cont [12/16] 0.0, 128
    %267 = vxpose.xlu0.b32.cont [13/16] 0.0, 128
    %268 = vxpose.xlu0.b32.cont [14/16] 0.0, 128
    %269 = vxpose.xlu0.b32.cont [15/16] 0.0, 128
    %270 = vxpose.xlu0.b32.end [16/16] 0.0, 128
    %v271 = vpop.trf.xlu0
    %v272 = vpop.trf.xlu0
    %v273 = vpop.trf.xlu0
    %v274 = vpop.trf.xlu0
    %v275 = vpop.trf.xlu0
    %v276 = vpop.trf.xlu0
    %v277 = vpop.trf.xlu0
    %v278 = vpop.trf.xlu0
    %v279 = vpop.trf.xlu0
    %v280 = vpop.trf.xlu0
    %v281 = vpop.trf.xlu0
    %v282 = vpop.trf.xlu0
    %v283 = vpop.trf.xlu0
    %v284 = vpop.trf.xlu0
    %v285 = vpop.trf.xlu0
    %v286 = vpop.trf.xlu0
    %vm287 = vcmask 130048
    %v289 = vsel %vm287, %v271, 0
    %v292 = vsel %vm287, %v272, 0
    %v295 = vsel %vm287, %v273, 0
    %v298 = vsel %vm287, %v274, 0
    %v301 = vsel %vm287, %v275, 0
    %v304 = vsel %vm287, %v276, 0
    %v307 = vsel %vm287, %v277, 0
    %v310 = vsel %vm287, %v278, 0
    %v313 = vsel %vm287, %v279, 0
    %v316 = vsel %vm287, %v280, 0
    %v319 = vsel %vm287, %v281, 0
    %v322 = vsel %vm287, %v282, 0
    %v325 = vsel %vm287, %v283, 0
    %v328 = vsel %vm287, %v284, 0
    %v331 = vsel %vm287, %v285, 0
    %v334 = vsel %vm287, %v286, 0
    %336 = vmatprep.subr.mxu0 0.0
    %337 = vmatpush1.msra.mxu0 0.0
    %338 = vmatprep.subr.mxu0 0.0
    %339 = vmatpush1.msra.mxu0 0.0
    %340 = vmatprep.subr.mxu0 0.0
    %341 = vmatpush1.msra.mxu0 0.0
    %342 = vmatprep.subr.mxu0 0.0
    %343 = vmatpush1.msra.mxu0 0.0
    %344 = vmatprep.subr.mxu0 0.0
    %345 = vmatpush1.msra.mxu0 0.0
    %346 = vmatprep.subr.mxu0 0.0
    %347 = vmatpush1.msra.mxu0 0.0
    %348 = vmatprep.subr.mxu0 0.0
    %349 = vmatpush1.msra.mxu0 0.0
    %350 = vmatprep.subr.mxu0 0.0
    %351 = vmatpush1.msra.mxu0 0.0
    %352 = vmatprep.subr.mxu0 0.0
    %353 = vmatpush1.msra.mxu0 0.0
    %354 = vmatprep.subr.mxu0 0.0
    %355 = vmatpush1.msra.mxu0 0.0
    %356 = vmatprep.subr.mxu0 0.0
    %357 = vmatpush1.msra.mxu0 0.0
    %358 = vmatprep.subr.mxu0 0.0
    %359 = vmatpush1.msra.mxu0 0.0
    %360 = vmatprep.subr.mxu0 0.0
    %361 = vmatpush1.msra.mxu0 0.0
    %362 = vmatprep.subr.mxu0 0.0
    %363 = vmatpush1.msra.mxu0 0.0
    %364 = vmatprep.subr.mxu0 0.0
    %365 = vmatpush1.msra.mxu0 %v213
    %366 = vmatprep.subr.mxu0 0.0
    %367 = vmatpush1.msra.mxu0 %v212
    %368 = vmatprep.subr.mxu0 0.0
    %369 = vmatpush2.msra.mxu0 0.0
    %370 = vmatprep.subr.mxu0 0.0
    %371 = vmatpush2.msra.mxu0 0.0
    %372 = vmatprep.subr.mxu0 0.0
    %373 = vmatpush2.msra.mxu0 0.0
    %374 = vmatprep.subr.mxu0 0.0
    %375 = vmatpush2.msra.mxu0 0.0
    %376 = vmatprep.subr.mxu0 0.0
    %377 = vmatpush2.msra.mxu0 0.0
    %378 = vmatprep.subr.mxu0 0.0
    %379 = vmatpush2.msra.mxu0 0.0
    %380 = vmatprep.subr.mxu0 0.0
    %381 = vmatpush2.msra.mxu0 0.0
    %382 = vmatprep.subr.mxu0 0.0
    %383 = vmatpush2.msra.mxu0 0.0
    %384 = vmatprep.subr.mxu0 0.0
    %385 = vmatpush2.msra.mxu0 0.0
    %386 = vmatprep.subr.mxu0 0.0
    %387 = vmatpush2.msra.mxu0 0.0
    %388 = vmatprep.subr.mxu0 0.0
    %389 = vmatpush2.msra.mxu0 0.0
    %390 = vmatprep.subr.mxu0 0.0
    %391 = vmatpush2.msra.mxu0 0.0
    %392 = vmatprep.subr.mxu0 0.0
    %393 = vmatpush2.msra.mxu0 0.0
    %394 = vmatprep.subr.mxu0 0.0
    %395 = vmatpush2.msra.mxu0 0.0
    %396 = vmatprep.subr.mxu0 0.0
    %397 = vmatpush2.msra.mxu0 0.0
    %398 = vmatprep.subr.mxu0 0.0
    %399 = vmatpush2.msra.mxu0 0.0
    %400 = vmatprep.mubr.f32.mxu0 0.0
    %401 = vmatmul.mubr.f32.gmra.mxu0 %v289
    %v402 = vpop.f32.mrf.mxu0
    %v403 = vadd.f32 0.0, %v402
    %v404 = vpop.f32.mrf.mxu0
    %405 = vmatprep.mubr.f32.mxu0 0.0
    %406 = vmatmul.mubr.f32.gmra.mxu0 %v292
    %v407 = vpop.f32.mrf.mxu0
    %v408 = vadd.f32 0.0, %v407
    %v409 = vpop.f32.mrf.mxu0
    %410 = vmatprep.mubr.f32.mxu0 0.0
    %411 = vmatmul.mubr.f32.gmra.mxu0 %v295
    %v412 = vpop.f32.mrf.mxu0
    %v413 = vadd.f32 0.0, %v412
    %v414 = vpop.f32.mrf.mxu0
    %415 = vmatprep.mubr.f32.mxu0 0.0
    %416 = vmatmul.mubr.f32.gmra.mxu0 %v298
    %v417 = vpop.f32.mrf.mxu0
    %v418 = vadd.f32 0.0, %v417
    %v419 = vpop.f32.mrf.mxu0
    %420 = vmatprep.mubr.f32.mxu0 0.0
    %421 = vmatmul.mubr.f32.gmra.mxu0 %v301
    %v422 = vpop.f32.mrf.mxu0
    %v423 = vadd.f32 0.0, %v422
    %v424 = vpop.f32.mrf.mxu0
    %425 = vmatprep.mubr.f32.mxu0 0.0
    %426 = vmatmul.mubr.f32.gmra.mxu0 %v304
    %v427 = vpop.f32.mrf.mxu0
    %v428 = vadd.f32 0.0, %v427
    %v429 = vpop.f32.mrf.mxu0
    %430 = vmatprep.mubr.f32.mxu0 0.0
    %431 = vmatmul.mubr.f32.gmra.mxu0 %v307
    %v432 = vpop.f32.mrf.mxu0
    %v433 = vadd.f32 0.0, %v432
    %v434 = vpop.f32.mrf.mxu0
    %435 = vmatprep.mubr.f32.mxu0 0.0
    %436 = vmatmul.mubr.f32.gmra.mxu0 %v310
    %v437 = vpop.f32.mrf.mxu0
    %v438 = vadd.f32 0.0, %v437
    %v439 = vpop.f32.mrf.mxu0
    %440 = vmatprep.mubr.f32.mxu0 0.0
    %441 = vmatmul.mubr.f32.gmra.mxu0 %v313
    %v442 = vpop.f32.mrf.mxu0
    %v443 = vadd.f32 0.0, %v442
    %v444 = vpop.f32.mrf.mxu0
    %445 = vmatprep.mubr.f32.mxu0 0.0
    %446 = vmatmul.mubr.f32.gmra.mxu0 %v316
    %v447 = vpop.f32.mrf.mxu0
    %v448 = vadd.f32 0.0, %v447
    %v449 = vpop.f32.mrf.mxu0
    %450 = vmatprep.mubr.f32.mxu0 0.0
    %451 = vmatmul.mubr.f32.gmra.mxu0 %v319
    %v452 = vpop.f32.mrf.mxu0
    %v453 = vadd.f32 0.0, %v452
    %v454 = vpop.f32.mrf.mxu0
    %455 = vmatprep.mubr.f32.mxu0 0.0
    %456 = vmatmul.mubr.f32.gmra.mxu0 %v322
    %v457 = vpop.f32.mrf.mxu0
    %v458 = vadd.f32 0.0, %v457
    %v459 = vpop.f32.mrf.mxu0
    %460 = vmatprep.mubr.f32.mxu0 0.0
    %461 = vmatmul.mubr.f32.gmra.mxu0 %v325
    %v462 = vpop.f32.mrf.mxu0
    %v463 = vadd.f32 0.0, %v462
    %v464 = vpop.f32.mrf.mxu0
    %465 = vmatprep.mubr.f32.mxu0 0.0
    %466 = vmatmul.mubr.f32.gmra.mxu0 %v328
    %v467 = vpop.f32.mrf.mxu0
    %v468 = vadd.f32 0.0, %v467
    %v469 = vpop.f32.mrf.mxu0
    %470 = vmatprep.mubr.f32.mxu0 0.0
    %471 = vmatmul.mubr.f32.gmra.mxu0 %v331
    %v472 = vpop.f32.mrf.mxu0
    %v473 = vadd.f32 0.0, %v472
    %v474 = vpop.f32.mrf.mxu0
    %475 = vmatprep.mubr.f32.mxu0 0.0
    %476 = vmatmul.mubr.f32.gmra.mxu0 %v334
    %v477 = vpop.f32.mrf.mxu0
    %v478 = vadd.f32 0.0, %v477
    %v479 = vpop.f32.mrf.mxu0
    %480 = vdwg.mxu0
    %481 = vxpose.xlu0.b32.start [1/16] %v253, 128
    %482 = vxpose.xlu0.b32.cont [2/16] %v254, 128
    %483 = vxpose.xlu0.b32.cont [3/16] 0.0, 128
    %484 = vxpose.xlu0.b32.cont [4/16] 0.0, 128
    %485 = vxpose.xlu0.b32.cont [5/16] 0.0, 128
    %486 = vxpose.xlu0.b32.cont [6/16] 0.0, 128
    %487 = vxpose.xlu0.b32.cont [7/16] 0.0, 128
    %488 = vxpose.xlu0.b32.cont [8/16] 0.0, 128
    %489 = vxpose.xlu0.b32.cont [9/16] 0.0, 128
    %490 = vxpose.xlu0.b32.cont [10/16] 0.0, 128
    %491 = vxpose.xlu0.b32.cont [11/16] 0.0, 128
    %492 = vxpose.xlu0.b32.cont [12/16] 0.0, 128
    %493 = vxpose.xlu0.b32.cont [13/16] 0.0, 128
    %494 = vxpose.xlu0.b32.cont [14/16] 0.0, 128
    %495 = vxpose.xlu0.b32.cont [15/16] 0.0, 128
    %496 = vxpose.xlu0.b32.end [16/16] 0.0, 128
    %v497 = vpop.trf.xlu0
    %v498 = vpop.trf.xlu0
    %v499 = vpop.trf.xlu0
    %v500 = vpop.trf.xlu0
    %v501 = vpop.trf.xlu0
    %v502 = vpop.trf.xlu0
    %v503 = vpop.trf.xlu0
    %v504 = vpop.trf.xlu0
    %v505 = vpop.trf.xlu0
    %v506 = vpop.trf.xlu0
    %v507 = vpop.trf.xlu0
    %v508 = vpop.trf.xlu0
    %v509 = vpop.trf.xlu0
    %v510 = vpop.trf.xlu0
    %v511 = vpop.trf.xlu0
    %v512 = vpop.trf.xlu0
    %v514 = vsel %vm287, %v497, 0
    %v517 = vsel %vm287, %v498, 0
    %v520 = vsel %vm287, %v499, 0
    %v523 = vsel %vm287, %v500, 0
    %v526 = vsel %vm287, %v501, 0
    %v529 = vsel %vm287, %v502, 0
    %v532 = vsel %vm287, %v503, 0
    %v535 = vsel %vm287, %v504, 0
    %v538 = vsel %vm287, %v505, 0
    %v541 = vsel %vm287, %v506, 0
    %v544 = vsel %vm287, %v507, 0
    %v547 = vsel %vm287, %v508, 0
    %v550 = vsel %vm287, %v509, 0
    %v553 = vsel %vm287, %v510, 0
    %v556 = vsel %vm287, %v511, 0
    %v559 = vsel %vm287, %v512, 0
    %561 = vmatprep.subr.mxu0 0.0
    %562 = vmatpush1.msra.mxu0 0.0
    %563 = vmatprep.subr.mxu0 0.0
    %564 = vmatpush1.msra.mxu0 0.0
    %565 = vmatprep.subr.mxu0 0.0
    %566 = vmatpush1.msra.mxu0 0.0
    %567 = vmatprep.subr.mxu0 0.0
    %568 = vmatpush1.msra.mxu0 0.0
    %569 = vmatprep.subr.mxu0 0.0
    %570 = vmatpush1.msra.mxu0 0.0
    %571 = vmatprep.subr.mxu0 0.0
    %572 = vmatpush1.msra.mxu0 0.0
    %573 = vmatprep.subr.mxu0 0.0
    %574 = vmatpush1.msra.mxu0 0.0
    %575 = vmatprep.subr.mxu0 0.0
    %576 = vmatpush1.msra.mxu0 0.0
    %577 = vmatprep.subr.mxu0 0.0
    %578 = vmatpush1.msra.mxu0 0.0
    %579 = vmatprep.subr.mxu0 0.0
    %580 = vmatpush1.msra.mxu0 0.0
    %581 = vmatprep.subr.mxu0 0.0
    %582 = vmatpush1.msra.mxu0 0.0
    %583 = vmatprep.subr.mxu0 0.0
    %584 = vmatpush1.msra.mxu0 0.0
    %585 = vmatprep.subr.mxu0 0.0
    %586 = vmatpush1.msra.mxu0 0.0
    %587 = vmatprep.subr.mxu0 0.0
    %588 = vmatpush1.msra.mxu0 0.0
    %589 = vmatprep.subr.mxu0 0.0
    %590 = vmatpush1.msra.mxu0 %v213
    %591 = vmatprep.subr.mxu0 0.0
    %592 = vmatpush1.msra.mxu0 %v212
    %593 = vmatprep.subr.mxu0 0.0
    %594 = vmatpush2.msra.mxu0 0.0
    %595 = vmatprep.subr.mxu0 0.0
    %596 = vmatpush2.msra.mxu0 0.0
    %597 = vmatprep.subr.mxu0 0.0
    %598 = vmatpush2.msra.mxu0 0.0
    %599 = vmatprep.subr.mxu0 0.0
    %600 = vmatpush2.msra.mxu0 0.0
    %601 = vmatprep.subr.mxu0 0.0
    %602 = vmatpush2.msra.mxu0 0.0
    %603 = vmatprep.subr.mxu0 0.0
    %604 = vmatpush2.msra.mxu0 0.0
    %605 = vmatprep.subr.mxu0 0.0
    %606 = vmatpush2.msra.mxu0 0.0
    %607 = vmatprep.subr.mxu0 0.0
    %608 = vmatpush2.msra.mxu0 0.0
    %609 = vmatprep.subr.mxu0 0.0
    %610 = vmatpush2.msra.mxu0 0.0
    %611 = vmatprep.subr.mxu0 0.0
    %612 = vmatpush2.msra.mxu0 0.0
    %613 = vmatprep.subr.mxu0 0.0
    %614 = vmatpush2.msra.mxu0 0.0
    %615 = vmatprep.subr.mxu0 0.0
    %616 = vmatpush2.msra.mxu0 0.0
    %617 = vmatprep.subr.mxu0 0.0
    %618 = vmatpush2.msra.mxu0 0.0
    %619 = vmatprep.subr.mxu0 0.0
    %620 = vmatpush2.msra.mxu0 0.0
    %621 = vmatprep.subr.mxu0 0.0
    %622 = vmatpush2.msra.mxu0 0.0
    %623 = vmatprep.subr.mxu0 0.0
    %624 = vmatpush2.msra.mxu0 0.0
    %625 = vmatprep.mubr.f32.mxu0 0.0
    %626 = vmatmul.mubr.f32.gmra.mxu0 %v514
    %v627 = vpop.f32.mrf.mxu0
    %v628 = vadd.f32 0.0, %v627
    %v629 = vpop.f32.mrf.mxu0
    %630 = vmatprep.mubr.f32.mxu0 0.0
    %631 = vmatmul.mubr.f32.gmra.mxu0 %v517
    %v632 = vpop.f32.mrf.mxu0
    %v633 = vadd.f32 0.0, %v632
    %v634 = vpop.f32.mrf.mxu0
    %635 = vmatprep.mubr.f32.mxu0 0.0
    %636 = vmatmul.mubr.f32.gmra.mxu0 %v520
    %v637 = vpop.f32.mrf.mxu0
    %v638 = vadd.f32 0.0, %v637
    %v639 = vpop.f32.mrf.mxu0
    %640 = vmatprep.mubr.f32.mxu0 0.0
    %641 = vmatmul.mubr.f32.gmra.mxu0 %v523
    %v642 = vpop.f32.mrf.mxu0
    %v643 = vadd.f32 0.0, %v642
    %v644 = vpop.f32.mrf.mxu0
    %645 = vmatprep.mubr.f32.mxu0 0.0
    %646 = vmatmul.mubr.f32.gmra.mxu0 %v526
    %v647 = vpop.f32.mrf.mxu0
    %v648 = vadd.f32 0.0, %v647
    %v649 = vpop.f32.mrf.mxu0
    %650 = vmatprep.mubr.f32.mxu0 0.0
    %651 = vmatmul.mubr.f32.gmra.mxu0 %v529
    %v652 = vpop.f32.mrf.mxu0
    %v653 = vadd.f32 0.0, %v652
    %v654 = vpop.f32.mrf.mxu0
    %655 = vmatprep.mubr.f32.mxu0 0.0
    %656 = vmatmul.mubr.f32.gmra.mxu0 %v532
    %v657 = vpop.f32.mrf.mxu0
    %v658 = vadd.f32 0.0, %v657
    %v659 = vpop.f32.mrf.mxu0
    %660 = vmatprep.mubr.f32.mxu0 0.0
    %661 = vmatmul.mubr.f32.gmra.mxu0 %v535
    %v662 = vpop.f32.mrf.mxu0
    %v663 = vadd.f32 0.0, %v662
    %v664 = vpop.f32.mrf.mxu0
    %665 = vmatprep.mubr.f32.mxu0 0.0
    %666 = vmatmul.mubr.f32.gmra.mxu0 %v538
    %v667 = vpop.f32.mrf.mxu0
    %v668 = vadd.f32 0.0, %v667
    %v669 = vpop.f32.mrf.mxu0
    %670 = vmatprep.mubr.f32.mxu0 0.0
    %671 = vmatmul.mubr.f32.gmra.mxu0 %v541
    %v672 = vpop.f32.mrf.mxu0
    %v673 = vadd.f32 0.0, %v672
    %v674 = vpop.f32.mrf.mxu0
    %675 = vmatprep.mubr.f32.mxu0 0.0
    %676 = vmatmul.mubr.f32.gmra.mxu0 %v544
    %v677 = vpop.f32.mrf.mxu0
    %v678 = vadd.f32 0.0, %v677
    %v679 = vpop.f32.mrf.mxu0
    %680 = vmatprep.mubr.f32.mxu0 0.0
    %681 = vmatmul.mubr.f32.gmra.mxu0 %v547
    %v682 = vpop.f32.mrf.mxu0
    %v683 = vadd.f32 0.0, %v682
    %v684 = vpop.f32.mrf.mxu0
    %685 = vmatprep.mubr.f32.mxu0 0.0
    %686 = vmatmul.mubr.f32.gmra.mxu0 %v550
    %v687 = vpop.f32.mrf.mxu0
    %v688 = vadd.f32 0.0, %v687
    %v689 = vpop.f32.mrf.mxu0
    %690 = vmatprep.mubr.f32.mxu0 0.0
    %691 = vmatmul.mubr.f32.gmra.mxu0 %v553
    %v692 = vpop.f32.mrf.mxu0
    %v693 = vadd.f32 0.0, %v692
    %v694 = vpop.f32.mrf.mxu0
    %695 = vmatprep.mubr.f32.mxu0 0.0
    %696 = vmatmul.mubr.f32.gmra.mxu0 %v556
    %v697 = vpop.f32.mrf.mxu0
    %v698 = vadd.f32 0.0, %v697
    %v699 = vpop.f32.mrf.mxu0
    %700 = vmatprep.mubr.f32.mxu0 0.0
    %701 = vmatmul.mubr.f32.gmra.mxu0 %v559
    %v702 = vpop.f32.mrf.mxu0
    %v703 = vadd.f32 0.0, %v702
    %v704 = vpop.f32.mrf.mxu0
    %705 = vdwg.mxu0
    %v706 = vld [vmem:[%s4] sm:$0xff]
    %v707 = vld [vmem:[%s4 + $0x8] sm:$0xff]
    %v708 = vld [vmem:[%s4 + $0x10] sm:$0xff]
    %v709 = vld [vmem:[%s4 + $0x18] sm:$0xff]
    %v710 = vld [vmem:[%s4 + $0x20] sm:$0xff]
    %v711 = vld [vmem:[%s4 + $0x28] sm:$0xff]
    %v712 = vld [vmem:[%s4 + $0x30] sm:$0xff]
    %v713 = vld [vmem:[%s4 + $0x38] sm:$0xff]
    %v714 = vld [vmem:[%s4 + $0x40] sm:$0xff]
    %v715 = vld [vmem:[%s4 + $0x48] sm:$0xff]
    %v716 = vld [vmem:[%s4 + $0x50] sm:$0xff]
    %v717 = vld [vmem:[%s4 + $0x58] sm:$0xff]
    %v718 = vld [vmem:[%s4 + $0x60] sm:$0xff]
    %v719 = vld [vmem:[%s4 + $0x68] sm:$0xff]
    %v720 = vld [vmem:[%s4 + $0x70] sm:$0xff]
    %v721 = vld [vmem:[%s4 + $0x78] sm:$0xff]
    %v722 = vld [vmem:[#allocation8] sm:$0xff]
    %v723 = vld [vmem:[#allocation8 + $0x8] sm:$0xff]
    %v724 = vld [vmem:[#allocation8 + $0x10] sm:$0xff]
    %v725 = vld [vmem:[#allocation8 + $0x18] sm:$0xff]
    %v726 = vld [vmem:[#allocation8 + $0x20] sm:$0xff]
    %v727 = vld [vmem:[#allocation8 + $0x28] sm:$0xff]
    %v728 = vld [vmem:[#allocation8 + $0x30] sm:$0xff]
    %v729 = vld [vmem:[#allocation8 + $0x38] sm:$0xff]
    %v730 = vld [vmem:[#allocation8 + $0x40] sm:$0xff]
    %v731 = vld [vmem:[#allocation8 + $0x48] sm:$0xff]
    %v732 = vld [vmem:[#allocation8 + $0x50] sm:$0xff]
    %v733 = vld [vmem:[#allocation8 + $0x58] sm:$0xff]
    %v734 = vld [vmem:[#allocation8 + $0x60] sm:$0xff]
    %v735 = vld [vmem:[#allocation8 + $0x68] sm:$0xff]
    %v736 = vld [vmem:[#allocation8 + $0x70] sm:$0xff]
    %v737 = vld [vmem:[#allocation8 + $0x78] sm:$0xff]
    %738 = vmatprep.subr.mxu0 0.0
    %739 = vmatpush1.msra.mxu0 %v737
    %740 = vmatprep.subr.mxu0 0.0
    %741 = vmatpush1.msra.mxu0 %v736
    %742 = vmatprep.subr.mxu0 0.0
    %743 = vmatpush1.msra.mxu0 %v735
    %744 = vmatprep.subr.mxu0 0.0
    %745 = vmatpush1.msra.mxu0 %v734
    %746 = vmatprep.subr.mxu0 0.0
    %747 = vmatpush1.msra.mxu0 %v733
    %748 = vmatprep.subr.mxu0 0.0
    %749 = vmatpush1.msra.mxu0 %v732
    %750 = vmatprep.subr.mxu0 0.0
    %751 = vmatpush1.msra.mxu0 %v731
    %752 = vmatprep.subr.mxu0 0.0
    %753 = vmatpush1.msra.mxu0 %v730
    %754 = vmatprep.subr.mxu0 0.0
    %755 = vmatpush1.msra.mxu0 %v729
    %756 = vmatprep.subr.mxu0 0.0
    %757 = vmatpush1.msra.mxu0 %v728
    %758 = vmatprep.subr.mxu0 0.0
    %759 = vmatpush1.msra.mxu0 %v727
    %760 = vmatprep.subr.mxu0 0.0
    %761 = vmatpush1.msra.mxu0 %v726
    %762 = vmatprep.subr.mxu0 0.0
    %763 = vmatpush1.msra.mxu0 %v725
    %764 = vmatprep.subr.mxu0 0.0
    %765 = vmatpush1.msra.mxu0 %v724
    %766 = vmatprep.subr.mxu0 0.0
    %767 = vmatpush1.msra.mxu0 %v723
    %768 = vmatprep.subr.mxu0 0.0
    %769 = vmatpush1.msra.mxu0 %v722
    %770 = vmatprep.subr.mxu0 0.0
    %771 = vmatpush2.msra.mxu0 0.0
    %772 = vmatprep.subr.mxu0 0.0
    %773 = vmatpush2.msra.mxu0 0.0
    %774 = vmatprep.subr.mxu0 0.0
    %775 = vmatpush2.msra.mxu0 0.0
    %776 = vmatprep.subr.mxu0 0.0
    %777 = vmatpush2.msra.mxu0 0.0
    %778 = vmatprep.subr.mxu0 0.0
    %779 = vmatpush2.msra.mxu0 0.0
    %780 = vmatprep.subr.mxu0 0.0
    %781 = vmatpush2.msra.mxu0 0.0
    %782 = vmatprep.subr.mxu0 0.0
    %783 = vmatpush2.msra.mxu0 0.0
    %784 = vmatprep.subr.mxu0 0.0
    %785 = vmatpush2.msra.mxu0 0.0
    %786 = vmatprep.subr.mxu0 0.0
    %787 = vmatpush2.msra.mxu0 0.0
    %788 = vmatprep.subr.mxu0 0.0
    %789 = vmatpush2.msra.mxu0 0.0
    %790 = vmatprep.subr.mxu0 0.0
    %791 = vmatpush2.msra.mxu0 0.0
    %792 = vmatprep.subr.mxu0 0.0
    %793 = vmatpush2.msra.mxu0 0.0
    %794 = vmatprep.subr.mxu0 0.0
    %795 = vmatpush2.msra.mxu0 0.0
    %796 = vmatprep.subr.mxu0 0.0
    %797 = vmatpush2.msra.mxu0 0.0
    %798 = vmatprep.subr.mxu0 0.0
    %799 = vmatpush2.msra.mxu0 0.0
    %800 = vmatprep.subr.mxu0 0.0
    %801 = vmatpush2.msra.mxu0 0.0
    %802 = vmatprep.mubr.f32.mxu0 0.0
    %803 = vmatmul.mubr.f32.gmra.mxu0 %v628
    %v804 = vpop.f32.mrf.mxu0
    %v805 = vadd.f32 0.0, %v804
    %v806 = vpop.f32.mrf.mxu0
    %807 = vmatprep.mubr.f32.mxu0 0.0
    %808 = vmatmul.mubr.f32.gmra.mxu0 %v633
    %v809 = vpop.f32.mrf.mxu0
    %v810 = vadd.f32 0.0, %v809
    %v811 = vpop.f32.mrf.mxu0
    %812 = vmatprep.mubr.f32.mxu0 0.0
    %813 = vmatmul.mubr.f32.gmra.mxu0 %v638
    %v814 = vpop.f32.mrf.mxu0
    %v815 = vadd.f32 0.0, %v814
    %v816 = vpop.f32.mrf.mxu0
    %817 = vmatprep.mubr.f32.mxu0 0.0
    %818 = vmatmul.mubr.f32.gmra.mxu0 %v643
    %v819 = vpop.f32.mrf.mxu0
    %v820 = vadd.f32 0.0, %v819
    %v821 = vpop.f32.mrf.mxu0
    %822 = vmatprep.mubr.f32.mxu0 0.0
    %823 = vmatmul.mubr.f32.gmra.mxu0 %v648
    %v824 = vpop.f32.mrf.mxu0
    %v825 = vadd.f32 0.0, %v824
    %v826 = vpop.f32.mrf.mxu0
    %827 = vmatprep.mubr.f32.mxu0 0.0
    %828 = vmatmul.mubr.f32.gmra.mxu0 %v653
    %v829 = vpop.f32.mrf.mxu0
    %v830 = vadd.f32 0.0, %v829
    %v831 = vpop.f32.mrf.mxu0
    %832 = vmatprep.mubr.f32.mxu0 0.0
    %833 = vmatmul.mubr.f32.gmra.mxu0 %v658
    %v834 = vpop.f32.mrf.mxu0
    %v835 = vadd.f32 0.0, %v834
    %v836 = vpop.f32.mrf.mxu0
    %837 = vmatprep.mubr.f32.mxu0 0.0
    %838 = vmatmul.mubr.f32.gmra.mxu0 %v663
    %v839 = vpop.f32.mrf.mxu0
    %v840 = vadd.f32 0.0, %v839
    %v841 = vpop.f32.mrf.mxu0
    %842 = vmatprep.mubr.f32.mxu0 0.0
    %843 = vmatmul.mubr.f32.gmra.mxu0 %v668
    %v844 = vpop.f32.mrf.mxu0
    %v845 = vadd.f32 0.0, %v844
    %v846 = vpop.f32.mrf.mxu0
    %847 = vmatprep.mubr.f32.mxu0 0.0
    %848 = vmatmul.mubr.f32.gmra.mxu0 %v673
    %v849 = vpop.f32.mrf.mxu0
    %v850 = vadd.f32 0.0, %v849
    %v851 = vpop.f32.mrf.mxu0
    %852 = vmatprep.mubr.f32.mxu0 0.0
    %853 = vmatmul.mubr.f32.gmra.mxu0 %v678
    %v854 = vpop.f32.mrf.mxu0
    %v855 = vadd.f32 0.0, %v854
    %v856 = vpop.f32.mrf.mxu0
    %857 = vmatprep.mubr.f32.mxu0 0.0
    %858 = vmatmul.mubr.f32.gmra.mxu0 %v683
    %v859 = vpop.f32.mrf.mxu0
    %v860 = vadd.f32 0.0, %v859
    %v861 = vpop.f32.mrf.mxu0
    %862 = vmatprep.mubr.f32.mxu0 0.0
    %863 = vmatmul.mubr.f32.gmra.mxu0 %v688
    %v864 = vpop.f32.mrf.mxu0
    %v865 = vadd.f32 0.0, %v864
    %v866 = vpop.f32.mrf.mxu0
    %867 = vmatprep.mubr.f32.mxu0 0.0
    %868 = vmatmul.mubr.f32.gmra.mxu0 %v693
    %v869 = vpop.f32.mrf.mxu0
    %v870 = vadd.f32 0.0, %v869
    %v871 = vpop.f32.mrf.mxu0
    %872 = vmatprep.mubr.f32.mxu0 0.0
    %873 = vmatmul.mubr.f32.gmra.mxu0 %v698
    %v874 = vpop.f32.mrf.mxu0
    %v875 = vadd.f32 0.0, %v874
    %v876 = vpop.f32.mrf.mxu0
    %877 = vmatprep.mubr.f32.mxu0 0.0
    %878 = vmatmul.mubr.f32.gmra.mxu0 %v703
    %v879 = vpop.f32.mrf.mxu0
    %v880 = vadd.f32 0.0, %v879
    %v881 = vpop.f32.mrf.mxu0
    %882 = vdwg.mxu0
    %883 = vmatprep.subr.mxu0 0.0
    %884 = vmatpush1.msra.mxu0 %v721
    %885 = vmatprep.subr.mxu0 0.0
    %886 = vmatpush1.msra.mxu0 %v720
    %887 = vmatprep.subr.mxu0 0.0
    %888 = vmatpush1.msra.mxu0 %v719
    %889 = vmatprep.subr.mxu0 0.0
    %890 = vmatpush1.msra.mxu0 %v718
    %891 = vmatprep.subr.mxu0 0.0
    %892 = vmatpush1.msra.mxu0 %v717
    %893 = vmatprep.subr.mxu0 0.0
    %894 = vmatpush1.msra.mxu0 %v716
    %895 = vmatprep.subr.mxu0 0.0
    %896 = vmatpush1.msra.mxu0 %v715
    %897 = vmatprep.subr.mxu0 0.0
    %898 = vmatpush1.msra.mxu0 %v714
    %899 = vmatprep.subr.mxu0 0.0
    %900 = vmatpush1.msra.mxu0 %v713
    %901 = vmatprep.subr.mxu0 0.0
    %902 = vmatpush1.msra.mxu0 %v712
    %903 = vmatprep.subr.mxu0 0.0
    %904 = vmatpush1.msra.mxu0 %v711
    %905 = vmatprep.subr.mxu0 0.0
    %906 = vmatpush1.msra.mxu0 %v710
    %907 = vmatprep.subr.mxu0 0.0
    %908 = vmatpush1.msra.mxu0 %v709
    %909 = vmatprep.subr.mxu0 0.0
    %910 = vmatpush1.msra.mxu0 %v708
    %911 = vmatprep.subr.mxu0 0.0
    %912 = vmatpush1.msra.mxu0 %v707
    %913 = vmatprep.subr.mxu0 0.0
    %914 = vmatpush1.msra.mxu0 %v706
    %915 = vmatprep.subr.mxu0 0.0
    %916 = vmatpush2.msra.mxu0 0.0
    %917 = vmatprep.subr.mxu0 0.0
    %918 = vmatpush2.msra.mxu0 0.0
    %919 = vmatprep.subr.mxu0 0.0
    %920 = vmatpush2.msra.mxu0 0.0
    %921 = vmatprep.subr.mxu0 0.0
    %922 = vmatpush2.msra.mxu0 0.0
    %923 = vmatprep.subr.mxu0 0.0
    %924 = vmatpush2.msra.mxu0 0.0
    %925 = vmatprep.subr.mxu0 0.0
    %926 = vmatpush2.msra.mxu0 0.0
    %927 = vmatprep.subr.mxu0 0.0
    %928 = vmatpush2.msra.mxu0 0.0
    %929 = vmatprep.subr.mxu0 0.0
    %930 = vmatpush2.msra.mxu0 0.0
    %931 = vmatprep.subr.mxu0 0.0
    %932 = vmatpush2.msra.mxu0 0.0
    %933 = vmatprep.subr.mxu0 0.0
    %934 = vmatpush2.msra.mxu0 0.0
    %935 = vmatprep.subr.mxu0 0.0
    %936 = vmatpush2.msra.mxu0 0.0
    %937 = vmatprep.subr.mxu0 0.0
    %938 = vmatpush2.msra.mxu0 0.0
    %939 = vmatprep.subr.mxu0 0.0
    %940 = vmatpush2.msra.mxu0 0.0
    %941 = vmatprep.subr.mxu0 0.0
    %942 = vmatpush2.msra.mxu0 0.0
    %943 = vmatprep.subr.mxu0 0.0
    %944 = vmatpush2.msra.mxu0 0.0
    %945 = vmatprep.subr.mxu0 0.0
    %946 = vmatpush2.msra.mxu0 0.0
    %947 = vmatprep.mubr.f32.mxu0 0.0
    %948 = vmatmul.mubr.f32.gmra.mxu0 %v403
    %v949 = vpop.f32.mrf.mxu0
    %v950 = vadd.f32 %v805, %v949
    %v951 = vpop.f32.mrf.mxu0
    %952 = vmatprep.mubr.f32.mxu0 0.0
    %953 = vmatmul.mubr.f32.gmra.mxu0 %v408
    %v954 = vpop.f32.mrf.mxu0
    %v955 = vadd.f32 %v810, %v954
    %v956 = vpop.f32.mrf.mxu0
    %957 = vmatprep.mubr.f32.mxu0 0.0
    %958 = vmatmul.mubr.f32.gmra.mxu0 %v413
    %v959 = vpop.f32.mrf.mxu0
    %v960 = vadd.f32 %v815, %v959
    %v961 = vpop.f32.mrf.mxu0
    %962 = vmatprep.mubr.f32.mxu0 0.0
    %963 = vmatmul.mubr.f32.gmra.mxu0 %v418
    %v964 = vpop.f32.mrf.mxu0
    %v965 = vadd.f32 %v820, %v964
    %v966 = vpop.f32.mrf.mxu0
    %967 = vmatprep.mubr.f32.mxu0 0.0
    %968 = vmatmul.mubr.f32.gmra.mxu0 %v423
    %v969 = vpop.f32.mrf.mxu0
    %v970 = vadd.f32 %v825, %v969
    %v971 = vpop.f32.mrf.mxu0
    %972 = vmatprep.mubr.f32.mxu0 0.0
    %973 = vmatmul.mubr.f32.gmra.mxu0 %v428
    %v974 = vpop.f32.mrf.mxu0
    %v975 = vadd.f32 %v830, %v974
    %v976 = vpop.f32.mrf.mxu0
    %977 = vmatprep.mubr.f32.mxu0 0.0
    %978 = vmatmul.mubr.f32.gmra.mxu0 %v433
    %v979 = vpop.f32.mrf.mxu0
    %v980 = vadd.f32 %v835, %v979
    %v981 = vpop.f32.mrf.mxu0
    %982 = vmatprep.mubr.f32.mxu0 0.0
    %983 = vmatmul.mubr.f32.gmra.mxu0 %v438
    %v984 = vpop.f32.mrf.mxu0
    %v985 = vadd.f32 %v840, %v984
    %v986 = vpop.f32.mrf.mxu0
    %987 = vmatprep.mubr.f32.mxu0 0.0
    %988 = vmatmul.mubr.f32.gmra.mxu0 %v443
    %v989 = vpop.f32.mrf.mxu0
    %v990 = vadd.f32 %v845, %v989
    %v991 = vpop.f32.mrf.mxu0
    %992 = vmatprep.mubr.f32.mxu0 0.0
    %993 = vmatmul.mubr.f32.gmra.mxu0 %v448
    %v994 = vpop.f32.mrf.mxu0
    %v995 = vadd.f32 %v850, %v994
    %v996 = vpop.f32.mrf.mxu0
    %997 = vmatprep.mubr.f32.mxu0 0.0
    %998 = vmatmul.mubr.f32.gmra.mxu0 %v453
    %v999 = vpop.f32.mrf.mxu0
    %v1000 = vadd.f32 %v855, %v999
    %v1001 = vpop.f32.mrf.mxu0
    %1002 = vmatprep.mubr.f32.mxu0 0.0
    %1003 = vmatmul.mubr.f32.gmra.mxu0 %v458
    %v1004 = vpop.f32.mrf.mxu0
    %v1005 = vadd.f32 %v860, %v1004
    %v1006 = vpop.f32.mrf.mxu0
    %1007 = vmatprep.mubr.f32.mxu0 0.0
    %1008 = vmatmul.mubr.f32.gmra.mxu0 %v463
    %v1009 = vpop.f32.mrf.mxu0
    %v1010 = vadd.f32 %v865, %v1009
    %v1011 = vpop.f32.mrf.mxu0
    %1012 = vmatprep.mubr.f32.mxu0 0.0
    %1013 = vmatmul.mubr.f32.gmra.mxu0 %v468
    %v1014 = vpop.f32.mrf.mxu0
    %v1015 = vadd.f32 %v870, %v1014
    %v1016 = vpop.f32.mrf.mxu0
    %1017 = vmatprep.mubr.f32.mxu0 0.0
    %1018 = vmatmul.mubr.f32.gmra.mxu0 %v473
    %v1019 = vpop.f32.mrf.mxu0
    %v1020 = vadd.f32 %v875, %v1019
    %v1021 = vpop.f32.mrf.mxu0
    %1022 = vmatprep.mubr.f32.mxu0 0.0
    %1023 = vmatmul.mubr.f32.gmra.mxu0 %v478
    %v1024 = vpop.f32.mrf.mxu0
    %v1025 = vadd.f32 %v880, %v1024
    %v1026 = vpop.f32.mrf.mxu0
    %1027 = vdwg.mxu0
    %v1028 = vld [vmem:[%s6] sm:$0xff]
    %vm1029 = vcmask 64512
    %v1031 = vsel %vm1029, %v214, 0
    %v1034 = vsel %vm1029, %v215, 0
    %v1037 = vsel %vm1029, %v216, 0
    %v1040 = vsel %vm1029, %v217, 0
    %v1043 = vsel %vm1029, %v218, 0
    %v1046 = vsel %vm1029, %v219, 0
    %v1049 = vsel %vm1029, %v220, 0
    %v1052 = vsel %vm1029, %v221, 0
    %v1055 = vsel %vm1029, %v222, 0
    %v1058 = vsel %vm1029, %v223, 0
    %v1061 = vsel %vm1029, %v224, 0
    %v1064 = vsel %vm1029, %v225, 0
    %v1067 = vsel %vm1029, %v226, 0
    %v1070 = vsel %vm1029, %v227, 0
    %v1073 = vsel %vm1029, %v228, 0
    %v1076 = vsel %vm1029, %v229, 0
    %1078 = vmatprep.subr.mxu0 0.0
    %1079 = vmatpush1.msra.mxu0 0.0
    %1080 = vmatprep.subr.mxu0 0.0
    %1081 = vmatpush1.msra.mxu0 0.0
    %1082 = vmatprep.subr.mxu0 0.0
    %1083 = vmatpush1.msra.mxu0 0.0
    %1084 = vmatprep.subr.mxu0 0.0
    %1085 = vmatpush1.msra.mxu0 0.0
    %1086 = vmatprep.subr.mxu0 0.0
    %1087 = vmatpush1.msra.mxu0 0.0
    %1088 = vmatprep.subr.mxu0 0.0
    %1089 = vmatpush1.msra.mxu0 0.0
    %1090 = vmatprep.subr.mxu0 0.0
    %1091 = vmatpush1.msra.mxu0 0.0
    %1092 = vmatprep.subr.mxu0 0.0
    %1093 = vmatpush1.msra.mxu0 0.0
    %1094 = vmatprep.subr.mxu0 0.0
    %1095 = vmatpush1.msra.mxu0 0.0
    %1096 = vmatprep.subr.mxu0 0.0
    %1097 = vmatpush1.msra.mxu0 0.0
    %1098 = vmatprep.subr.mxu0 0.0
    %1099 = vmatpush1.msra.mxu0 0.0
    %1100 = vmatprep.subr.mxu0 0.0
    %1101 = vmatpush1.msra.mxu0 0.0
    %1102 = vmatprep.subr.mxu0 0.0
    %1103 = vmatpush1.msra.mxu0 0.0
    %1104 = vmatprep.subr.mxu0 0.0
    %1105 = vmatpush1.msra.mxu0 0.0
    %1106 = vmatprep.subr.mxu0 0.0
    %1107 = vmatpush1.msra.mxu0 0.0
    %1108 = vmatprep.subr.mxu0 0.0
    %1109 = vmatpush1.msra.mxu0 %v1028
    %1110 = vmatprep.subr.mxu0 0.0
    %1111 = vmatpush2.msra.mxu0 0.0
    %1112 = vmatprep.subr.mxu0 0.0
    %1113 = vmatpush2.msra.mxu0 0.0
    %1114 = vmatprep.subr.mxu0 0.0
    %1115 = vmatpush2.msra.mxu0 0.0
    %1116 = vmatprep.subr.mxu0 0.0
    %1117 = vmatpush2.msra.mxu0 0.0
    %1118 = vmatprep.subr.mxu0 0.0
    %1119 = vmatpush2.msra.mxu0 0.0
    %1120 = vmatprep.subr.mxu0 0.0
    %1121 = vmatpush2.msra.mxu0 0.0
    %1122 = vmatprep.subr.mxu0 0.0
    %1123 = vmatpush2.msra.mxu0 0.0
    %1124 = vmatprep.subr.mxu0 0.0
    %1125 = vmatpush2.msra.mxu0 0.0
    %1126 = vmatprep.subr.mxu0 0.0
    %1127 = vmatpush2.msra.mxu0 0.0
    %1128 = vmatprep.subr.mxu0 0.0
    %1129 = vmatpush2.msra.mxu0 0.0
    %1130 = vmatprep.subr.mxu0 0.0
    %1131 = vmatpush2.msra.mxu0 0.0
    %1132 = vmatprep.subr.mxu0 0.0
    %1133 = vmatpush2.msra.mxu0 0.0
    %1134 = vmatprep.subr.mxu0 0.0
    %1135 = vmatpush2.msra.mxu0 0.0
    %1136 = vmatprep.subr.mxu0 0.0
    %1137 = vmatpush2.msra.mxu0 0.0
    %1138 = vmatprep.subr.mxu0 0.0
    %1139 = vmatpush2.msra.mxu0 0.0
    %1140 = vmatprep.subr.mxu0 0.0
    %1141 = vmatpush2.msra.mxu0 0.0
    %1142 = vmatprep.mubr.f32.mxu0 0.0
    %1143 = vmatmul.mubr.f32.gmra.mxu0 %v1031
    %v1144 = vpop.f32.mrf.mxu0
    %v1145 = vadd.f32 0.0, %v1144
    %v1146 = vpop.f32.mrf.mxu0
    %1147 = vmatprep.mubr.f32.mxu0 0.0
    %1148 = vmatmul.mubr.f32.gmra.mxu0 %v1034
    %v1149 = vpop.f32.mrf.mxu0
    %v1150 = vadd.f32 0.0, %v1149
    %v1151 = vpop.f32.mrf.mxu0
    %1152 = vmatprep.mubr.f32.mxu0 0.0
    %1153 = vmatmul.mubr.f32.gmra.mxu0 %v1037
    %v1154 = vpop.f32.mrf.mxu0
    %v1155 = vadd.f32 0.0, %v1154
    %v1156 = vpop.f32.mrf.mxu0
    %1157 = vmatprep.mubr.f32.mxu0 0.0
    %1158 = vmatmul.mubr.f32.gmra.mxu0 %v1040
    %v1159 = vpop.f32.mrf.mxu0
    %v1160 = vadd.f32 0.0, %v1159
    %v1161 = vpop.f32.mrf.mxu0
    %1162 = vmatprep.mubr.f32.mxu0 0.0
    %1163 = vmatmul.mubr.f32.gmra.mxu0 %v1043
    %v1164 = vpop.f32.mrf.mxu0
    %v1165 = vadd.f32 0.0, %v1164
    %v1166 = vpop.f32.mrf.mxu0
    %1167 = vmatprep.mubr.f32.mxu0 0.0
    %1168 = vmatmul.mubr.f32.gmra.mxu0 %v1046
    %v1169 = vpop.f32.mrf.mxu0
    %v1170 = vadd.f32 0.0, %v1169
    %v1171 = vpop.f32.mrf.mxu0
    %1172 = vmatprep.mubr.f32.mxu0 0.0
    %1173 = vmatmul.mubr.f32.gmra.mxu0 %v1049
    %v1174 = vpop.f32.mrf.mxu0
    %v1175 = vadd.f32 0.0, %v1174
    %v1176 = vpop.f32.mrf.mxu0
    %1177 = vmatprep.mubr.f32.mxu0 0.0
    %1178 = vmatmul.mubr.f32.gmra.mxu0 %v1052
    %v1179 = vpop.f32.mrf.mxu0
    %v1180 = vadd.f32 0.0, %v1179
    %v1181 = vpop.f32.mrf.mxu0
    %1182 = vmatprep.mubr.f32.mxu0 0.0
    %1183 = vmatmul.mubr.f32.gmra.mxu0 %v1055
    %v1184 = vpop.f32.mrf.mxu0
    %v1185 = vadd.f32 0.0, %v1184
    %v1186 = vpop.f32.mrf.mxu0
    %1187 = vmatprep.mubr.f32.mxu0 0.0
    %1188 = vmatmul.mubr.f32.gmra.mxu0 %v1058
    %v1189 = vpop.f32.mrf.mxu0
    %v1190 = vadd.f32 0.0, %v1189
    %v1191 = vpop.f32.mrf.mxu0
    %1192 = vmatprep.mubr.f32.mxu0 0.0
    %1193 = vmatmul.mubr.f32.gmra.mxu0 %v1061
    %v1194 = vpop.f32.mrf.mxu0
    %v1195 = vadd.f32 0.0, %v1194
    %v1196 = vpop.f32.mrf.mxu0
    %1197 = vmatprep.mubr.f32.mxu0 0.0
    %1198 = vmatmul.mubr.f32.gmra.mxu0 %v1064
    %v1199 = vpop.f32.mrf.mxu0
    %v1200 = vadd.f32 0.0, %v1199
    %v1201 = vpop.f32.mrf.mxu0
    %1202 = vmatprep.mubr.f32.mxu0 0.0
    %1203 = vmatmul.mubr.f32.gmra.mxu0 %v1067
    %v1204 = vpop.f32.mrf.mxu0
    %v1205 = vadd.f32 0.0, %v1204
    %v1206 = vpop.f32.mrf.mxu0
    %1207 = vmatprep.mubr.f32.mxu0 0.0
    %1208 = vmatmul.mubr.f32.gmra.mxu0 %v1070
    %v1209 = vpop.f32.mrf.mxu0
    %v1210 = vadd.f32 0.0, %v1209
    %v1211 = vpop.f32.mrf.mxu0
    %1212 = vmatprep.mubr.f32.mxu0 0.0
    %1213 = vmatmul.mubr.f32.gmra.mxu0 %v1073
    %v1214 = vpop.f32.mrf.mxu0
    %v1215 = vadd.f32 0.0, %v1214
    %v1216 = vpop.f32.mrf.mxu0
    %1217 = vmatprep.mubr.f32.mxu0 0.0
    %1218 = vmatmul.mubr.f32.gmra.mxu0 %v1076
    %v1219 = vpop.f32.mrf.mxu0
    %v1220 = vadd.f32 0.0, %v1219
    %v1221 = vpop.f32.mrf.mxu0
    %1222 = vdwg.mxu0
    %v1223 = vadd.f32 %v950, %v1145
    %v1224 = vadd.f32 %v955, %v1150
    %v1225 = vadd.f32 %v960, %v1155
    %v1226 = vadd.f32 %v965, %v1160
    %v1227 = vadd.f32 %v970, %v1165
    %v1228 = vadd.f32 %v975, %v1170
    %v1229 = vadd.f32 %v980, %v1175
    %v1230 = vadd.f32 %v985, %v1180
    %v1231 = vadd.f32 %v990, %v1185
    %v1232 = vadd.f32 %v995, %v1190
    %v1233 = vadd.f32 %v1000, %v1195
    %v1234 = vadd.f32 %v1005, %v1200
    %v1235 = vadd.f32 %v1010, %v1205
    %v1236 = vadd.f32 %v1015, %v1210
    %v1237 = vadd.f32 %v1020, %v1215
    %v1238 = vadd.f32 %v1025, %v1220
    %v1239 = vld [vmem:[%s7] sm:$0x1]
    %v1241 = vlaneseq
    %v1242 = vshrl.u32 %v1241, 7
    %v1243 = vsub.s32 0, %v1242
    %v1244 = vrot.slane %v1239, %v1243
    %v1246 = vadd.f32 %v1223, %v1244
    %v1247 = vadd.f32 %v1224, %v1244
    %v1248 = vadd.f32 %v1225, %v1244
    %v1249 = vadd.f32 %v1226, %v1244
    %v1250 = vadd.f32 %v1227, %v1244
    %v1251 = vadd.f32 %v1228, %v1244
    %v1252 = vadd.f32 %v1229, %v1244
    %v1253 = vadd.f32 %v1230, %v1244
    %v1254 = vadd.f32 %v1231, %v1244
    %v1255 = vadd.f32 %v1232, %v1244
    %v1256 = vadd.f32 %v1233, %v1244
    %v1257 = vadd.f32 %v1234, %v1244
    %v1258 = vadd.f32 %v1235, %v1244
    %v1259 = vadd.f32 %v1236, %v1244
    %v1260 = vadd.f32 %v1237, %v1244
    %v1261 = vadd.f32 %v1238, %v1244
    %v1262 = vmax.f32 %v1246, 0.0
    %v1263 = vmax.f32 %v1247, 0.0
    %v1264 = vmax.f32 %v1248, 0.0
    %v1265 = vmax.f32 %v1249, 0.0
    %v1266 = vmax.f32 %v1250, 0.0
    %v1267 = vmax.f32 %v1251, 0.0
    %v1268 = vmax.f32 %v1252, 0.0
    %v1269 = vmax.f32 %v1253, 0.0
    %v1270 = vmax.f32 %v1254, 0.0
    %v1271 = vmax.f32 %v1255, 0.0
    %v1272 = vmax.f32 %v1256, 0.0
    %v1273 = vmax.f32 %v1257, 0.0
    %v1274 = vmax.f32 %v1258, 0.0
    %v1275 = vmax.f32 %v1259, 0.0
    %v1276 = vmax.f32 %v1260, 0.0
    %v1277 = vmax.f32 %v1261, 0.0
    %v1278 = vld [vmem:[#allocation9] sm:$0xff]
    %v1279 = vld [vmem:[#allocation9 + $0x8] sm:$0xff]
    %v1280 = vld [vmem:[#allocation9 + $0x10] sm:$0xff]
    %v1281 = vld [vmem:[#allocation9 + $0x18] sm:$0xff]
    %v1282 = vld [vmem:[#allocation9 + $0x20] sm:$0xff]
    %v1283 = vld [vmem:[#allocation9 + $0x28] sm:$0xff]
    %v1284 = vld [vmem:[#allocation9 + $0x30] sm:$0xff]
    %v1285 = vld [vmem:[#allocation9 + $0x38] sm:$0xff]
    %v1286 = vld [vmem:[#allocation9 + $0x40] sm:$0xff]
    %v1287 = vld [vmem:[#allocation9 + $0x48] sm:$0xff]
    %v1288 = vld [vmem:[#allocation9 + $0x50] sm:$0xff]
    %v1289 = vld [vmem:[#allocation9 + $0x58] sm:$0xff]
    %v1290 = vld [vmem:[#allocation9 + $0x60] sm:$0xff]
    %v1291 = vld [vmem:[#allocation9 + $0x68] sm:$0xff]
    %v1292 = vld [vmem:[#allocation9 + $0x70] sm:$0xff]
    %v1293 = vld [vmem:[#allocation9 + $0x78] sm:$0xff]
    %v1294 = vld [vmem:[%s10] sm:$0x1]
    %v1296 = vlaneseq
    %v1297 = vshrl.u32 %v1296, 7
    %v1298 = vsub.s32 0, %v1297
    %v1299 = vrot.slane %v1294, %v1298
    %1301 = vmatprep.subr.mxu0 0.0
    %1302 = vmatpush1.msra.mxu0 %v1293
    %1303 = vmatprep.subr.mxu0 0.0
    %1304 = vmatpush1.msra.mxu0 %v1292
    %1305 = vmatprep.subr.mxu0 0.0
    %1306 = vmatpush1.msra.mxu0 %v1291
    %1307 = vmatprep.subr.mxu0 0.0
    %1308 = vmatpush1.msra.mxu0 %v1290
    %1309 = vmatprep.subr.mxu0 0.0
    %1310 = vmatpush1.msra.mxu0 %v1289
    %1311 = vmatprep.subr.mxu0 0.0
    %1312 = vmatpush1.msra.mxu0 %v1288
    %1313 = vmatprep.subr.mxu0 0.0
    %1314 = vmatpush1.msra.mxu0 %v1287
    %1315 = vmatprep.subr.mxu0 0.0
    %1316 = vmatpush1.msra.mxu0 %v1286
    %1317 = vmatprep.subr.mxu0 0.0
    %1318 = vmatpush1.msra.mxu0 %v1285
    %1319 = vmatprep.subr.mxu0 0.0
    %1320 = vmatpush1.msra.mxu0 %v1284
    %1321 = vmatprep.subr.mxu0 0.0
    %1322 = vmatpush1.msra.mxu0 %v1283
    %1323 = vmatprep.subr.mxu0 0.0
    %1324 = vmatpush1.msra.mxu0 %v1282
    %1325 = vmatprep.subr.mxu0 0.0
    %1326 = vmatpush1.msra.mxu0 %v1281
    %1327 = vmatprep.subr.mxu0 0.0
    %1328 = vmatpush1.msra.mxu0 %v1280
    %1329 = vmatprep.subr.mxu0 0.0
    %1330 = vmatpush1.msra.mxu0 %v1279
    %1331 = vmatprep.subr.mxu0 0.0
    %1332 = vmatpush1.msra.mxu0 %v1278
    %1333 = vmatprep.subr.mxu0 0.0
    %1334 = vmatpush2.msra.mxu0 0.0
    %1335 = vmatprep.subr.mxu0 0.0
    %1336 = vmatpush2.msra.mxu0 0.0
    %1337 = vmatprep.subr.mxu0 0.0
    %1338 = vmatpush2.msra.mxu0 0.0
    %1339 = vmatprep.subr.mxu0 0.0
    %1340 = vmatpush2.msra.mxu0 0.0
    %1341 = vmatprep.subr.mxu0 0.0
    %1342 = vmatpush2.msra.mxu0 0.0
    %1343 = vmatprep.subr.mxu0 0.0
    %1344 = vmatpush2.msra.mxu0 0.0
    %1345 = vmatprep.subr.mxu0 0.0
    %1346 = vmatpush2.msra.mxu0 0.0
    %1347 = vmatprep.subr.mxu0 0.0
    %1348 = vmatpush2.msra.mxu0 0.0
    %1349 = vmatprep.subr.mxu0 0.0
    %1350 = vmatpush2.msra.mxu0 0.0
    %1351 = vmatprep.subr.mxu0 0.0
    %1352 = vmatpush2.msra.mxu0 0.0
    %1353 = vmatprep.subr.mxu0 0.0
    %1354 = vmatpush2.msra.mxu0 0.0
    %1355 = vmatprep.subr.mxu0 0.0
    %1356 = vmatpush2.msra.mxu0 0.0
    %1357 = vmatprep.subr.mxu0 0.0
    %1358 = vmatpush2.msra.mxu0 0.0
    %1359 = vmatprep.subr.mxu0 0.0
    %1360 = vmatpush2.msra.mxu0 0.0
    %1361 = vmatprep.subr.mxu0 0.0
    %1362 = vmatpush2.msra.mxu0 0.0
    %1363 = vmatprep.subr.mxu0 0.0
    %1364 = vmatpush2.msra.mxu0 0.0
    %1365 = vmatprep.mubr.f32.mxu0 0.0
    %1366 = vmatmul.mubr.f32.gmra.mxu0 %v1262
    %v1367 = vpop.f32.mrf.mxu0
    %v1368 = vadd.f32 %v1299, %v1367
    %v1369 = vpop.f32.mrf.mxu0
    %1370 = vmatprep.mubr.f32.mxu0 0.0
    %1371 = vmatmul.mubr.f32.gmra.mxu0 %v1263
    %v1372 = vpop.f32.mrf.mxu0
    %v1373 = vadd.f32 %v1299, %v1372
    %v1374 = vpop.f32.mrf.mxu0
    %1375 = vmatprep.mubr.f32.mxu0 0.0
    %1376 = vmatmul.mubr.f32.gmra.mxu0 %v1264
    %v1377 = vpop.f32.mrf.mxu0
    %v1378 = vadd.f32 %v1299, %v1377
    %v1379 = vpop.f32.mrf.mxu0
    %1380 = vmatprep.mubr.f32.mxu0 0.0
    %1381 = vmatmul.mubr.f32.gmra.mxu0 %v1265
    %v1382 = vpop.f32.mrf.mxu0
    %v1383 = vadd.f32 %v1299, %v1382
    %v1384 = vpop.f32.mrf.mxu0
    %1385 = vmatprep.mubr.f32.mxu0 0.0
    %1386 = vmatmul.mubr.f32.gmra.mxu0 %v1266
    %v1387 = vpop.f32.mrf.mxu0
    %v1388 = vadd.f32 %v1299, %v1387
    %v1389 = vpop.f32.mrf.mxu0
    %1390 = vmatprep.mubr.f32.mxu0 0.0
    %1391 = vmatmul.mubr.f32.gmra.mxu0 %v1267
    %v1392 = vpop.f32.mrf.mxu0
    %v1393 = vadd.f32 %v1299, %v1392
    %v1394 = vpop.f32.mrf.mxu0
    %1395 = vmatprep.mubr.f32.mxu0 0.0
    %1396 = vmatmul.mubr.f32.gmra.mxu0 %v1268
    %v1397 = vpop.f32.mrf.mxu0
    %v1398 = vadd.f32 %v1299, %v1397
    %v1399 = vpop.f32.mrf.mxu0
    %1400 = vmatprep.mubr.f32.mxu0 0.0
    %1401 = vmatmul.mubr.f32.gmra.mxu0 %v1269
    %v1402 = vpop.f32.mrf.mxu0
    %v1403 = vadd.f32 %v1299, %v1402
    %v1404 = vpop.f32.mrf.mxu0
    %1405 = vmatprep.mubr.f32.mxu0 0.0
    %1406 = vmatmul.mubr.f32.gmra.mxu0 %v1270
    %v1407 = vpop.f32.mrf.mxu0
    %v1408 = vadd.f32 %v1299, %v1407
    %v1409 = vpop.f32.mrf.mxu0
    %1410 = vmatprep.mubr.f32.mxu0 0.0
    %1411 = vmatmul.mubr.f32.gmra.mxu0 %v1271
    %v1412 = vpop.f32.mrf.mxu0
    %v1413 = vadd.f32 %v1299, %v1412
    %v1414 = vpop.f32.mrf.mxu0
    %1415 = vmatprep.mubr.f32.mxu0 0.0
    %1416 = vmatmul.mubr.f32.gmra.mxu0 %v1272
    %v1417 = vpop.f32.mrf.mxu0
    %v1418 = vadd.f32 %v1299, %v1417
    %v1419 = vpop.f32.mrf.mxu0
    %1420 = vmatprep.mubr.f32.mxu0 0.0
    %1421 = vmatmul.mubr.f32.gmra.mxu0 %v1273
    %v1422 = vpop.f32.mrf.mxu0
    %v1423 = vadd.f32 %v1299, %v1422
    %v1424 = vpop.f32.mrf.mxu0
    %1425 = vmatprep.mubr.f32.mxu0 0.0
    %1426 = vmatmul.mubr.f32.gmra.mxu0 %v1274
    %v1427 = vpop.f32.mrf.mxu0
    %v1428 = vadd.f32 %v1299, %v1427
    %v1429 = vpop.f32.mrf.mxu0
    %1430 = vmatprep.mubr.f32.mxu0 0.0
    %1431 = vmatmul.mubr.f32.gmra.mxu0 %v1275
    %v1432 = vpop.f32.mrf.mxu0
    %v1433 = vadd.f32 %v1299, %v1432
    %v1434 = vpop.f32.mrf.mxu0
    %1435 = vmatprep.mubr.f32.mxu0 0.0
    %1436 = vmatmul.mubr.f32.gmra.mxu0 %v1276
    %v1437 = vpop.f32.mrf.mxu0
    %v1438 = vadd.f32 %v1299, %v1437
    %v1439 = vpop.f32.mrf.mxu0
    %1440 = vmatprep.mubr.f32.mxu0 0.0
    %1441 = vmatmul.mubr.f32.gmra.mxu0 %v1277
    %v1442 = vpop.f32.mrf.mxu0
    %v1443 = vadd.f32 %v1299, %v1442
    %v1444 = vpop.f32.mrf.mxu0
    %1445 = vdwg.mxu0
    %v1446 = vld [vmem:[%s8] sm:$0xff]
    %1447 = vmatprep.subr.mxu0 0.0
    %1448 = vmatpush1.msra.mxu0 0.0
    %1449 = vmatprep.subr.mxu0 0.0
    %1450 = vmatpush1.msra.mxu0 0.0
    %1451 = vmatprep.subr.mxu0 0.0
    %1452 = vmatpush1.msra.mxu0 0.0
    %1453 = vmatprep.subr.mxu0 0.0
    %1454 = vmatpush1.msra.mxu0 0.0
    %1455 = vmatprep.subr.mxu0 0.0
    %1456 = vmatpush1.msra.mxu0 0.0
    %1457 = vmatprep.subr.mxu0 0.0
    %1458 = vmatpush1.msra.mxu0 0.0
    %1459 = vmatprep.subr.mxu0 0.0
    %1460 = vmatpush1.msra.mxu0 0.0
    %1461 = vmatprep.subr.mxu0 0.0
    %1462 = vmatpush1.msra.mxu0 0.0
    %1463 = vmatprep.subr.mxu0 0.0
    %1464 = vmatpush1.msra.mxu0 0.0
    %1465 = vmatprep.subr.mxu0 0.0
    %1466 = vmatpush1.msra.mxu0 0.0
    %1467 = vmatprep.subr.mxu0 0.0
    %1468 = vmatpush1.msra.mxu0 0.0
    %1469 = vmatprep.subr.mxu0 0.0
    %1470 = vmatpush1.msra.mxu0 0.0
    %1471 = vmatprep.subr.mxu0 0.0
    %1472 = vmatpush1.msra.mxu0 0.0
    %1473 = vmatprep.subr.mxu0 0.0
    %1474 = vmatpush1.msra.mxu0 0.0
    %1475 = vmatprep.subr.mxu0 0.0
    %1476 = vmatpush1.msra.mxu0 0.0
    %1477 = vmatprep.subr.mxu0 0.0
    %1478 = vmatpush1.msra.mxu0 %v1446
    %1479 = vmatprep.subr.mxu0 0.0
    %1480 = vmatpush2.msra.mxu0 0.0
    %1481 = vmatprep.subr.mxu0 0.0
    %1482 = vmatpush2.msra.mxu0 0.0
    %1483 = vmatprep.subr.mxu0 0.0
    %1484 = vmatpush2.msra.mxu0 0.0
    %1485 = vmatprep.subr.mxu0 0.0
    %1486 = vmatpush2.msra.mxu0 0.0
    %1487 = vmatprep.subr.mxu0 0.0
    %1488 = vmatpush2.msra.mxu0 0.0
    %1489 = vmatprep.subr.mxu0 0.0
    %1490 = vmatpush2.msra.mxu0 0.0
    %1491 = vmatprep.subr.mxu0 0.0
    %1492 = vmatpush2.msra.mxu0 0.0
    %1493 = vmatprep.subr.mxu0 0.0
    %1494 = vmatpush2.msra.mxu0 0.0
    %1495 = vmatprep.subr.mxu0 0.0
    %1496 = vmatpush2.msra.mxu0 0.0
    %1497 = vmatprep.subr.mxu0 0.0
    %1498 = vmatpush2.msra.mxu0 0.0
    %1499 = vmatprep.subr.mxu0 0.0
    %1500 = vmatpush2.msra.mxu0 0.0
    %1501 = vmatprep.subr.mxu0 0.0
    %1502 = vmatpush2.msra.mxu0 0.0
    %1503 = vmatprep.subr.mxu0 0.0
    %1504 = vmatpush2.msra.mxu0 0.0
    %1505 = vmatprep.subr.mxu0 0.0
    %1506 = vmatpush2.msra.mxu0 0.0
    %1507 = vmatprep.subr.mxu0 0.0
    %1508 = vmatpush2.msra.mxu0 0.0
    %1509 = vmatprep.subr.mxu0 0.0
    %1510 = vmatpush2.msra.mxu0 0.0
    %1511 = vmatprep.mubr.f32.mxu0 0.0
    %1512 = vmatmul.mubr.f32.gmra.mxu0 %v1031
    %v1513 = vpop.f32.mrf.mxu0
    %v1514 = vadd.f32 0.0, %v1513
    %v1515 = vpop.f32.mrf.mxu0
    %1516 = vmatprep.mubr.f32.mxu0 0.0
    %1517 = vmatmul.mubr.f32.gmra.mxu0 %v1034
    %v1518 = vpop.f32.mrf.mxu0
    %v1519 = vadd.f32 0.0, %v1518
    %v1520 = vpop.f32.mrf.mxu0
    %1521 = vmatprep.mubr.f32.mxu0 0.0
    %1522 = vmatmul.mubr.f32.gmra.mxu0 %v1037
    %v1523 = vpop.f32.mrf.mxu0
    %v1524 = vadd.f32 0.0, %v1523
    %v1525 = vpop.f32.mrf.mxu0
    %1526 = vmatprep.mubr.f32.mxu0 0.0
    %1527 = vmatmul.mubr.f32.gmra.mxu0 %v1040
    %v1528 = vpop.f32.mrf.mxu0
    %v1529 = vadd.f32 0.0, %v1528
    %v1530 = vpop.f32.mrf.mxu0
    %1531 = vmatprep.mubr.f32.mxu0 0.0
    %1532 = vmatmul.mubr.f32.gmra.mxu0 %v1043
    %v1533 = vpop.f32.mrf.mxu0
    %v1534 = vadd.f32 0.0, %v1533
    %v1535 = vpop.f32.mrf.mxu0
    %1536 = vmatprep.mubr.f32.mxu0 0.0
    %1537 = vmatmul.mubr.f32.gmra.mxu0 %v1046
    %v1538 = vpop.f32.mrf.mxu0
    %v1539 = vadd.f32 0.0, %v1538
    %v1540 = vpop.f32.mrf.mxu0
    %1541 = vmatprep.mubr.f32.mxu0 0.0
    %1542 = vmatmul.mubr.f32.gmra.mxu0 %v1049
    %v1543 = vpop.f32.mrf.mxu0
    %v1544 = vadd.f32 0.0, %v1543
    %v1545 = vpop.f32.mrf.mxu0
    %1546 = vmatprep.mubr.f32.mxu0 0.0
    %1547 = vmatmul.mubr.f32.gmra.mxu0 %v1052
    %v1548 = vpop.f32.mrf.mxu0
    %v1549 = vadd.f32 0.0, %v1548
    %v1550 = vpop.f32.mrf.mxu0
    %1551 = vmatprep.mubr.f32.mxu0 0.0
    %1552 = vmatmul.mubr.f32.gmra.mxu0 %v1055
    %v1553 = vpop.f32.mrf.mxu0
    %v1554 = vadd.f32 0.0, %v1553
    %v1555 = vpop.f32.mrf.mxu0
    %1556 = vmatprep.mubr.f32.mxu0 0.0
    %1557 = vmatmul.mubr.f32.gmra.mxu0 %v1058
    %v1558 = vpop.f32.mrf.mxu0
    %v1559 = vadd.f32 0.0, %v1558
    %v1560 = vpop.f32.mrf.mxu0
    %1561 = vmatprep.mubr.f32.mxu0 0.0
    %1562 = vmatmul.mubr.f32.gmra.mxu0 %v1061
    %v1563 = vpop.f32.mrf.mxu0
    %v1564 = vadd.f32 0.0, %v1563
    %v1565 = vpop.f32.mrf.mxu0
    %1566 = vmatprep.mubr.f32.mxu0 0.0
    %1567 = vmatmul.mubr.f32.gmra.mxu0 %v1064
    %v1568 = vpop.f32.mrf.mxu0
    %v1569 = vadd.f32 0.0, %v1568
    %v1570 = vpop.f32.mrf.mxu0
    %1571 = vmatprep.mubr.f32.mxu0 0.0
    %1572 = vmatmul.mubr.f32.gmra.mxu0 %v1067
    %v1573 = vpop.f32.mrf.mxu0
    %v1574 = vadd.f32 0.0, %v1573
    %v1575 = vpop.f32.mrf.mxu0
    %1576 = vmatprep.mubr.f32.mxu0 0.0
    %1577 = vmatmul.mubr.f32.gmra.mxu0 %v1070
    %v1578 = vpop.f32.mrf.mxu0
    %v1579 = vadd.f32 0.0, %v1578
    %v1580 = vpop.f32.mrf.mxu0
    %1581 = vmatprep.mubr.f32.mxu0 0.0
    %1582 = vmatmul.mubr.f32.gmra.mxu0 %v1073
    %v1583 = vpop.f32.mrf.mxu0
    %v1584 = vadd.f32 0.0, %v1583
    %v1585 = vpop.f32.mrf.mxu0
    %1586 = vmatprep.mubr.f32.mxu0 0.0
    %1587 = vmatmul.mubr.f32.gmra.mxu0 %v1076
    %v1588 = vpop.f32.mrf.mxu0
    %v1589 = vadd.f32 0.0, %v1588
    %v1590 = vpop.f32.mrf.mxu0
    %1591 = vdwg.mxu0
    %v1592 = vadd.f32 %v1368, %v1514
    %v1593 = vadd.f32 %v1373, %v1519
    %v1594 = vadd.f32 %v1378, %v1524
    %v1595 = vadd.f32 %v1383, %v1529
    %v1596 = vadd.f32 %v1388, %v1534
    %v1597 = vadd.f32 %v1393, %v1539
    %v1598 = vadd.f32 %v1398, %v1544
    %v1599 = vadd.f32 %v1403, %v1549
    %v1600 = vadd.f32 %v1408, %v1554
    %v1601 = vadd.f32 %v1413, %v1559
    %v1602 = vadd.f32 %v1418, %v1564
    %v1603 = vadd.f32 %v1423, %v1569
    %v1604 = vadd.f32 %v1428, %v1574
    %v1605 = vadd.f32 %v1433, %v1579
    %v1606 = vadd.f32 %v1438, %v1584
    %v1607 = vadd.f32 %v1443, %v1589
    %1608 = vst [vmem:[#allocation20] sm:$0xff] %v1592
    %1609 = vst [vmem:[#allocation20 + $0x8] sm:$0xff] %v1593
    %1610 = vst [vmem:[#allocation20 + $0x10] sm:$0xff] %v1594
    %1611 = vst [vmem:[#allocation20 + $0x18] sm:$0xff] %v1595
    %1612 = vst [vmem:[#allocation20 + $0x20] sm:$0xff] %v1596
    %1613 = vst [vmem:[#allocation20 + $0x28] sm:$0xff] %v1597
    %1614 = vst [vmem:[#allocation20 + $0x30] sm:$0xff] %v1598
    %1615 = vst [vmem:[#allocation20 + $0x38] sm:$0xff] %v1599
    %1616 = vst [vmem:[#allocation20 + $0x40] sm:$0xff] %v1600
    %1617 = vst [vmem:[#allocation20 + $0x48] sm:$0xff] %v1601
    %1618 = vst [vmem:[#allocation20 + $0x50] sm:$0xff] %v1602
    %1619 = vst [vmem:[#allocation20 + $0x58] sm:$0xff] %v1603
    %1620 = vst [vmem:[#allocation20 + $0x60] sm:$0xff] %v1604
    %1621 = vst [vmem:[#allocation20 + $0x68] sm:$0xff] %v1605
    %1622 = vst [vmem:[#allocation20 + $0x70] sm:$0xff] %v1606
    %1623 = vst [vmem:[#allocation20 + $0x78] sm:$0xff] %v1607
    %v1624 = vld [vmem:[#allocation11] sm:$0xff]
    %v1625 = vld [vmem:[#allocation11 + $0x8] sm:$0xff]
    %v1626 = vld [vmem:[#allocation11 + $0x10] sm:$0xff]
    %v1627 = vld [vmem:[#allocation11 + $0x18] sm:$0xff]
    %v1628 = vld [vmem:[#allocation11 + $0x20] sm:$0xff]
    %v1629 = vld [vmem:[#allocation11 + $0x28] sm:$0xff]
    %v1630 = vld [vmem:[#allocation11 + $0x30] sm:$0xff]
    %v1631 = vld [vmem:[#allocation11 + $0x38] sm:$0xff]
    %v1632 = vld [vmem:[#allocation11 + $0x40] sm:$0xff]
    %v1633 = vld [vmem:[#allocation11 + $0x48] sm:$0xff]
    %v1634 = vld [vmem:[#allocation11 + $0x50] sm:$0xff]
    %v1635 = vld [vmem:[#allocation11 + $0x58] sm:$0xff]
    %v1636 = vld [vmem:[#allocation11 + $0x60] sm:$0xff]
    %v1637 = vld [vmem:[#allocation11 + $0x68] sm:$0xff]
    %v1638 = vld [vmem:[#allocation11 + $0x70] sm:$0xff]
    %v1639 = vld [vmem:[#allocation11 + $0x78] sm:$0xff]
    %v1640 = vld [vmem:[#allocation12] sm:$0xff]
    %v1641 = vld [vmem:[#allocation12 + $0x8] sm:$0xff]
    %v1642 = vld [vmem:[#allocation12 + $0x10] sm:$0xff]
    %v1643 = vld [vmem:[#allocation12 + $0x18] sm:$0xff]
    %v1644 = vld [vmem:[#allocation12 + $0x20] sm:$0xff]
    %v1645 = vld [vmem:[#allocation12 + $0x28] sm:$0xff]
    %v1646 = vld [vmem:[#allocation12 + $0x30] sm:$0xff]
    %v1647 = vld [vmem:[#allocation12 + $0x38] sm:$0xff]
    %v1648 = vld [vmem:[#allocation12 + $0x40] sm:$0xff]
    %v1649 = vld [vmem:[#allocation12 + $0x48] sm:$0xff]
    %v1650 = vld [vmem:[#allocation12 + $0x50] sm:$0xff]
    %v1651 = vld [vmem:[#allocation12 + $0x58] sm:$0xff]
    %v1652 = vld [vmem:[#allocation12 + $0x60] sm:$0xff]
    %v1653 = vld [vmem:[#allocation12 + $0x68] sm:$0xff]
    %v1654 = vld [vmem:[#allocation12 + $0x70] sm:$0xff]
    %v1655 = vld [vmem:[#allocation12 + $0x78] sm:$0xff]
    %1656 = vmatprep.subr.mxu0 0.0
    %1657 = vmatpush1.msra.mxu0 %v1655
    %1658 = vmatprep.subr.mxu0 0.0
    %1659 = vmatpush1.msra.mxu0 %v1654
    %1660 = vmatprep.subr.mxu0 0.0
    %1661 = vmatpush1.msra.mxu0 %v1653
    %1662 = vmatprep.subr.mxu0 0.0
    %1663 = vmatpush1.msra.mxu0 %v1652
    %1664 = vmatprep.subr.mxu0 0.0
    %1665 = vmatpush1.msra.mxu0 %v1651
    %1666 = vmatprep.subr.mxu0 0.0
    %1667 = vmatpush1.msra.mxu0 %v1650
    %1668 = vmatprep.subr.mxu0 0.0
    %1669 = vmatpush1.msra.mxu0 %v1649
    %1670 = vmatprep.subr.mxu0 0.0
    %1671 = vmatpush1.msra.mxu0 %v1648
    %1672 = vmatprep.subr.mxu0 0.0
    %1673 = vmatpush1.msra.mxu0 %v1647
    %1674 = vmatprep.subr.mxu0 0.0
    %1675 = vmatpush1.msra.mxu0 %v1646
    %1676 = vmatprep.subr.mxu0 0.0
    %1677 = vmatpush1.msra.mxu0 %v1645
    %1678 = vmatprep.subr.mxu0 0.0
    %1679 = vmatpush1.msra.mxu0 %v1644
    %1680 = vmatprep.subr.mxu0 0.0
    %1681 = vmatpush1.msra.mxu0 %v1643
    %1682 = vmatprep.subr.mxu0 0.0
    %1683 = vmatpush1.msra.mxu0 %v1642
    %1684 = vmatprep.subr.mxu0 0.0
    %1685 = vmatpush1.msra.mxu0 %v1641
    %1686 = vmatprep.subr.mxu0 0.0
    %1687 = vmatpush1.msra.mxu0 %v1640
    %1688 = vmatprep.subr.mxu0 0.0
    %1689 = vmatpush2.msra.mxu0 0.0
    %1690 = vmatprep.subr.mxu0 0.0
    %1691 = vmatpush2.msra.mxu0 0.0
    %1692 = vmatprep.subr.mxu0 0.0
    %1693 = vmatpush2.msra.mxu0 0.0
    %1694 = vmatprep.subr.mxu0 0.0
    %1695 = vmatpush2.msra.mxu0 0.0
    %1696 = vmatprep.subr.mxu0 0.0
    %1697 = vmatpush2.msra.mxu0 0.0
    %1698 = vmatprep.subr.mxu0 0.0
    %1699 = vmatpush2.msra.mxu0 0.0
    %1700 = vmatprep.subr.mxu0 0.0
    %1701 = vmatpush2.msra.mxu0 0.0
    %1702 = vmatprep.subr.mxu0 0.0
    %1703 = vmatpush2.msra.mxu0 0.0
    %1704 = vmatprep.subr.mxu0 0.0
    %1705 = vmatpush2.msra.mxu0 0.0
    %1706 = vmatprep.subr.mxu0 0.0
    %1707 = vmatpush2.msra.mxu0 0.0
    %1708 = vmatprep.subr.mxu0 0.0
    %1709 = vmatpush2.msra.mxu0 0.0
    %1710 = vmatprep.subr.mxu0 0.0
    %1711 = vmatpush2.msra.mxu0 0.0
    %1712 = vmatprep.subr.mxu0 0.0
    %1713 = vmatpush2.msra.mxu0 0.0
    %1714 = vmatprep.subr.mxu0 0.0
    %1715 = vmatpush2.msra.mxu0 0.0
    %1716 = vmatprep.subr.mxu0 0.0
    %1717 = vmatpush2.msra.mxu0 0.0
    %1718 = vmatprep.subr.mxu0 0.0
    %1719 = vmatpush2.msra.mxu0 0.0
    %1720 = vmatprep.mubr.f32.mxu0 0.0
    %1721 = vmatmul.mubr.f32.gmra.mxu0 %v1592
    %v1722 = vpop.f32.mrf.mxu0
    %v1723 = vadd.f32 0.0, %v1722
    %v1724 = vpop.f32.mrf.mxu0
    %1725 = vmatprep.mubr.f32.mxu0 0.0
    %1726 = vmatmul.mubr.f32.gmra.mxu0 %v1593
    %v1727 = vpop.f32.mrf.mxu0
    %v1728 = vadd.f32 0.0, %v1727
    %v1729 = vpop.f32.mrf.mxu0
    %1730 = vmatprep.mubr.f32.mxu0 0.0
    %1731 = vmatmul.mubr.f32.gmra.mxu0 %v1594
    %v1732 = vpop.f32.mrf.mxu0
    %v1733 = vadd.f32 0.0, %v1732
    %v1734 = vpop.f32.mrf.mxu0
    %1735 = vmatprep.mubr.f32.mxu0 0.0
    %1736 = vmatmul.mubr.f32.gmra.mxu0 %v1595
    %v1737 = vpop.f32.mrf.mxu0
    %v1738 = vadd.f32 0.0, %v1737
    %v1739 = vpop.f32.mrf.mxu0
    %1740 = vmatprep.mubr.f32.mxu0 0.0
    %1741 = vmatmul.mubr.f32.gmra.mxu0 %v1596
    %v1742 = vpop.f32.mrf.mxu0
    %v1743 = vadd.f32 0.0, %v1742
    %v1744 = vpop.f32.mrf.mxu0
    %1745 = vmatprep.mubr.f32.mxu0 0.0
    %1746 = vmatmul.mubr.f32.gmra.mxu0 %v1597
    %v1747 = vpop.f32.mrf.mxu0
    %v1748 = vadd.f32 0.0, %v1747
    %v1749 = vpop.f32.mrf.mxu0
    %1750 = vmatprep.mubr.f32.mxu0 0.0
    %1751 = vmatmul.mubr.f32.gmra.mxu0 %v1598
    %v1752 = vpop.f32.mrf.mxu0
    %v1753 = vadd.f32 0.0, %v1752
    %v1754 = vpop.f32.mrf.mxu0
    %1755 = vmatprep.mubr.f32.mxu0 0.0
    %1756 = vmatmul.mubr.f32.gmra.mxu0 %v1599
    %v1757 = vpop.f32.mrf.mxu0
    %v1758 = vadd.f32 0.0, %v1757
    %v1759 = vpop.f32.mrf.mxu0
    %1760 = vmatprep.mubr.f32.mxu0 0.0
    %1761 = vmatmul.mubr.f32.gmra.mxu0 %v1600
    %v1762 = vpop.f32.mrf.mxu0
    %v1763 = vadd.f32 0.0, %v1762
    %v1764 = vpop.f32.mrf.mxu0
    %1765 = vmatprep.mubr.f32.mxu0 0.0
    %1766 = vmatmul.mubr.f32.gmra.mxu0 %v1601
    %v1767 = vpop.f32.mrf.mxu0
    %v1768 = vadd.f32 0.0, %v1767
    %v1769 = vpop.f32.mrf.mxu0
    %1770 = vmatprep.mubr.f32.mxu0 0.0
    %1771 = vmatmul.mubr.f32.gmra.mxu0 %v1602
    %v1772 = vpop.f32.mrf.mxu0
    %v1773 = vadd.f32 0.0, %v1772
    %v1774 = vpop.f32.mrf.mxu0
    %1775 = vmatprep.mubr.f32.mxu0 0.0
    %1776 = vmatmul.mubr.f32.gmra.mxu0 %v1603
    %v1777 = vpop.f32.mrf.mxu0
    %v1778 = vadd.f32 0.0, %v1777
    %v1779 = vpop.f32.mrf.mxu0
    %1780 = vmatprep.mubr.f32.mxu0 0.0
    %1781 = vmatmul.mubr.f32.gmra.mxu0 %v1604
    %v1782 = vpop.f32.mrf.mxu0
    %v1783 = vadd.f32 0.0, %v1782
    %v1784 = vpop.f32.mrf.mxu0
    %1785 = vmatprep.mubr.f32.mxu0 0.0
    %1786 = vmatmul.mubr.f32.gmra.mxu0 %v1605
    %v1787 = vpop.f32.mrf.mxu0
    %v1788 = vadd.f32 0.0, %v1787
    %v1789 = vpop.f32.mrf.mxu0
    %1790 = vmatprep.mubr.f32.mxu0 0.0
    %1791 = vmatmul.mubr.f32.gmra.mxu0 %v1606
    %v1792 = vpop.f32.mrf.mxu0
    %v1793 = vadd.f32 0.0, %v1792
    %v1794 = vpop.f32.mrf.mxu0
    %1795 = vmatprep.mubr.f32.mxu0 0.0
    %1796 = vmatmul.mubr.f32.gmra.mxu0 %v1607
    %v1797 = vpop.f32.mrf.mxu0
    %v1798 = vadd.f32 0.0, %v1797
    %v1799 = vpop.f32.mrf.mxu0
    %1800 = vdwg.mxu0
    %1801 = vmatprep.subr.mxu0 0.0
    %1802 = vmatpush1.msra.mxu0 %v1639
    %1803 = vmatprep.subr.mxu0 0.0
    %1804 = vmatpush1.msra.mxu0 %v1638
    %1805 = vmatprep.subr.mxu0 0.0
    %1806 = vmatpush1.msra.mxu0 %v1637
    %1807 = vmatprep.subr.mxu0 0.0
    %1808 = vmatpush1.msra.mxu0 %v1636
    %1809 = vmatprep.subr.mxu0 0.0
    %1810 = vmatpush1.msra.mxu0 %v1635
    %1811 = vmatprep.subr.mxu0 0.0
    %1812 = vmatpush1.msra.mxu0 %v1634
    %1813 = vmatprep.subr.mxu0 0.0
    %1814 = vmatpush1.msra.mxu0 %v1633
    %1815 = vmatprep.subr.mxu0 0.0
    %1816 = vmatpush1.msra.mxu0 %v1632
    %1817 = vmatprep.subr.mxu0 0.0
    %1818 = vmatpush1.msra.mxu0 %v1631
    %1819 = vmatprep.subr.mxu0 0.0
    %1820 = vmatpush1.msra.mxu0 %v1630
    %1821 = vmatprep.subr.mxu0 0.0
    %1822 = vmatpush1.msra.mxu0 %v1629
    %1823 = vmatprep.subr.mxu0 0.0
    %1824 = vmatpush1.msra.mxu0 %v1628
    %1825 = vmatprep.subr.mxu0 0.0
    %1826 = vmatpush1.msra.mxu0 %v1627
    %1827 = vmatprep.subr.mxu0 0.0
    %1828 = vmatpush1.msra.mxu0 %v1626
    %1829 = vmatprep.subr.mxu0 0.0
    %1830 = vmatpush1.msra.mxu0 %v1625
    %1831 = vmatprep.subr.mxu0 0.0
    %1832 = vmatpush1.msra.mxu0 %v1624
    %1833 = vmatprep.subr.mxu0 0.0
    %1834 = vmatpush2.msra.mxu0 0.0
    %1835 = vmatprep.subr.mxu0 0.0
    %1836 = vmatpush2.msra.mxu0 0.0
    %1837 = vmatprep.subr.mxu0 0.0
    %1838 = vmatpush2.msra.mxu0 0.0
    %1839 = vmatprep.subr.mxu0 0.0
    %1840 = vmatpush2.msra.mxu0 0.0
    %1841 = vmatprep.subr.mxu0 0.0
    %1842 = vmatpush2.msra.mxu0 0.0
    %1843 = vmatprep.subr.mxu0 0.0
    %1844 = vmatpush2.msra.mxu0 0.0
    %1845 = vmatprep.subr.mxu0 0.0
    %1846 = vmatpush2.msra.mxu0 0.0
    %1847 = vmatprep.subr.mxu0 0.0
    %1848 = vmatpush2.msra.mxu0 0.0
    %1849 = vmatprep.subr.mxu0 0.0
    %1850 = vmatpush2.msra.mxu0 0.0
    %1851 = vmatprep.subr.mxu0 0.0
    %1852 = vmatpush2.msra.mxu0 0.0
    %1853 = vmatprep.subr.mxu0 0.0
    %1854 = vmatpush2.msra.mxu0 0.0
    %1855 = vmatprep.subr.mxu0 0.0
    %1856 = vmatpush2.msra.mxu0 0.0
    %1857 = vmatprep.subr.mxu0 0.0
    %1858 = vmatpush2.msra.mxu0 0.0
    %1859 = vmatprep.subr.mxu0 0.0
    %1860 = vmatpush2.msra.mxu0 0.0
    %1861 = vmatprep.subr.mxu0 0.0
    %1862 = vmatpush2.msra.mxu0 0.0
    %1863 = vmatprep.subr.mxu0 0.0
    %1864 = vmatpush2.msra.mxu0 0.0
    %1865 = vmatprep.mubr.f32.mxu0 0.0
    %1866 = vmatmul.mubr.f32.gmra.mxu0 %v628
    %v1867 = vpop.f32.mrf.mxu0
    %v1868 = vadd.f32 %v1723, %v1867
    %v1869 = vpop.f32.mrf.mxu0
    %1870 = vmatprep.mubr.f32.mxu0 0.0
    %1871 = vmatmul.mubr.f32.gmra.mxu0 %v633
    %v1872 = vpop.f32.mrf.mxu0
    %v1873 = vadd.f32 %v1728, %v1872
    %v1874 = vpop.f32.mrf.mxu0
    %1875 = vmatprep.mubr.f32.mxu0 0.0
    %1876 = vmatmul.mubr.f32.gmra.mxu0 %v638
    %v1877 = vpop.f32.mrf.mxu0
    %v1878 = vadd.f32 %v1733, %v1877
    %v1879 = vpop.f32.mrf.mxu0
    %1880 = vmatprep.mubr.f32.mxu0 0.0
    %1881 = vmatmul.mubr.f32.gmra.mxu0 %v643
    %v1882 = vpop.f32.mrf.mxu0
    %v1883 = vadd.f32 %v1738, %v1882
    %v1884 = vpop.f32.mrf.mxu0
    %1885 = vmatprep.mubr.f32.mxu0 0.0
    %1886 = vmatmul.mubr.f32.gmra.mxu0 %v648
    %v1887 = vpop.f32.mrf.mxu0
    %v1888 = vadd.f32 %v1743, %v1887
    %v1889 = vpop.f32.mrf.mxu0
    %1890 = vmatprep.mubr.f32.mxu0 0.0
    %1891 = vmatmul.mubr.f32.gmra.mxu0 %v653
    %v1892 = vpop.f32.mrf.mxu0
    %v1893 = vadd.f32 %v1748, %v1892
    %v1894 = vpop.f32.mrf.mxu0
    %1895 = vmatprep.mubr.f32.mxu0 0.0
    %1896 = vmatmul.mubr.f32.gmra.mxu0 %v658
    %v1897 = vpop.f32.mrf.mxu0
    %v1898 = vadd.f32 %v1753, %v1897
    %v1899 = vpop.f32.mrf.mxu0
    %1900 = vmatprep.mubr.f32.mxu0 0.0
    %1901 = vmatmul.mubr.f32.gmra.mxu0 %v663
    %v1902 = vpop.f32.mrf.mxu0
    %v1903 = vadd.f32 %v1758, %v1902
    %v1904 = vpop.f32.mrf.mxu0
    %1905 = vmatprep.mubr.f32.mxu0 0.0
    %1906 = vmatmul.mubr.f32.gmra.mxu0 %v668
    %v1907 = vpop.f32.mrf.mxu0
    %v1908 = vadd.f32 %v1763, %v1907
    %v1909 = vpop.f32.mrf.mxu0
    %1910 = vmatprep.mubr.f32.mxu0 0.0
    %1911 = vmatmul.mubr.f32.gmra.mxu0 %v673
    %v1912 = vpop.f32.mrf.mxu0
    %v1913 = vadd.f32 %v1768, %v1912
    %v1914 = vpop.f32.mrf.mxu0
    %1915 = vmatprep.mubr.f32.mxu0 0.0
    %1916 = vmatmul.mubr.f32.gmra.mxu0 %v678
    %v1917 = vpop.f32.mrf.mxu0
    %v1918 = vadd.f32 %v1773, %v1917
    %v1919 = vpop.f32.mrf.mxu0
    %1920 = vmatprep.mubr.f32.mxu0 0.0
    %1921 = vmatmul.mubr.f32.gmra.mxu0 %v683
    %v1922 = vpop.f32.mrf.mxu0
    %v1923 = vadd.f32 %v1778, %v1922
    %v1924 = vpop.f32.mrf.mxu0
    %1925 = vmatprep.mubr.f32.mxu0 0.0
    %1926 = vmatmul.mubr.f32.gmra.mxu0 %v688
    %v1927 = vpop.f32.mrf.mxu0
    %v1928 = vadd.f32 %v1783, %v1927
    %v1929 = vpop.f32.mrf.mxu0
    %1930 = vmatprep.mubr.f32.mxu0 0.0
    %1931 = vmatmul.mubr.f32.gmra.mxu0 %v693
    %v1932 = vpop.f32.mrf.mxu0
    %v1933 = vadd.f32 %v1788, %v1932
    %v1934 = vpop.f32.mrf.mxu0
    %1935 = vmatprep.mubr.f32.mxu0 0.0
    %1936 = vmatmul.mubr.f32.gmra.mxu0 %v698
    %v1937 = vpop.f32.mrf.mxu0
    %v1938 = vadd.f32 %v1793, %v1937
    %v1939 = vpop.f32.mrf.mxu0
    %1940 = vmatprep.mubr.f32.mxu0 0.0
    %1941 = vmatmul.mubr.f32.gmra.mxu0 %v703
    %v1942 = vpop.f32.mrf.mxu0
    %v1943 = vadd.f32 %v1798, %v1942
    %v1944 = vpop.f32.mrf.mxu0
    %1945 = vdwg.mxu0
    %v1946 = vld [vmem:[%s13] sm:$0x1]
    %v1948 = vlaneseq
    %v1949 = vshrl.u32 %v1948, 7
    %v1950 = vsub.s32 0, %v1949
    %v1951 = vrot.slane %v1946, %v1950
    %v1953 = vadd.f32 %v1868, %v1951
    %v1954 = vadd.f32 %v1873, %v1951
    %v1955 = vadd.f32 %v1878, %v1951
    %v1956 = vadd.f32 %v1883, %v1951
    %v1957 = vadd.f32 %v1888, %v1951
    %v1958 = vadd.f32 %v1893, %v1951
    %v1959 = vadd.f32 %v1898, %v1951
    %v1960 = vadd.f32 %v1903, %v1951
    %v1961 = vadd.f32 %v1908, %v1951
    %v1962 = vadd.f32 %v1913, %v1951
    %v1963 = vadd.f32 %v1918, %v1951
    %v1964 = vadd.f32 %v1923, %v1951
    %v1965 = vadd.f32 %v1928, %v1951
    %v1966 = vadd.f32 %v1933, %v1951
    %v1967 = vadd.f32 %v1938, %v1951
    %v1968 = vadd.f32 %v1943, %v1951
    %v1969 = vmax.f32 %v1953, 0.0
    %v1970 = vmax.f32 %v1954, 0.0
    %v1971 = vmax.f32 %v1955, 0.0
    %v1972 = vmax.f32 %v1956, 0.0
    %v1973 = vmax.f32 %v1957, 0.0
    %v1974 = vmax.f32 %v1958, 0.0
    %v1975 = vmax.f32 %v1959, 0.0
    %v1976 = vmax.f32 %v1960, 0.0
    %v1977 = vmax.f32 %v1961, 0.0
    %v1978 = vmax.f32 %v1962, 0.0
    %v1979 = vmax.f32 %v1963, 0.0
    %v1980 = vmax.f32 %v1964, 0.0
    %v1981 = vmax.f32 %v1965, 0.0
    %v1982 = vmax.f32 %v1966, 0.0
    %v1983 = vmax.f32 %v1967, 0.0
    %v1984 = vmax.f32 %v1968, 0.0
    %v1985 = vld [vmem:[#allocation14] sm:$0xff]
    %v1986 = vld [vmem:[#allocation14 + $0x8] sm:$0xff]
    %v1987 = vld [vmem:[#allocation14 + $0x10] sm:$0xff]
    %v1988 = vld [vmem:[#allocation14 + $0x18] sm:$0xff]
    %v1989 = vld [vmem:[#allocation14 + $0x20] sm:$0xff]
    %v1990 = vld [vmem:[#allocation14 + $0x28] sm:$0xff]
    %v1991 = vld [vmem:[#allocation14 + $0x30] sm:$0xff]
    %v1992 = vld [vmem:[#allocation14 + $0x38] sm:$0xff]
    %v1993 = vld [vmem:[#allocation14 + $0x40] sm:$0xff]
    %v1994 = vld [vmem:[#allocation14 + $0x48] sm:$0xff]
    %v1995 = vld [vmem:[#allocation14 + $0x50] sm:$0xff]
    %v1996 = vld [vmem:[#allocation14 + $0x58] sm:$0xff]
    %v1997 = vld [vmem:[#allocation14 + $0x60] sm:$0xff]
    %v1998 = vld [vmem:[#allocation14 + $0x68] sm:$0xff]
    %v1999 = vld [vmem:[#allocation14 + $0x70] sm:$0xff]
    %v2000 = vld [vmem:[#allocation14 + $0x78] sm:$0xff]
    %v2001 = vld [vmem:[%s15] sm:$0x1]
    %v2003 = vlaneseq
    %v2004 = vshrl.u32 %v2003, 7
    %v2005 = vsub.s32 0, %v2004
    %v2006 = vrot.slane %v2001, %v2005
    %2008 = vmatprep.subr.mxu0 0.0
    %2009 = vmatpush1.msra.mxu0 %v2000
    %2010 = vmatprep.subr.mxu0 0.0
    %2011 = vmatpush1.msra.mxu0 %v1999
    %2012 = vmatprep.subr.mxu0 0.0
    %2013 = vmatpush1.msra.mxu0 %v1998
    %2014 = vmatprep.subr.mxu0 0.0
    %2015 = vmatpush1.msra.mxu0 %v1997
    %2016 = vmatprep.subr.mxu0 0.0
    %2017 = vmatpush1.msra.mxu0 %v1996
    %2018 = vmatprep.subr.mxu0 0.0
    %2019 = vmatpush1.msra.mxu0 %v1995
    %2020 = vmatprep.subr.mxu0 0.0
    %2021 = vmatpush1.msra.mxu0 %v1994
    %2022 = vmatprep.subr.mxu0 0.0
    %2023 = vmatpush1.msra.mxu0 %v1993
    %2024 = vmatprep.subr.mxu0 0.0
    %2025 = vmatpush1.msra.mxu0 %v1992
    %2026 = vmatprep.subr.mxu0 0.0
    %2027 = vmatpush1.msra.mxu0 %v1991
    %2028 = vmatprep.subr.mxu0 0.0
    %2029 = vmatpush1.msra.mxu0 %v1990
    %2030 = vmatprep.subr.mxu0 0.0
    %2031 = vmatpush1.msra.mxu0 %v1989
    %2032 = vmatprep.subr.mxu0 0.0
    %2033 = vmatpush1.msra.mxu0 %v1988
    %2034 = vmatprep.subr.mxu0 0.0
    %2035 = vmatpush1.msra.mxu0 %v1987
    %2036 = vmatprep.subr.mxu0 0.0
    %2037 = vmatpush1.msra.mxu0 %v1986
    %2038 = vmatprep.subr.mxu0 0.0
    %2039 = vmatpush1.msra.mxu0 %v1985
    %2040 = vmatprep.subr.mxu0 0.0
    %2041 = vmatpush2.msra.mxu0 0.0
    %2042 = vmatprep.subr.mxu0 0.0
    %2043 = vmatpush2.msra.mxu0 0.0
    %2044 = vmatprep.subr.mxu0 0.0
    %2045 = vmatpush2.msra.mxu0 0.0
    %2046 = vmatprep.subr.mxu0 0.0
    %2047 = vmatpush2.msra.mxu0 0.0
    %2048 = vmatprep.subr.mxu0 0.0
    %2049 = vmatpush2.msra.mxu0 0.0
    %2050 = vmatprep.subr.mxu0 0.0
    %2051 = vmatpush2.msra.mxu0 0.0
    %2052 = vmatprep.subr.mxu0 0.0
    %2053 = vmatpush2.msra.mxu0 0.0
    %2054 = vmatprep.subr.mxu0 0.0
    %2055 = vmatpush2.msra.mxu0 0.0
    %2056 = vmatprep.subr.mxu0 0.0
    %2057 = vmatpush2.msra.mxu0 0.0
    %2058 = vmatprep.subr.mxu0 0.0
    %2059 = vmatpush2.msra.mxu0 0.0
    %2060 = vmatprep.subr.mxu0 0.0
    %2061 = vmatpush2.msra.mxu0 0.0
    %2062 = vmatprep.subr.mxu0 0.0
    %2063 = vmatpush2.msra.mxu0 0.0
    %2064 = vmatprep.subr.mxu0 0.0
    %2065 = vmatpush2.msra.mxu0 0.0
    %2066 = vmatprep.subr.mxu0 0.0
    %2067 = vmatpush2.msra.mxu0 0.0
    %2068 = vmatprep.subr.mxu0 0.0
    %2069 = vmatpush2.msra.mxu0 0.0
    %2070 = vmatprep.subr.mxu0 0.0
    %2071 = vmatpush2.msra.mxu0 0.0
    %2072 = vmatprep.mubr.f32.mxu0 0.0
    %2073 = vmatmul.mubr.f32.gmra.mxu0 %v1969
    %v2074 = vpop.f32.mrf.mxu0
    %v2075 = vadd.f32 %v2006, %v2074
    %v2076 = vpop.f32.mrf.mxu0
    %2077 = vmatprep.mubr.f32.mxu0 0.0
    %2078 = vmatmul.mubr.f32.gmra.mxu0 %v1970
    %v2079 = vpop.f32.mrf.mxu0
    %v2080 = vadd.f32 %v2006, %v2079
    %v2081 = vpop.f32.mrf.mxu0
    %2082 = vmatprep.mubr.f32.mxu0 0.0
    %2083 = vmatmul.mubr.f32.gmra.mxu0 %v1971
    %v2084 = vpop.f32.mrf.mxu0
    %v2085 = vadd.f32 %v2006, %v2084
    %v2086 = vpop.f32.mrf.mxu0
    %2087 = vmatprep.mubr.f32.mxu0 0.0
    %2088 = vmatmul.mubr.f32.gmra.mxu0 %v1972
    %v2089 = vpop.f32.mrf.mxu0
    %v2090 = vadd.f32 %v2006, %v2089
    %v2091 = vpop.f32.mrf.mxu0
    %2092 = vmatprep.mubr.f32.mxu0 0.0
    %2093 = vmatmul.mubr.f32.gmra.mxu0 %v1973
    %v2094 = vpop.f32.mrf.mxu0
    %v2095 = vadd.f32 %v2006, %v2094
    %v2096 = vpop.f32.mrf.mxu0
    %2097 = vmatprep.mubr.f32.mxu0 0.0
    %2098 = vmatmul.mubr.f32.gmra.mxu0 %v1974
    %v2099 = vpop.f32.mrf.mxu0
    %v2100 = vadd.f32 %v2006, %v2099
    %v2101 = vpop.f32.mrf.mxu0
    %2102 = vmatprep.mubr.f32.mxu0 0.0
    %2103 = vmatmul.mubr.f32.gmra.mxu0 %v1975
    %v2104 = vpop.f32.mrf.mxu0
    %v2105 = vadd.f32 %v2006, %v2104
    %v2106 = vpop.f32.mrf.mxu0
    %2107 = vmatprep.mubr.f32.mxu0 0.0
    %2108 = vmatmul.mubr.f32.gmra.mxu0 %v1976
    %v2109 = vpop.f32.mrf.mxu0
    %v2110 = vadd.f32 %v2006, %v2109
    %v2111 = vpop.f32.mrf.mxu0
    %2112 = vmatprep.mubr.f32.mxu0 0.0
    %2113 = vmatmul.mubr.f32.gmra.mxu0 %v1977
    %v2114 = vpop.f32.mrf.mxu0
    %v2115 = vadd.f32 %v2006, %v2114
    %v2116 = vpop.f32.mrf.mxu0
    %2117 = vmatprep.mubr.f32.mxu0 0.0
    %2118 = vmatmul.mubr.f32.gmra.mxu0 %v1978
    %v2119 = vpop.f32.mrf.mxu0
    %v2120 = vadd.f32 %v2006, %v2119
    %v2121 = vpop.f32.mrf.mxu0
    %2122 = vmatprep.mubr.f32.mxu0 0.0
    %2123 = vmatmul.mubr.f32.gmra.mxu0 %v1979
    %v2124 = vpop.f32.mrf.mxu0
    %v2125 = vadd.f32 %v2006, %v2124
    %v2126 = vpop.f32.mrf.mxu0
    %2127 = vmatprep.mubr.f32.mxu0 0.0
    %2128 = vmatmul.mubr.f32.gmra.mxu0 %v1980
    %v2129 = vpop.f32.mrf.mxu0
    %v2130 = vadd.f32 %v2006, %v2129
    %v2131 = vpop.f32.mrf.mxu0
    %2132 = vmatprep.mubr.f32.mxu0 0.0
    %2133 = vmatmul.mubr.f32.gmra.mxu0 %v1981
    %v2134 = vpop.f32.mrf.mxu0
    %v2135 = vadd.f32 %v2006, %v2134
    %v2136 = vpop.f32.mrf.mxu0
    %2137 = vmatprep.mubr.f32.mxu0 0.0
    %2138 = vmatmul.mubr.f32.gmra.mxu0 %v1982
    %v2139 = vpop.f32.mrf.mxu0
    %v2140 = vadd.f32 %v2006, %v2139
    %v2141 = vpop.f32.mrf.mxu0
    %2142 = vmatprep.mubr.f32.mxu0 0.0
    %2143 = vmatmul.mubr.f32.gmra.mxu0 %v1983
    %v2144 = vpop.f32.mrf.mxu0
    %v2145 = vadd.f32 %v2006, %v2144
    %v2146 = vpop.f32.mrf.mxu0
    %2147 = vmatprep.mubr.f32.mxu0 0.0
    %2148 = vmatmul.mubr.f32.gmra.mxu0 %v1984
    %v2149 = vpop.f32.mrf.mxu0
    %v2150 = vadd.f32 %v2006, %v2149
    %v2151 = vpop.f32.mrf.mxu0
    %2152 = vdwg.mxu0
    %v2153 = vlaneseq
    %v2154 = vand.u32 %v2153, 127
    %vm2155 = vcmp.eq.s32.totalorder %v2154, 32
    %v2156 = vsel %vm2155, 1, 0
    %v2157 = vcvt.s32.f32 %v2156
    %v2158 = vld [vmem:[#allocation2] sm:$0xff]
    %v2159 = vld [vmem:[#allocation2 + $0x8] sm:$0xff]
    %v2160 = vadd.f32 %v2075, %v2157
    %v2161 = vadd.f32 %v2080, %v2157
    %v2162 = vadd.f32 %v2085, %v2157
    %v2163 = vadd.f32 %v2090, %v2157
    %v2164 = vadd.f32 %v2095, %v2157
    %v2165 = vadd.f32 %v2100, %v2157
    %v2166 = vadd.f32 %v2105, %v2157
    %v2167 = vadd.f32 %v2110, %v2157
    %v2168 = vadd.f32 %v2115, %v2157
    %v2169 = vadd.f32 %v2120, %v2157
    %v2170 = vadd.f32 %v2125, %v2157
    %v2171 = vadd.f32 %v2130, %v2157
    %v2172 = vadd.f32 %v2135, %v2157
    %v2173 = vadd.f32 %v2140, %v2157
    %v2174 = vadd.f32 %v2145, %v2157
    %v2175 = vadd.f32 %v2150, %v2157
    %2176 = vmatprep.subr.mxu0 0.0
    %2177 = vmatpush1.msra.mxu0 %v2175
    %2178 = vmatprep.subr.mxu0 0.0
    %2179 = vmatpush1.msra.mxu0 %v2174
    %2180 = vmatprep.subr.mxu0 0.0
    %2181 = vmatpush1.msra.mxu0 %v2173
    %2182 = vmatprep.subr.mxu0 0.0
    %2183 = vmatpush1.msra.mxu0 %v2172
    %2184 = vmatprep.subr.mxu0 0.0
    %2185 = vmatpush1.msra.mxu0 %v2171
    %2186 = vmatprep.subr.mxu0 0.0
    %2187 = vmatpush1.msra.mxu0 %v2170
    %2188 = vmatprep.subr.mxu0 0.0
    %2189 = vmatpush1.msra.mxu0 %v2169
    %2190 = vmatprep.subr.mxu0 0.0
    %2191 = vmatpush1.msra.mxu0 %v2168
    %2192 = vmatprep.subr.mxu0 0.0
    %2193 = vmatpush1.msra.mxu0 %v2167
    %2194 = vmatprep.subr.mxu0 0.0
    %2195 = vmatpush1.msra.mxu0 %v2166
    %2196 = vmatprep.subr.mxu0 0.0
    %2197 = vmatpush1.msra.mxu0 %v2165
    %2198 = vmatprep.subr.mxu0 0.0
    %2199 = vmatpush1.msra.mxu0 %v2164
    %2200 = vmatprep.subr.mxu0 0.0
    %2201 = vmatpush1.msra.mxu0 %v2163
    %2202 = vmatprep.subr.mxu0 0.0
    %2203 = vmatpush1.msra.mxu0 %v2162
    %2204 = vmatprep.subr.mxu0 0.0
    %2205 = vmatpush1.msra.mxu0 %v2161
    %2206 = vmatprep.subr.mxu0 0.0
    %2207 = vmatpush1.msra.mxu0 %v2160
    %2208 = vmatprep.subr.mxu0 0.0
    %2209 = vmatpush2.msra.mxu0 0.0
    %2210 = vmatprep.subr.mxu0 0.0
    %2211 = vmatpush2.msra.mxu0 0.0
    %2212 = vmatprep.subr.mxu0 0.0
    %2213 = vmatpush2.msra.mxu0 0.0
    %2214 = vmatprep.subr.mxu0 0.0
    %2215 = vmatpush2.msra.mxu0 0.0
    %2216 = vmatprep.subr.mxu0 0.0
    %2217 = vmatpush2.msra.mxu0 0.0
    %2218 = vmatprep.subr.mxu0 0.0
    %2219 = vmatpush2.msra.mxu0 0.0
    %2220 = vmatprep.subr.mxu0 0.0
    %2221 = vmatpush2.msra.mxu0 0.0
    %2222 = vmatprep.subr.mxu0 0.0
    %2223 = vmatpush2.msra.mxu0 0.0
    %2224 = vmatprep.subr.mxu0 0.0
    %2225 = vmatpush2.msra.mxu0 0.0
    %2226 = vmatprep.subr.mxu0 0.0
    %2227 = vmatpush2.msra.mxu0 0.0
    %2228 = vmatprep.subr.mxu0 0.0
    %2229 = vmatpush2.msra.mxu0 0.0
    %2230 = vmatprep.subr.mxu0 0.0
    %2231 = vmatpush2.msra.mxu0 0.0
    %2232 = vmatprep.subr.mxu0 0.0
    %2233 = vmatpush2.msra.mxu0 0.0
    %2234 = vmatprep.subr.mxu0 0.0
    %2235 = vmatpush2.msra.mxu0 0.0
    %2236 = vmatprep.subr.mxu0 0.0
    %2237 = vmatpush2.msra.mxu0 0.0
    %2238 = vmatprep.subr.mxu0 0.0
    %2239 = vmatpush2.msra.mxu0 0.0
    %2240 = vmatprep.mubr.f32.mxu0 0.0
    %2241 = vmatmul.mubr.f32.gmra.mxu0 %v243
    %v2242 = vpop.f32.mrf.mxu0
    %v2243 = vadd.f32 0.0, %v2242
    %v2244 = vpop.f32.mrf.mxu0
    %2245 = vmatprep.mubr.f32.mxu0 0.0
    %2246 = vmatmul.mubr.f32.gmra.mxu0 %v244
    %v2247 = vpop.f32.mrf.mxu0
    %v2248 = vadd.f32 0.0, %v2247
    %v2249 = vpop.f32.mrf.mxu0
    %2250 = vdwg.mxu0
    %v2251 = vadd.f32 %v2158, %v2243
    %v2252 = vadd.f32 %v2159, %v2248
    %2253 = vst [vmem:[#allocation2] sm:$0xff] %v2251
    %2254 = vst [vmem:[#allocation2 + $0x8] sm:$0xff] %v2252
    // Predicated region
    $region130: #{tpu_custom_call.1} parent=1 // pred_check
      %p2255 = pneg %p206
    $region131: #{tpu_custom_call.1} parent=1 // pred_check_branch
      %2257 = sbr.rel (%p2255) target = $region133
    $region132: #{tpu_custom_call.1} parent=1 // pred_region
      %v2258 = vld [vmem:[#allocation2] sm:$0xff]
      %v2259 = vld [vmem:[#allocation2 + $0x8] sm:$0xff]
      %v2260 = vmax.f32 %v2258, 1.0
      %v2261 = vmax.f32 %v2259, 1.0
      %2263 = vset.pattern.permute.xlu0 32
      %2264 = vperm.xlu0 %2263, %v2260
      %v2265 = vpop.permute.xlu0 %2264
      %2268 = vset.pattern.permute.xlu0 32
      %2269 = vperm.xlu0 %2268, %v2261
      %v2270 = vpop.permute.xlu0 %2269
      %v2272 = vrcp.pop %v2265
      %v2273 = vmul.f32 %v2258, %v2272
      %v2274 = vrcp.pop %v2270
      %v2275 = vmul.f32 %v2259, %v2274
      %v2276 = vld [vmem:[#allocation15] sm:$0xff]
      %v2277 = vld [vmem:[#allocation15 + $0x8] sm:$0xff]
      %v2278 = vld [vmem:[#allocation15 + $0x10] sm:$0xff]
      %v2279 = vld [vmem:[#allocation15 + $0x18] sm:$0xff]
      %v2280 = vld [vmem:[#allocation15 + $0x20] sm:$0xff]
      %v2281 = vld [vmem:[#allocation15 + $0x28] sm:$0xff]
      %v2282 = vld [vmem:[#allocation15 + $0x30] sm:$0xff]
      %v2283 = vld [vmem:[#allocation15 + $0x38] sm:$0xff]
      %v2284 = vld [vmem:[#allocation15 + $0x40] sm:$0xff]
      %v2285 = vld [vmem:[#allocation15 + $0x48] sm:$0xff]
      %v2286 = vld [vmem:[#allocation15 + $0x50] sm:$0xff]
      %v2287 = vld [vmem:[#allocation15 + $0x58] sm:$0xff]
      %v2288 = vld [vmem:[#allocation15 + $0x60] sm:$0xff]
      %v2289 = vld [vmem:[#allocation15 + $0x68] sm:$0xff]
      %v2290 = vld [vmem:[#allocation15 + $0x70] sm:$0xff]
      %v2291 = vld [vmem:[#allocation15 + $0x78] sm:$0xff]
      %v2292 = vld [vmem:[#allocation17] sm:$0xff]
      %v2293 = vld [vmem:[#allocation17 + $0x8] sm:$0xff]
      %v2294 = vld [vmem:[#allocation17 + $0x10] sm:$0xff]
      %v2295 = vld [vmem:[#allocation17 + $0x18] sm:$0xff]
      %v2296 = vld [vmem:[#allocation17 + $0x20] sm:$0xff]
      %v2297 = vld [vmem:[#allocation17 + $0x28] sm:$0xff]
      %v2298 = vld [vmem:[#allocation17 + $0x30] sm:$0xff]
      %v2299 = vld [vmem:[#allocation17 + $0x38] sm:$0xff]
      %v2300 = vld [vmem:[#allocation17 + $0x40] sm:$0xff]
      %v2301 = vld [vmem:[#allocation17 + $0x48] sm:$0xff]
      %v2302 = vld [vmem:[#allocation17 + $0x50] sm:$0xff]
      %v2303 = vld [vmem:[#allocation17 + $0x58] sm:$0xff]
      %v2304 = vld [vmem:[#allocation17 + $0x60] sm:$0xff]
      %v2305 = vld [vmem:[#allocation17 + $0x68] sm:$0xff]
      %v2306 = vld [vmem:[#allocation17 + $0x70] sm:$0xff]
      %v2307 = vld [vmem:[#allocation17 + $0x78] sm:$0xff]
      %2308 = vmatprep.subr.mxu0 0.0
      %2309 = vmatpush1.msra.mxu0 %v2307
      %2310 = vmatprep.subr.mxu0 0.0
      %2311 = vmatpush1.msra.mxu0 %v2306
      %2312 = vmatprep.subr.mxu0 0.0
      %2313 = vmatpush1.msra.mxu0 %v2305
      %2314 = vmatprep.subr.mxu0 0.0
      %2315 = vmatpush1.msra.mxu0 %v2304
      %2316 = vmatprep.subr.mxu0 0.0
      %2317 = vmatpush1.msra.mxu0 %v2303
      %2318 = vmatprep.subr.mxu0 0.0
      %2319 = vmatpush1.msra.mxu0 %v2302
      %2320 = vmatprep.subr.mxu0 0.0
      %2321 = vmatpush1.msra.mxu0 %v2301
      %2322 = vmatprep.subr.mxu0 0.0
      %2323 = vmatpush1.msra.mxu0 %v2300
      %2324 = vmatprep.subr.mxu0 0.0
      %2325 = vmatpush1.msra.mxu0 %v2299
      %2326 = vmatprep.subr.mxu0 0.0
      %2327 = vmatpush1.msra.mxu0 %v2298
      %2328 = vmatprep.subr.mxu0 0.0
      %2329 = vmatpush1.msra.mxu0 %v2297
      %2330 = vmatprep.subr.mxu0 0.0
      %2331 = vmatpush1.msra.mxu0 %v2296
      %2332 = vmatprep.subr.mxu0 0.0
      %2333 = vmatpush1.msra.mxu0 %v2295
      %2334 = vmatprep.subr.mxu0 0.0
      %2335 = vmatpush1.msra.mxu0 %v2294
      %2336 = vmatprep.subr.mxu0 0.0
      %2337 = vmatpush1.msra.mxu0 %v2293
      %2338 = vmatprep.subr.mxu0 0.0
      %2339 = vmatpush1.msra.mxu0 %v2292
      %2340 = vmatprep.subr.mxu0 0.0
      %2341 = vmatpush2.msra.mxu0 0.0
      %2342 = vmatprep.subr.mxu0 0.0
      %2343 = vmatpush2.msra.mxu0 0.0
      %2344 = vmatprep.subr.mxu0 0.0
      %2345 = vmatpush2.msra.mxu0 0.0
      %2346 = vmatprep.subr.mxu0 0.0
      %2347 = vmatpush2.msra.mxu0 0.0
      %2348 = vmatprep.subr.mxu0 0.0
      %2349 = vmatpush2.msra.mxu0 0.0
      %2350 = vmatprep.subr.mxu0 0.0
      %2351 = vmatpush2.msra.mxu0 0.0
      %2352 = vmatprep.subr.mxu0 0.0
      %2353 = vmatpush2.msra.mxu0 0.0
      %2354 = vmatprep.subr.mxu0 0.0
      %2355 = vmatpush2.msra.mxu0 0.0
      %2356 = vmatprep.subr.mxu0 0.0
      %2357 = vmatpush2.msra.mxu0 0.0
      %2358 = vmatprep.subr.mxu0 0.0
      %2359 = vmatpush2.msra.mxu0 0.0
      %2360 = vmatprep.subr.mxu0 0.0
      %2361 = vmatpush2.msra.mxu0 0.0
      %2362 = vmatprep.subr.mxu0 0.0
      %2363 = vmatpush2.msra.mxu0 0.0
      %2364 = vmatprep.subr.mxu0 0.0
      %2365 = vmatpush2.msra.mxu0 0.0
      %2366 = vmatprep.subr.mxu0 0.0
      %2367 = vmatpush2.msra.mxu0 0.0
      %2368 = vmatprep.subr.mxu0 0.0
      %2369 = vmatpush2.msra.mxu0 0.0
      %2370 = vmatprep.subr.mxu0 0.0
      %2371 = vmatpush2.msra.mxu0 0.0
      %2372 = vmatprep.mubr.f32.mxu0 0.0
      %2373 = vmatmul.mubr.f32.gmra.mxu0 %v2273
      %v2374 = vpop.f32.mrf.mxu0
      %v2375 = vadd.f32 0.0, %v2374
      %v2376 = vpop.f32.mrf.mxu0
      %2377 = vmatprep.mubr.f32.mxu0 0.0
      %2378 = vmatmul.mubr.f32.gmra.mxu0 %v2275
      %v2379 = vpop.f32.mrf.mxu0
      %v2380 = vadd.f32 0.0, %v2379
      %v2381 = vpop.f32.mrf.mxu0
      %2382 = vdwg.mxu0
      %2383 = vmatprep.subr.mxu0 0.0
      %2384 = vmatpush1.msra.mxu0 %v2291
      %2385 = vmatprep.subr.mxu0 0.0
      %2386 = vmatpush1.msra.mxu0 %v2290
      %2387 = vmatprep.subr.mxu0 0.0
      %2388 = vmatpush1.msra.mxu0 %v2289
      %2389 = vmatprep.subr.mxu0 0.0
      %2390 = vmatpush1.msra.mxu0 %v2288
      %2391 = vmatprep.subr.mxu0 0.0
      %2392 = vmatpush1.msra.mxu0 %v2287
      %2393 = vmatprep.subr.mxu0 0.0
      %2394 = vmatpush1.msra.mxu0 %v2286
      %2395 = vmatprep.subr.mxu0 0.0
      %2396 = vmatpush1.msra.mxu0 %v2285
      %2397 = vmatprep.subr.mxu0 0.0
      %2398 = vmatpush1.msra.mxu0 %v2284
      %2399 = vmatprep.subr.mxu0 0.0
      %2400 = vmatpush1.msra.mxu0 %v2283
      %2401 = vmatprep.subr.mxu0 0.0
      %2402 = vmatpush1.msra.mxu0 %v2282
      %2403 = vmatprep.subr.mxu0 0.0
      %2404 = vmatpush1.msra.mxu0 %v2281
      %2405 = vmatprep.subr.mxu0 0.0
      %2406 = vmatpush1.msra.mxu0 %v2280
      %2407 = vmatprep.subr.mxu0 0.0
      %2408 = vmatpush1.msra.mxu0 %v2279
      %2409 = vmatprep.subr.mxu0 0.0
      %2410 = vmatpush1.msra.mxu0 %v2278
      %2411 = vmatprep.subr.mxu0 0.0
      %2412 = vmatpush1.msra.mxu0 %v2277
      %2413 = vmatprep.subr.mxu0 0.0
      %2414 = vmatpush1.msra.mxu0 %v2276
      %2415 = vmatprep.subr.mxu0 0.0
      %2416 = vmatpush2.msra.mxu0 0.0
      %2417 = vmatprep.subr.mxu0 0.0
      %2418 = vmatpush2.msra.mxu0 0.0
      %2419 = vmatprep.subr.mxu0 0.0
      %2420 = vmatpush2.msra.mxu0 0.0
      %2421 = vmatprep.subr.mxu0 0.0
      %2422 = vmatpush2.msra.mxu0 0.0
      %2423 = vmatprep.subr.mxu0 0.0
      %2424 = vmatpush2.msra.mxu0 0.0
      %2425 = vmatprep.subr.mxu0 0.0
      %2426 = vmatpush2.msra.mxu0 0.0
      %2427 = vmatprep.subr.mxu0 0.0
      %2428 = vmatpush2.msra.mxu0 0.0
      %2429 = vmatprep.subr.mxu0 0.0
      %2430 = vmatpush2.msra.mxu0 0.0
      %2431 = vmatprep.subr.mxu0 0.0
      %2432 = vmatpush2.msra.mxu0 0.0
      %2433 = vmatprep.subr.mxu0 0.0
      %2434 = vmatpush2.msra.mxu0 0.0
      %2435 = vmatprep.subr.mxu0 0.0
      %2436 = vmatpush2.msra.mxu0 0.0
      %2437 = vmatprep.subr.mxu0 0.0
      %2438 = vmatpush2.msra.mxu0 0.0
      %2439 = vmatprep.subr.mxu0 0.0
      %2440 = vmatpush2.msra.mxu0 0.0
      %2441 = vmatprep.subr.mxu0 0.0
      %2442 = vmatpush2.msra.mxu0 0.0
      %2443 = vmatprep.subr.mxu0 0.0
      %2444 = vmatpush2.msra.mxu0 0.0
      %2445 = vmatprep.subr.mxu0 0.0
      %2446 = vmatpush2.msra.mxu0 0.0
      %2447 = vmatprep.mubr.f32.mxu0 0.0
      %2448 = vmatmul.mubr.f32.gmra.mxu0 %v212
      %v2449 = vpop.f32.mrf.mxu0
      %v2450 = vadd.f32 %v2375, %v2449
      %v2451 = vpop.f32.mrf.mxu0
      %2452 = vmatprep.mubr.f32.mxu0 0.0
      %2453 = vmatmul.mubr.f32.gmra.mxu0 %v213
      %v2454 = vpop.f32.mrf.mxu0
      %v2455 = vadd.f32 %v2380, %v2454
      %v2456 = vpop.f32.mrf.mxu0
      %2457 = vdwg.mxu0
      %v2458 = vld [vmem:[%s18] sm:$0x1]
      %v2460 = vlaneseq
      %v2461 = vshrl.u32 %v2460, 7
      %v2462 = vsub.s32 0, %v2461
      %v2463 = vrot.slane %v2458, %v2462
      %v2465 = vadd.f32 %v2450, %v2463
      %v2466 = vadd.f32 %v2455, %v2463
      %v2467 = vmax.f32 %v2465, 0.0
      %v2468 = vmax.f32 %v2466, 0.0
      %v2469 = vld [vmem:[#allocation18] sm:$0xff]
      %v2470 = vld [vmem:[#allocation18 + $0x8] sm:$0xff]
      %v2471 = vld [vmem:[#allocation18 + $0x10] sm:$0xff]
      %v2472 = vld [vmem:[#allocation18 + $0x18] sm:$0xff]
      %v2473 = vld [vmem:[#allocation18 + $0x20] sm:$0xff]
      %v2474 = vld [vmem:[#allocation18 + $0x28] sm:$0xff]
      %v2475 = vld [vmem:[#allocation18 + $0x30] sm:$0xff]
      %v2476 = vld [vmem:[#allocation18 + $0x38] sm:$0xff]
      %v2477 = vld [vmem:[#allocation18 + $0x40] sm:$0xff]
      %v2478 = vld [vmem:[#allocation18 + $0x48] sm:$0xff]
      %v2479 = vld [vmem:[#allocation18 + $0x50] sm:$0xff]
      %v2480 = vld [vmem:[#allocation18 + $0x58] sm:$0xff]
      %v2481 = vld [vmem:[#allocation18 + $0x60] sm:$0xff]
      %v2482 = vld [vmem:[#allocation18 + $0x68] sm:$0xff]
      %v2483 = vld [vmem:[#allocation18 + $0x70] sm:$0xff]
      %v2484 = vld [vmem:[#allocation18 + $0x78] sm:$0xff]
      %v2485 = vld [vmem:[%s20] sm:$0x1]
      %v2487 = vlaneseq
      %v2488 = vshrl.u32 %v2487, 7
      %v2489 = vsub.s32 0, %v2488
      %v2490 = vrot.slane %v2485, %v2489
      %2492 = vmatprep.subr.mxu0 0.0
      %2493 = vmatpush1.msra.mxu0 %v2484
      %2494 = vmatprep.subr.mxu0 0.0
      %2495 = vmatpush1.msra.mxu0 %v2483
      %2496 = vmatprep.subr.mxu0 0.0
      %2497 = vmatpush1.msra.mxu0 %v2482
      %2498 = vmatprep.subr.mxu0 0.0
      %2499 = vmatpush1.msra.mxu0 %v2481
      %2500 = vmatprep.subr.mxu0 0.0
      %2501 = vmatpush1.msra.mxu0 %v2480
      %2502 = vmatprep.subr.mxu0 0.0
      %2503 = vmatpush1.msra.mxu0 %v2479
      %2504 = vmatprep.subr.mxu0 0.0
      %2505 = vmatpush1.msra.mxu0 %v2478
      %2506 = vmatprep.subr.mxu0 0.0
      %2507 = vmatpush1.msra.mxu0 %v2477
      %2508 = vmatprep.subr.mxu0 0.0
      %2509 = vmatpush1.msra.mxu0 %v2476
      %2510 = vmatprep.subr.mxu0 0.0
      %2511 = vmatpush1.msra.mxu0 %v2475
      %2512 = vmatprep.subr.mxu0 0.0
      %2513 = vmatpush1.msra.mxu0 %v2474
      %2514 = vmatprep.subr.mxu0 0.0
      %2515 = vmatpush1.msra.mxu0 %v2473
      %2516 = vmatprep.subr.mxu0 0.0
      %2517 = vmatpush1.msra.mxu0 %v2472
      %2518 = vmatprep.subr.mxu0 0.0
      %2519 = vmatpush1.msra.mxu0 %v2471
      %2520 = vmatprep.subr.mxu0 0.0
      %2521 = vmatpush1.msra.mxu0 %v2470
      %2522 = vmatprep.subr.mxu0 0.0
      %2523 = vmatpush1.msra.mxu0 %v2469
      %2524 = vmatprep.subr.mxu0 0.0
      %2525 = vmatpush2.msra.mxu0 0.0
      %2526 = vmatprep.subr.mxu0 0.0
      %2527 = vmatpush2.msra.mxu0 0.0
      %2528 = vmatprep.subr.mxu0 0.0
      %2529 = vmatpush2.msra.mxu0 0.0
      %2530 = vmatprep.subr.mxu0 0.0
      %2531 = vmatpush2.msra.mxu0 0.0
      %2532 = vmatprep.subr.mxu0 0.0
      %2533 = vmatpush2.msra.mxu0 0.0
      %2534 = vmatprep.subr.mxu0 0.0
      %2535 = vmatpush2.msra.mxu0 0.0
      %2536 = vmatprep.subr.mxu0 0.0
      %2537 = vmatpush2.msra.mxu0 0.0
      %2538 = vmatprep.subr.mxu0 0.0
      %2539 = vmatpush2.msra.mxu0 0.0
      %2540 = vmatprep.subr.mxu0 0.0
      %2541 = vmatpush2.msra.mxu0 0.0
      %2542 = vmatprep.subr.mxu0 0.0
      %2543 = vmatpush2.msra.mxu0 0.0
      %2544 = vmatprep.subr.mxu0 0.0
      %2545 = vmatpush2.msra.mxu0 0.0
      %2546 = vmatprep.subr.mxu0 0.0
      %2547 = vmatpush2.msra.mxu0 0.0
      %2548 = vmatprep.subr.mxu0 0.0
      %2549 = vmatpush2.msra.mxu0 0.0
      %2550 = vmatprep.subr.mxu0 0.0
      %2551 = vmatpush2.msra.mxu0 0.0
      %2552 = vmatprep.subr.mxu0 0.0
      %2553 = vmatpush2.msra.mxu0 0.0
      %2554 = vmatprep.subr.mxu0 0.0
      %2555 = vmatpush2.msra.mxu0 0.0
      %2556 = vmatprep.mubr.f32.mxu0 0.0
      %2557 = vmatmul.mubr.f32.gmra.mxu0 %v2467
      %v2558 = vpop.f32.mrf.mxu0
      %v2559 = vadd.f32 %v2490, %v2558
      %v2560 = vpop.f32.mrf.mxu0
      %2561 = vmatprep.mubr.f32.mxu0 0.0
      %2562 = vmatmul.mubr.f32.gmra.mxu0 %v2468
      %v2563 = vpop.f32.mrf.mxu0
      %v2564 = vadd.f32 %v2490, %v2563
      %v2565 = vpop.f32.mrf.mxu0
      %2566 = vdwg.mxu0
      %v2567 = vadd.f32 %v2559, %v212
      %v2568 = vadd.f32 %v2564, %v213
      %2569 = vst [vmem:[#allocation21] sm:$0xff] %v2567
      %2570 = vst [vmem:[#allocation21 + $0x8] sm:$0xff] %v2568
    $region133: #{tpu_custom_call.1} parent=1 // pred_fallthru
      _
    // Predicated region
    $region134: #{tpu_custom_call.1} parent=1 // pred_check
      _
    $region135: #{tpu_custom_call.1} parent=1 // pred_check_branch
      %2572 = sbr.rel (0) target = $region137
    $region136: #{tpu_custom_call.1} parent=1 // pred_region
      %s2574 = ssub.s32 2048, 2048
      %2575 = vsyncadd [#allocation5], %s2574
      %s2576 = sshll.u32 [#allocation20], 4
      %s2577 = int_to_ptr.vmem [resolvable:$true] %s2576
      %2582 = dma.vmem_to_hbm [thread:$0]  %s2577, 2048, %s21, [#allocation5], 128, 128, 8
    $region137: #{tpu_custom_call.1} parent=1 // pred_fallthru
      _
    // Predicated region
    $region138: #{tpu_custom_call.1} parent=1 // pred_check
      _
    $region139: #{tpu_custom_call.1} parent=1 // pred_check_branch
      %2584 = sbr.rel (0) target = $region141
    $region140: #{tpu_custom_call.1} parent=1 // pred_region
      %s2586 = ssub.s32 256, 256
      %2587 = vsyncadd [#allocation22], %s2586
      %s2588 = sshll.u32 [#allocation21], 4
      %s2589 = int_to_ptr.vmem [resolvable:$true] %s2588
      %2594 = dma.vmem_to_hbm [thread:$0]  %s2589, 256, %s22, [#allocation22], 128, 128, 8
    $region141: #{tpu_custom_call.1} parent=1 // pred_fallthru
      _
    // Predicated region
    $region142: #{tpu_custom_call.1} parent=1 // pred_check
      _
    $region143: #{tpu_custom_call.1} parent=1 // pred_check_branch
      %2596 = sbr.rel (0) target = $region145
    $region144: #{tpu_custom_call.1} parent=1 // pred_region
      %2597 = dma.done [#allocation5], 2048
    $region145: #{tpu_custom_call.1} parent=1 // pred_fallthru
      _
    // Predicated region
    $region146: #{tpu_custom_call.1} parent=1 // pred_check
      _
    $region147: #{tpu_custom_call.1} parent=1 // pred_check_branch
      %2599 = sbr.rel (0) target = $region149
    $region148: #{tpu_custom_call.1} parent=1 // pred_region
      %2600 = dma.done [#allocation22], 256
    $region149: #{tpu_custom_call.1} parent=1 // pred_fallthru
      _
    %2601 = vsyncpa [#allocation4], 1
    %2602 = vsyncpa [#allocation7], 1
    %2603 = vsyncpa [#allocation10], 1
    %2604 = vsyncpa [#allocation13], 1
    %2605 = vsyncpa [#allocation16], 1
    %2606 = vsyncpa [#allocation19], 1
    %2607 = vsyncpa [#allocation5], 1
    %2608 = vsyncpa [#allocation22], 1

</llo_original>
